<compile_context>
chip_gen: v7x
topology: tpu7x:2x2x1
jax: 0.10.0
libtpu: 0.0.40
codegen_flags: <defaults>
</compile_context>

<pallas_src>
from functools import partial

import jax
import jax.numpy as jnp
from jax.experimental import pallas as pl
from jax.experimental.pallas import tpu as pltpu


# ---------------------------------------------------------------------------
# in-kernel math helpers
# ---------------------------------------------------------------------------
def _layernorm(x, g, b, eps=1e-5):
    # PyTorch nn.LayerNorm: biased variance, eps inside the sqrt. f32 stats.
    mu = jnp.mean(x, axis=-1, keepdims=True)
    var = jnp.mean((x - mu) ** 2, axis=-1, keepdims=True)
    return (x - mu) * jax.lax.rsqrt(var + eps) * g + b


if hasattr(pl, "reciprocal"):
    def _recip(x):
        return pl.reciprocal(x, approx=True)      # EUP slot, ~free next to MXU
else:                                             # fallback for older jax
    def _recip(x):
        return 1.0 / x


def _gelu_tanh(x):
    # tanh-approx GELU (EUP tanh); |err| vs exact erf GELU << test tolerance.
    c = 0.7978845608028654  # sqrt(2/pi)
    return 0.5 * x * (1.0 + jnp.tanh(c * (x + 0.044715 * x * x * x)))


def _erf_poly(x):
    # Abramowitz & Stegun 7.1.26 — used only in the pure-JAX reference.
    a1, a2, a3, a4, a5 = 0.254829592, -0.284496736, 1.421413741, -1.453152027, 1.061405429
    p = 0.3275911
    s = jnp.sign(x)
    ax = jnp.abs(x)
    t = 1.0 / (1.0 + p * ax)
    poly = ((((a5 * t + a4) * t + a3) * t + a2) * t + a1) * t
    return s * (1.0 - poly * jnp.exp(-ax * ax))


def _gelu_exact(x):
    return 0.5 * x * (1.0 + _erf_poly(x * 0.7071067811865476))


# ---------------------------------------------------------------------------
# stage 1: cross-attention (+ bridge residual) + self-attn q/k/v projections
# ---------------------------------------------------------------------------
def _cross_qkv_kernel(*refs, num_heads, has_bridge):
    bt_out, q_out, k_out, v_out = refs[-4:]
    ins = refs[:-4]
    img_ref, txt_ref, msk_ref = ins[0], ins[1], ins[2]
    xb_ref = ins[3] if has_bridge else None
    (ln3_g, ln3_b, ln4_g, ln4_b, ln5_g, ln5_b,
     caq_w, cak_w, cav_w, capr_w, capr_b,
     saq_w, sak_w, sav_w) = ins[4 if has_bridge else 3:]

    bf16 = jnp.bfloat16
    f32 = jnp.float32

    x = img_ref[0]                                    # (TN, C)  f32
    t = txt_ref[0]                                    # (L, Ct)  f32
    bias = (1.0 - msk_ref[0]) * (-10000.0)            # (1, L)

    xn = _layernorm(x, ln3_g[...], ln3_b[...]).astype(bf16)
    tn = _layernorm(t, ln4_g[...], ln4_b[...]).astype(bf16)

    # TODO(synk): the text K/V projection is recomputed for every N-tile (kept
    # so both grid axes stay "parallel" for megacore sharding); hoist it to a
    # tiny per-batch stage if L*Ct*C ever rivals the per-tile image matmuls.
    proj = None
    for h in range(num_heads):
        # per-head weight slices: full-C contraction width on the MXU,
        # no lane slicing of activations, no lane-dim concat.
        qh = jnp.dot(xn, caq_w[h], preferred_element_type=f32)   # (TN, hd), scale folded
        kh = jnp.dot(tn, cak_w[h], preferred_element_type=f32)   # (L, hd)
        vh = jnp.dot(tn, cav_w[h], preferred_element_type=f32)   # (L, hd)
        s = jax.lax.dot_general(qh.astype(bf16), kh.astype(bf16),
                                (((1,), (1,)), ((), ())),
                                preferred_element_type=f32)      # (TN, L)
        s = s + bias
        s = s - jnp.max(s, axis=-1, keepdims=True)
        e = jnp.exp(s)
        inv = _recip(jnp.sum(e, axis=-1, keepdims=True))         # (TN, 1)
        oh = jnp.dot(e.astype(bf16), vh.astype(bf16),
                     preferred_element_type=f32) * inv           # (TN, hd)
        ph = jnp.dot(oh.astype(bf16), capr_w[h],
                     preferred_element_type=f32)                 # (TN, C)
        proj = ph if proj is None else proj + ph
    cross = proj + capr_b[...]

    bt = cross if xb_ref is None else cross + xb_ref[0]
    bt_out[0] = bt.astype(bt_out.dtype)

    # self-attention q/k/v projections (head-major, bf16) for stage 2
    bn = _layernorm(bt, ln5_g[...], ln5_b[...]).astype(bf16)
    for h in range(num_heads):
        q_out[0, h] = jnp.dot(bn, saq_w[h], preferred_element_type=f32).astype(q_out.dtype)
        k_out[0, h] = jnp.dot(bn, sak_w[h], preferred_element_type=f32).astype(k_out.dtype)
        v_out[0, h] = jnp.dot(bn, sav_w[h], preferred_element_type=f32).astype(v_out.dtype)


# ---------------------------------------------------------------------------
# stage 2: flash self-attention + output projection + residual + MLP
# ---------------------------------------------------------------------------
def _flash_mlp_kernel(q_ref, k_ref, v_ref, bt_ref,
                      sapr_w, sapr_b, ln6_g, ln6_b, fc1_w, fc1_b, fc2_w, fc2_b,
                      out_ref, m_sc, l_sc, acc_sc, *, num_heads):
    ki = pl.program_id(2)
    bf16 = jnp.bfloat16
    f32 = jnp.float32

    @pl.when(ki == 0)
    def _():
        m_sc[...] = jnp.full(m_sc.shape, -jnp.inf, m_sc.dtype)
        l_sc[...] = jnp.zeros(l_sc.shape, l_sc.dtype)
        acc_sc[...] = jnp.zeros(acc_sc.shape, acc_sc.dtype)

    q = q_ref[0]            # (H, TQ, hd) bf16, attention scale already folded in
    k = k_ref[0]            # (H, TK, hd) bf16
    v = v_ref[0]            # (H, TK, hd) bf16

    # heads in the batch (leading) position -> 3-D batched MXU contractions
    s = jnp.einsum("hqd,hkd->hqk", q, k, preferred_element_type=f32)
    m_prev = m_sc[...]
    m_new = jnp.maximum(m_prev, jnp.max(s, axis=-1, keepdims=True))
    alpha = jnp.exp(m_prev - m_new)
    # TODO(synk): on v6e/v7x this exp could run in bf16 on the EUP (~2x); kept
    # in f32 so the same kernel stays full-rate/correct on v5e.
    p = jnp.exp(s - m_new)
    l_sc[...] = alpha * l_sc[...] + jnp.sum(p, axis=-1, keepdims=True)
    acc_sc[...] = alpha * acc_sc[...] + jnp.einsum(
        "hqk,hkd->hqd", p.astype(bf16), v, preferred_element_type=f32)
    m_sc[...] = m_new

    @pl.when(ki == pl.num_programs(2) - 1)
    def _():
        ctx = acc_sc[...] * _recip(l_sc[...])                 # (H, TQ, hd) f32
        proj = None
        for h in range(num_heads):                            # sum_h ctx_h @ Wp_h
            ph = jnp.dot(ctx[h].astype(bf16), sapr_w[h],
                         preferred_element_type=f32)          # (TQ, C)
            proj = ph if proj is None else proj + ph
        bt = bt_ref[0] + proj + sapr_b[...]                   # residual self-attn
        bn = _layernorm(bt, ln6_g[...], ln6_b[...]).astype(bf16)
        hdn = jnp.dot(bn, fc1_w[...], preferred_element_type=f32) + fc1_b[...]
        hdn = _gelu_tanh(hdn).astype(bf16)
        out = bt + jnp.dot(hdn, fc2_w[...], preferred_element_type=f32) + fc2_b[...]
        # dropout / DropPath with p=0.0 are identity -> nothing to do.
        out_ref[0] = out.astype(out_ref.dtype)


# ---------------------------------------------------------------------------
# host-side weight preparation (ONCE, off the hot path): bf16 cast, per-head
# split, attention scale folded into the q projections
# ---------------------------------------------------------------------------
def prepare_weights(params, num_heads):
    C = params["caq_w"].shape[0]
    assert C % num_heads == 0
    hd = C // num_heads
    scale = hd ** (-0.5)
    bf16 = jnp.bfloat16

    def split_in(w):      # (Cin, H*hd) -> (H, Cin, hd)
        cin = w.shape[0]
        return jnp.transpose(w.reshape(cin, num_heads, hd), (1, 0, 2))

    def split_out(w):     # (H*hd, Cout) -> (H, hd, Cout)
        cout = w.shape[1]
        return w.reshape(num_heads, hd, cout)

    cakv = params["cakv_w"]
    ca_k_w, ca_v_w = cakv[:, :C], cakv[:, C:]
    saqkv = params["saqkv_w"]
    sa_q_w, sa_k_w, sa_v_w = saqkv[:, :C], saqkv[:, C:2 * C], saqkv[:, 2 * C:]

    return {
        "ln3_g": params["ln3_g"], "ln3_b": params["ln3_b"],
        "ln4_g": params["ln4_g"], "ln4_b": params["ln4_b"],
        "ln5_g": params["ln5_g"], "ln5_b": params["ln5_b"],
        "ln6_g": params["ln6_g"], "ln6_b": params["ln6_b"],
        "caq_w": split_in(params["caq_w"] * scale).astype(bf16),
        "cak_w": split_in(ca_k_w).astype(bf16),
        "cav_w": split_in(ca_v_w).astype(bf16),
        "capr_w": split_out(params["capr_w"]).astype(bf16),
        "capr_b": params["capr_b"],
        "saq_w": split_in(sa_q_w * scale).astype(bf16),
        "sak_w": split_in(sa_k_w).astype(bf16),
        "sav_w": split_in(sa_v_w).astype(bf16),
        "sapr_w": split_out(params["sapr_w"]).astype(bf16),
        "sapr_b": params["sapr_b"],
        "fc1_w": params["fc1_w"].astype(bf16), "fc1_b": params["fc1_b"],
        "fc2_w": params["fc2_w"].astype(bf16), "fc2_b": params["fc2_b"],
    }


# ---------------------------------------------------------------------------
# wrapper
# ---------------------------------------------------------------------------
def _whole_spec(arr):
    nd = arr.ndim
    idx = lambda *_: (0,) * nd        # constant index map -> fetched once
    if hasattr(pl, "Buffered"):
        # never re-fetched, so single-buffer it (halves weight VMEM residency)
        return pl.BlockSpec(arr.shape, idx, pipeline_mode=pl.Buffered(1))
    return pl.BlockSpec(arr.shape, idx)


def _vmem_limit_bytes():
    try:
        cap = int(pltpu.get_tpu_info().vmem_capacity_bytes)
    except Exception:
        cap = 128 * 1024 * 1024       # v5e/v6e-sized fallback, not 64 MiB
    return int(min(96 * 1024 * 1024, (cap * 3) // 4))


def _pick_tile(n, target):
    t = min(int(target), n)
    if t == n:
        return n
    # prefer 16-aligned tiles (bf16 sublane packing), fall back to 8, else full
    for align in (16, 8):
        c = (t // align) * align
        while c >= align:
            if n % c == 0:
                return c
            c -= align
    return n


def bridge_block_forward(image, text, text_mask, x_bridge, weights, *,
                         num_heads, layer=0, block_n=256, block_q=256,
                         block_kv=512, out_dtype=jnp.float32):
    B, N, C = image.shape
    hd = C // num_heads
    text_body = text[:, 1:]                          # drop CLS token (glue)
    mask_body = text_mask[:, 1:][:, None, :]         # (B, 1, L)
    L, Ct = text_body.shape[1], text_body.shape[2]
    has_bridge = layer != 0

    tn = _pick_tile(N, block_n)
    tq = _pick_tile(N, block_q)
    tk = _pick_tile(N, block_kv)
    vmem_limit = _vmem_limit_bytes()

    # ------------- stage 1: cross-attention + self-attn QKV -------------
    k1_keys = ("ln3_g", "ln3_b", "ln4_g", "ln4_b", "ln5_g", "ln5_b",
               "caq_w", "cak_w", "cav_w", "capr_w", "capr_b",
               "saq_w", "sak_w", "sav_w")
    k1_w = [weights[k] for k in k1_keys]
    acts = [image, text_body, mask_body] + ([x_bridge] if has_bridge else [])

    img_tile = pl.BlockSpec((1, tn, C), lambda b, n: (b, n, 0))
    in_specs1 = ([img_tile,
                  pl.BlockSpec((1, L, Ct), lambda b, n: (b, 0, 0)),
                  pl.BlockSpec((1, 1, L), lambda b, n: (b, 0, 0))]
                 + ([img_tile] if has_bridge else [])
                 + [_whole_spec(w) for w in k1_w])
    qkv_spec = pl.BlockSpec((1, num_heads, tn, hd), lambda b, n: (b, 0, n, 0))
    out_shape1 = (jax.ShapeDtypeStruct((B, N, C), jnp.float32),
                  jax.ShapeDtypeStruct((B, num_heads, N, hd), jnp.bfloat16),
                  jax.ShapeDtypeStruct((B, num_heads, N, hd), jnp.bfloat16),
                  jax.ShapeDtypeStruct((B, num_heads, N, hd), jnp.bfloat16))

    bt, q_sa, k_sa, v_sa = pl.pallas_call(
        partial(_cross_qkv_kernel, num_heads=num_heads, has_bridge=has_bridge),
        out_shape=out_shape1,
        grid=(B, N // tn),
        in_specs=in_specs1,
        out_specs=(img_tile, qkv_spec, qkv_spec, qkv_spec),
        compiler_params=pltpu.CompilerParams(
            dimension_semantics=("parallel", "parallel"),
            vmem_limit_bytes=vmem_limit),
    )(*acts, *k1_w)

    # --------- stage 2: flash self-attention + projection + MLP ---------
    k2_keys = ("sapr_w", "sapr_b", "ln6_g", "ln6_b",
               "fc1_w", "fc1_b", "fc2_w", "fc2_b")
    k2_w = [weights[k] for k in k2_keys]

    q_spec = pl.BlockSpec((1, num_heads, tq, hd), lambda b, qi, ki: (b, 0, qi, 0))
    kv_spec = pl.BlockSpec((1, num_heads, tk, hd), lambda b, qi, ki: (b, 0, ki, 0))
    bt_spec = pl.BlockSpec((1, tq, C), lambda b, qi, ki: (b, qi, 0))
    in_specs2 = [q_spec, kv_spec, kv_spec, bt_spec] + [_whole_spec(w) for w in k2_w]

    return pl.pallas_call(
        partial(_flash_mlp_kernel, num_heads=num_heads),
        out_shape=jax.ShapeDtypeStruct((B, N, C), out_dtype),
        grid=(B, N // tq, N // tk),
        in_specs=in_specs2,
        out_specs=bt_spec,
        scratch_shapes=[pltpu.VMEM((num_heads, tq, 1), jnp.float32),
                        pltpu.VMEM((num_heads, tq, 1), jnp.float32),
                        pltpu.VMEM((num_heads, tq, hd), jnp.float32)],
        compiler_params=pltpu.CompilerParams(
            dimension_semantics=("parallel", "parallel", "arbitrary"),
            vmem_limit_bytes=vmem_limit),
    )(q_sa, k_sa, v_sa, bt, *k2_w)


# ---------------------------------------------------------------------------
# pure-JAX f32 reference (mirrors the PyTorch forward) for verification
# ---------------------------------------------------------------------------
def _mha_ref(q, k, v, scale, num_heads, bias):
    B, N, C = q.shape
    L = k.shape[1]
    hd = C // num_heads
    qh = q.reshape(B, N, num_heads, hd).transpose(0, 2, 1, 3)
    kh = k.reshape(B, L, num_heads, hd).transpose(0, 2, 1, 3)
    vh = v.reshape(B, L, num_heads, hd).transpose(0, 2, 1, 3)
    s = jnp.einsum("bhnd,bhld->bhnl", qh, kh) * scale
    if bias is not None:
        s = s + bias
    a = jax.nn.softmax(s, axis=-1)
    o = jnp.einsum("bhnl,bhld->bhnd", a, vh)
    return o.transpose(0, 2, 1, 3).reshape(B, N, C)


def bridge_block_reference(image, text, text_mask, x_bridge, p, *, num_heads, layer=0):
    C = image.shape[-1]
    scale = (C // num_heads) ** (-0.5)
    t = text[:, 1:]
    m = text_mask[:, 1:]
    xn = _layernorm(image, p["ln3_g"], p["ln3_b"])
    tn = _layernorm(t, p["ln4_g"], p["ln4_b"])
    q = xn @ p["caq_w"]
    kv = tn @ p["cakv_w"]
    k, v = kv[..., :C], kv[..., C:]
    bias = (1.0 - m)[:, None, None, :] * (-10000.0)
    cross = _mha_ref(q, k, v, scale, num_heads, bias) @ p["capr_w"] + p["capr_b"]
    bt = cross if layer == 0 else cross + x_bridge
    bn = _layernorm(bt, p["ln5_g"], p["ln5_b"])
    qkv = bn @ p["saqkv_w"]
    q2, k2, v2 = qkv[..., :C], qkv[..., C:2 * C], qkv[..., 2 * C:]
    bt = bt + (_mha_ref(q2, k2, v2, scale, num_heads, None) @ p["sapr_w"] + p["sapr_b"])
    bn = _layernorm(bt, p["ln6_g"], p["ln6_b"])
    h = _gelu_exact(bn @ p["fc1_w"] + p["fc1_b"])
    return bt + h @ p["fc2_w"] + p["fc2_b"]


# ---------------------------------------------------------------------------
# deterministic parameter init (shapes follow BridgeBlock.__init__)
# ---------------------------------------------------------------------------
def init_params(key, dim, text_dim, mlp_hidden):
    ks = jax.random.split(key, 20)
    w = lambda k, shape: 0.05 * jax.random.normal(k, shape, jnp.float32)
    return {
        "ln3_g": 1.0 + 0.1 * jax.random.normal(ks[0], (1, dim), jnp.float32),
        "ln3_b": 0.1 * jax.random.normal(ks[1], (1, dim), jnp.float32),
        "ln4_g": 1.0 + 0.1 * jax.random.normal(ks[2], (1, text_dim), jnp.float32),
        "ln4_b": 0.1 * jax.random.normal(ks[3], (1, text_dim), jnp.float32),
        "ln5_g": 1.0 + 0.1 * jax.random.normal(ks[4], (1, dim), jnp.float32),
        "ln5_b": 0.1 * jax.random.normal(ks[5], (1, dim), jnp.float32),
        "ln6_g": 1.0 + 0.1 * jax.random.normal(ks[6], (1, dim), jnp.float32),
        "ln6_b": 0.1 * jax.random.normal(ks[7], (1, dim), jnp.float32),
        # CrossAttention (qkv_bias=False -> no bias on q / kv)
        "caq_w": w(ks[8], (dim, dim)),
        "cakv_w": w(ks[9], (text_dim, 2 * dim)),
        "capr_w": w(ks[10], (dim, dim)),
        "capr_b": w(ks[11], (1, dim)),
        # self Attention
        "saqkv_w": w(ks[12], (dim, 3 * dim)),
        "sapr_w": w(ks[13], (dim, dim)),
        "sapr_b": w(ks[14], (1, dim)),
        # MLP
        "fc1_w": w(ks[15], (dim, mlp_hidden)),
        "fc1_b": w(ks[16], (1, mlp_hidden)),
        "fc2_w": w(ks[17], (mlp_hidden, dim)),
        "fc2_b": w(ks[18], (1, dim)),
    }


if __name__ == "__main__":
    B, N, C, H = 2, 32, 32, 4          # batch, image tokens, dim, heads (hd = 8)
    Ct = 32                            # text_dim (== dim: norm4 = LayerNorm(dim))
    Lp1 = 9                            # text length incl. CLS (forward drops token 0)
    mlp_hidden = int(C * 4.0)

    key = jax.random.PRNGKey(0)
    k_img, k_txt, k_xb, k_par = jax.random.split(key, 4)
    image = jax.random.normal(k_img, (B, N, C), jnp.float32)
    text = jax.random.normal(k_txt, (B, Lp1, Ct), jnp.float32)
    x_bridge = jax.random.normal(k_xb, (B, N, C), jnp.float32)
    text_mask = jnp.ones((B, Lp1), jnp.float32).at[1, -3:].set(0.0)

    params = init_params(k_par, C, Ct, mlp_hidden)
    # bf16 cast / head split / scale folding: ONCE, outside the forward hot path
    weights = prepare_weights(params, num_heads=H)

    ok = True
    for layer in (0, 1):
        out = bridge_block_forward(image, text, text_mask, x_bridge, weights,
                                   num_heads=H, layer=layer,
                                   block_n=16, block_q=16, block_kv=16)
        out = jax.block_until_ready(out)
        ref = bridge_block_reference(image, text, text_mask, x_bridge, params,
                                     num_heads=H, layer=layer)
        assert out.shape == (B, N, C)
        # tolerance covers bf16 matmuls + bf16 q/k/v staging + tanh-GELU +
        # approx reciprocal vs the f32 exact-erf reference
        if not bool(jnp.allclose(out, ref, atol=2e-2, rtol=2e-2)):
            ok = False
            print("max abs diff (layer=%d):" % layer,
                  float(jnp.max(jnp.abs(out - ref))))

    if ok:
        print("KERNEL_OK")
</pallas_src>

<mosaic_0001>
module attributes {stable_mosaic.version = 11 : i64} {
  func.func @_cross_qkv_kernel(%arg0: i32, %arg1: i32, %arg2: memref<1x16x32xf32, #tpu.memory_space<vmem>>, %arg3: memref<1x8x32xf32, #tpu.memory_space<vmem>>, %arg4: memref<1x1x8xf32, #tpu.memory_space<vmem>>, %arg5: memref<1x32xf32, #tpu.memory_space<vmem>>, %arg6: memref<1x32xf32, #tpu.memory_space<vmem>>, %arg7: memref<1x32xf32, #tpu.memory_space<vmem>>, %arg8: memref<1x32xf32, #tpu.memory_space<vmem>>, %arg9: memref<1x32xf32, #tpu.memory_space<vmem>>, %arg10: memref<1x32xf32, #tpu.memory_space<vmem>>, %arg11: memref<4x32x8xbf16, #tpu.memory_space<vmem>>, %arg12: memref<4x32x8xbf16, #tpu.memory_space<vmem>>, %arg13: memref<4x32x8xbf16, #tpu.memory_space<vmem>>, %arg14: memref<4x8x32xbf16, #tpu.memory_space<vmem>>, %arg15: memref<1x32xf32, #tpu.memory_space<vmem>>, %arg16: memref<4x32x8xbf16, #tpu.memory_space<vmem>>, %arg17: memref<4x32x8xbf16, #tpu.memory_space<vmem>>, %arg18: memref<4x32x8xbf16, #tpu.memory_space<vmem>>, %arg19: memref<1x16x32xf32, #tpu.memory_space<vmem>>, %arg20: memref<1x4x16x8xbf16, #tpu.memory_space<vmem>>, %arg21: memref<1x4x16x8xbf16, #tpu.memory_space<vmem>>, %arg22: memref<1x4x16x8xbf16, #tpu.memory_space<vmem>>) attributes {dimension_semantics = [#tpu.dimension_semantics<parallel>, #tpu.dimension_semantics<parallel>], iteration_bounds = array<i64: 2, 2>, scalar_prefetch = 0 : i64, scratch_operands = 0 : i64, tpu.core_type = #tpu.core_type<tc>, window_params = [{transform_indices = @transform_0, window_bounds = array<i64: 1, 16, 32>}, {transform_indices = @transform_1, window_bounds = array<i64: 1, 8, 32>}, {transform_indices = @transform_2, window_bounds = array<i64: 1, 1, 8>}, {pipeline_mode = #tpu.pipeline_mode<synchronous>, transform_indices = @transform_3, window_bounds = array<i64: 1, 32>}, {pipeline_mode = #tpu.pipeline_mode<synchronous>, transform_indices = @transform_4, window_bounds = array<i64: 1, 32>}, {pipeline_mode = #tpu.pipeline_mode<synchronous>, transform_indices = @transform_5, window_bounds = array<i64: 1, 32>}, {pipeline_mode = #tpu.pipeline_mode<synchronous>, transform_indices = @transform_6, window_bounds = array<i64: 1, 32>}, {pipeline_mode = #tpu.pipeline_mode<synchronous>, transform_indices = @transform_7, window_bounds = array<i64: 1, 32>}, {pipeline_mode = #tpu.pipeline_mode<synchronous>, transform_indices = @transform_8, window_bounds = array<i64: 1, 32>}, {pipeline_mode = #tpu.pipeline_mode<synchronous>, transform_indices = @transform_9, window_bounds = array<i64: 4, 32, 8>}, {pipeline_mode = #tpu.pipeline_mode<synchronous>, transform_indices = @transform_10, window_bounds = array<i64: 4, 32, 8>}, {pipeline_mode = #tpu.pipeline_mode<synchronous>, transform_indices = @transform_11, window_bounds = array<i64: 4, 32, 8>}, {pipeline_mode = #tpu.pipeline_mode<synchronous>, transform_indices = @transform_12, window_bounds = array<i64: 4, 8, 32>}, {pipeline_mode = #tpu.pipeline_mode<synchronous>, transform_indices = @transform_13, window_bounds = array<i64: 1, 32>}, {pipeline_mode = #tpu.pipeline_mode<synchronous>, transform_indices = @transform_14, window_bounds = array<i64: 4, 32, 8>}, {pipeline_mode = #tpu.pipeline_mode<synchronous>, transform_indices = @transform_15, window_bounds = array<i64: 4, 32, 8>}, {pipeline_mode = #tpu.pipeline_mode<synchronous>, transform_indices = @transform_16, window_bounds = array<i64: 4, 32, 8>}, {transform_indices = @transform_17, window_bounds = array<i64: 1, 16, 32>}, {transform_indices = @transform_18, window_bounds = array<i64: 1, 4, 16, 8>}, {transform_indices = @transform_19, window_bounds = array<i64: 1, 4, 16, 8>}, {transform_indices = @transform_20, window_bounds = array<i64: 1, 4, 16, 8>}]} {
    %c0 = arith.constant 0 : index
    %c0_0 = arith.constant 0 : index
    %c0_1 = arith.constant 0 : index
    %0 = vector.load %arg2[%c0, %c0_0, %c0_1] : memref<1x16x32xf32, #tpu.memory_space<vmem>>, vector<1x16x32xf32>
    %1 = vector.shape_cast %0 : vector<1x16x32xf32> to vector<16x32xf32>
    %c0_2 = arith.constant 0 : index
    %c0_3 = arith.constant 0 : index
    %c0_4 = arith.constant 0 : index
    %2 = vector.load %arg3[%c0_2, %c0_3, %c0_4] : memref<1x8x32xf32, #tpu.memory_space<vmem>>, vector<1x8x32xf32>
    %3 = vector.shape_cast %2 : vector<1x8x32xf32> to vector<8x32xf32>
    %c0_5 = arith.constant 0 : index
    %c0_6 = arith.constant 0 : index
    %c0_7 = arith.constant 0 : index
    %4 = vector.load %arg4[%c0_5, %c0_6, %c0_7] : memref<1x1x8xf32, #tpu.memory_space<vmem>>, vector<1x1x8xf32>
    %5 = vector.shape_cast %4 : vector<1x1x8xf32> to vector<1x8xf32>
    %cst = arith.constant 1.000000e+00 : f32
    %6 = vector.broadcast %cst : f32 to vector<1x8xf32>
    %7 = arith.subf %6, %5 : vector<1x8xf32>
    %cst_8 = arith.constant -1.000000e+04 : f32
    %8 = vector.broadcast %cst_8 : f32 to vector<1x8xf32>
    %9 = arith.mulf %7, %8 : vector<1x8xf32>
    %c0_9 = arith.constant 0 : index
    %c0_10 = arith.constant 0 : index
    %10 = vector.load %arg5[%c0_9, %c0_10] : memref<1x32xf32, #tpu.memory_space<vmem>>, vector<1x32xf32>
    %c0_11 = arith.constant 0 : index
    %c0_12 = arith.constant 0 : index
    %11 = vector.load %arg6[%c0_11, %c0_12] : memref<1x32xf32, #tpu.memory_space<vmem>>, vector<1x32xf32>
    %cst_13 = arith.constant dense<0.000000e+00> : vector<16xf32>
    %12 = vector.multi_reduction <add>, %1, %cst_13 [1] : vector<16x32xf32> to vector<16xf32>
    %13 = vector.shape_cast %12 : vector<16xf32> to vector<16x1xf32>
    %cst_14 = arith.constant 3.200000e+01 : f32
    %14 = vector.broadcast %cst_14 : f32 to vector<16x1xf32>
    %15 = arith.divf %13, %14 : vector<16x1xf32>
    %16 = vector.broadcast %15 : vector<16x1xf32> to vector<16x32xf32>
    %17 = arith.subf %1, %16 : vector<16x32xf32>
    %18 = arith.mulf %17, %17 : vector<16x32xf32>
    %cst_15 = arith.constant dense<0.000000e+00> : vector<16xf32>
    %19 = vector.multi_reduction <add>, %18, %cst_15 [1] : vector<16x32xf32> to vector<16xf32>
    %20 = vector.shape_cast %19 : vector<16xf32> to vector<16x1xf32>
    %cst_16 = arith.constant 3.200000e+01 : f32
    %21 = vector.broadcast %cst_16 : f32 to vector<16x1xf32>
    %22 = arith.divf %20, %21 : vector<16x1xf32>
    %23 = vector.broadcast %15 : vector<16x1xf32> to vector<16x32xf32>
    %24 = arith.subf %1, %23 : vector<16x32xf32>
    %cst_17 = arith.constant 9.99999974E-6 : f32
    %25 = vector.broadcast %cst_17 : f32 to vector<16x1xf32>
    %26 = arith.addf %22, %25 : vector<16x1xf32>
    %27 = math.rsqrt %26 : vector<16x1xf32>
    %28 = vector.broadcast %27 : vector<16x1xf32> to vector<16x32xf32>
    %29 = arith.mulf %24, %28 : vector<16x32xf32>
    %30 = vector.broadcast %10 : vector<1x32xf32> to vector<16x32xf32>
    %31 = arith.mulf %29, %30 : vector<16x32xf32>
    %32 = vector.broadcast %11 : vector<1x32xf32> to vector<16x32xf32>
    %33 = arith.addf %31, %32 : vector<16x32xf32>
    %34 = arith.truncf %33 : vector<16x32xf32> to vector<16x32xbf16>
    %c0_18 = arith.constant 0 : index
    %c0_19 = arith.constant 0 : index
    %35 = vector.load %arg7[%c0_18, %c0_19] : memref<1x32xf32, #tpu.memory_space<vmem>>, vector<1x32xf32>
    %c0_20 = arith.constant 0 : index
    %c0_21 = arith.constant 0 : index
    %36 = vector.load %arg8[%c0_20, %c0_21] : memref<1x32xf32, #tpu.memory_space<vmem>>, vector<1x32xf32>
    %cst_22 = arith.constant dense<0.000000e+00> : vector<8xf32>
    %37 = vector.multi_reduction <add>, %3, %cst_22 [1] : vector<8x32xf32> to vector<8xf32>
    %38 = vector.shape_cast %37 : vector<8xf32> to vector<8x1xf32>
    %cst_23 = arith.constant 3.200000e+01 : f32
    %39 = vector.broadcast %cst_23 : f32 to vector<8x1xf32>
    %40 = arith.divf %38, %39 : vector<8x1xf32>
    %41 = vector.broadcast %40 : vector<8x1xf32> to vector<8x32xf32>
    %42 = arith.subf %3, %41 : vector<8x32xf32>
    %43 = arith.mulf %42, %42 : vector<8x32xf32>
    %cst_24 = arith.constant dense<0.000000e+00> : vector<8xf32>
    %44 = vector.multi_reduction <add>, %43, %cst_24 [1] : vector<8x32xf32> to vector<8xf32>
    %45 = vector.shape_cast %44 : vector<8xf32> to vector<8x1xf32>
    %cst_25 = arith.constant 3.200000e+01 : f32
    %46 = vector.broadcast %cst_25 : f32 to vector<8x1xf32>
    %47 = arith.divf %45, %46 : vector<8x1xf32>
    %48 = vector.broadcast %40 : vector<8x1xf32> to vector<8x32xf32>
    %49 = arith.subf %3, %48 : vector<8x32xf32>
    %cst_26 = arith.constant 9.99999974E-6 : f32
    %50 = vector.broadcast %cst_26 : f32 to vector<8x1xf32>
    %51 = arith.addf %47, %50 : vector<8x1xf32>
    %52 = math.rsqrt %51 : vector<8x1xf32>
    %53 = vector.broadcast %52 : vector<8x1xf32> to vector<8x32xf32>
    %54 = arith.mulf %49, %53 : vector<8x32xf32>
    %55 = vector.broadcast %35 : vector<1x32xf32> to vector<8x32xf32>
    %56 = arith.mulf %54, %55 : vector<8x32xf32>
    %57 = vector.broadcast %36 : vector<1x32xf32> to vector<8x32xf32>
    %58 = arith.addf %56, %57 : vector<8x32xf32>
    %59 = arith.truncf %58 : vector<8x32xf32> to vector<8x32xbf16>
    %c0_27 = arith.constant 0 : index
    %c0_28 = arith.constant 0 : index
    %c0_29 = arith.constant 0 : index
    %60 = vector.load %arg11[%c0_27, %c0_28, %c0_29] : memref<4x32x8xbf16, #tpu.memory_space<vmem>>, vector<1x32x8xbf16>
    %61 = vector.shape_cast %60 : vector<1x32x8xbf16> to vector<32x8xbf16>
    %cst_30 = arith.constant dense<0.000000e+00> : vector<16x8xf32>
    %62 = tpu.matmul %34, %61, %cst_30 {dimension_numbers = #tpu.dot_dimension_numbers<[1], [0], [0], [1], [0, 0, 1, 1], [], []>} : vector<16x32xbf16>, vector<32x8xbf16>, vector<16x8xf32> -> vector<16x8xf32>
    %c0_31 = arith.constant 0 : index
    %c0_32 = arith.constant 0 : index
    %c0_33 = arith.constant 0 : index
    %63 = vector.load %arg12[%c0_31, %c0_32, %c0_33] : memref<4x32x8xbf16, #tpu.memory_space<vmem>>, vector<1x32x8xbf16>
    %64 = vector.shape_cast %63 : vector<1x32x8xbf16> to vector<32x8xbf16>
    %cst_34 = arith.constant dense<0.000000e+00> : vector<8x8xf32>
    %65 = tpu.matmul %59, %64, %cst_34 {dimension_numbers = #tpu.dot_dimension_numbers<[1], [0], [0], [1], [0, 0, 1, 1], [], []>} : vector<8x32xbf16>, vector<32x8xbf16>, vector<8x8xf32> -> vector<8x8xf32>
    %c0_35 = arith.constant 0 : index
    %c0_36 = arith.constant 0 : index
    %c0_37 = arith.constant 0 : index
    %66 = vector.load %arg13[%c0_35, %c0_36, %c0_37] : memref<4x32x8xbf16, #tpu.memory_space<vmem>>, vector<1x32x8xbf16>
    %67 = vector.shape_cast %66 : vector<1x32x8xbf16> to vector<32x8xbf16>
    %cst_38 = arith.constant dense<0.000000e+00> : vector<8x8xf32>
    %68 = tpu.matmul %59, %67, %cst_38 {dimension_numbers = #tpu.dot_dimension_numbers<[1], [0], [0], [1], [0, 0, 1, 1], [], []>} : vector<8x32xbf16>, vector<32x8xbf16>, vector<8x8xf32> -> vector<8x8xf32>
    %69 = arith.truncf %62 : vector<16x8xf32> to vector<16x8xbf16>
    %70 = arith.truncf %65 : vector<8x8xf32> to vector<8x8xbf16>
    %cst_39 = arith.constant dense<0.000000e+00> : vector<16x8xf32>
    %71 = tpu.matmul %69, %70, %cst_39 {dimension_numbers = #tpu.dot_dimension_numbers<[1], [1], [0], [0], [0, 0, 1, 0], [], []>} : vector<16x8xbf16>, vector<8x8xbf16>, vector<16x8xf32> -> vector<16x8xf32>
    %72 = vector.broadcast %9 : vector<1x8xf32> to vector<16x8xf32>
    %73 = arith.addf %71, %72 : vector<16x8xf32>
    %cst_40 = arith.constant dense<0xFF800000> : vector<16xf32>
    %74 = vector.multi_reduction <maximumf>, %73, %cst_40 [1] : vector<16x8xf32> to vector<16xf32>
    %75 = vector.shape_cast %74 : vector<16xf32> to vector<16x1xf32>
    %76 = vector.broadcast %75 : vector<16x1xf32> to vector<16x8xf32>
    %77 = arith.subf %73, %76 : vector<16x8xf32>
    %78 = math.exp %77 : vector<16x8xf32>
    %cst_41 = arith.constant dense<0.000000e+00> : vector<16xf32>
    %79 = vector.multi_reduction <add>, %78, %cst_41 [1] : vector<16x8xf32> to vector<16xf32>
    %80 = vector.shape_cast %79 : vector<16xf32> to vector<16x1xf32>
    %81 = tpu.reciprocal %80 {approx = true} : vector<16x1xf32> -> vector<16x1xf32>
    %82 = arith.truncf %78 : vector<16x8xf32> to vector<16x8xbf16>
    %83 = arith.truncf %68 : vector<8x8xf32> to vector<8x8xbf16>
    %cst_42 = arith.constant dense<0.000000e+00> : vector<16x8xf32>
    %84 = tpu.matmul %82, %83, %cst_42 {dimension_numbers = #tpu.dot_dimension_numbers<[1], [0], [0], [1], [0, 0, 1, 1], [], []>} : vector<16x8xbf16>, vector<8x8xbf16>, vector<16x8xf32> -> vector<16x8xf32>
    %85 = vector.broadcast %81 : vector<16x1xf32> to vector<16x8xf32>
    %86 = arith.mulf %84, %85 : vector<16x8xf32>
    %87 = arith.truncf %86 : vector<16x8xf32> to vector<16x8xbf16>
    %c0_43 = arith.constant 0 : index
    %c0_44 = arith.constant 0 : index
    %c0_45 = arith.constant 0 : index
    %88 = vector.load %arg14[%c0_43, %c0_44, %c0_45] : memref<4x8x32xbf16, #tpu.memory_space<vmem>>, vector<1x8x32xbf16>
    %89 = vector.shape_cast %88 : vector<1x8x32xbf16> to vector<8x32xbf16>
    %cst_46 = arith.constant dense<0.000000e+00> : vector<16x32xf32>
    %90 = tpu.matmul %87, %89, %cst_46 {dimension_numbers = #tpu.dot_dimension_numbers<[1], [0], [0], [1], [0, 0, 1, 1], [], []>} : vector<16x8xbf16>, vector<8x32xbf16>, vector<16x32xf32> -> vector<16x32xf32>
    %c1 = arith.constant 1 : index
    %c0_47 = arith.constant 0 : index
    %c0_48 = arith.constant 0 : index
    %91 = vector.load %arg11[%c1, %c0_47, %c0_48] : memref<4x32x8xbf16, #tpu.memory_space<vmem>>, vector<1x32x8xbf16>
    %92 = vector.shape_cast %91 : vector<1x32x8xbf16> to vector<32x8xbf16>
    %cst_49 = arith.constant dense<0.000000e+00> : vector<16x8xf32>
    %93 = tpu.matmul %34, %92, %cst_49 {dimension_numbers = #tpu.dot_dimension_numbers<[1], [0], [0], [1], [0, 0, 1, 1], [], []>} : vector<16x32xbf16>, vector<32x8xbf16>, vector<16x8xf32> -> vector<16x8xf32>
    %c1_50 = arith.constant 1 : index
    %c0_51 = arith.constant 0 : index
    %c0_52 = arith.constant 0 : index
    %94 = vector.load %arg12[%c1_50, %c0_51, %c0_52] : memref<4x32x8xbf16, #tpu.memory_space<vmem>>, vector<1x32x8xbf16>
    %95 = vector.shape_cast %94 : vector<1x32x8xbf16> to vector<32x8xbf16>
    %cst_53 = arith.constant dense<0.000000e+00> : vector<8x8xf32>
    %96 = tpu.matmul %59, %95, %cst_53 {dimension_numbers = #tpu.dot_dimension_numbers<[1], [0], [0], [1], [0, 0, 1, 1], [], []>} : vector<8x32xbf16>, vector<32x8xbf16>, vector<8x8xf32> -> vector<8x8xf32>
    %c1_54 = arith.constant 1 : index
    %c0_55 = arith.constant 0 : index
    %c0_56 = arith.constant 0 : index
    %97 = vector.load %arg13[%c1_54, %c0_55, %c0_56] : memref<4x32x8xbf16, #tpu.memory_space<vmem>>, vector<1x32x8xbf16>
    %98 = vector.shape_cast %97 : vector<1x32x8xbf16> to vector<32x8xbf16>
    %cst_57 = arith.constant dense<0.000000e+00> : vector<8x8xf32>
    %99 = tpu.matmul %59, %98, %cst_57 {dimension_numbers = #tpu.dot_dimension_numbers<[1], [0], [0], [1], [0, 0, 1, 1], [], []>} : vector<8x32xbf16>, vector<32x8xbf16>, vector<8x8xf32> -> vector<8x8xf32>
    %100 = arith.truncf %93 : vector<16x8xf32> to vector<16x8xbf16>
    %101 = arith.truncf %96 : vector<8x8xf32> to vector<8x8xbf16>
    %cst_58 = arith.constant dense<0.000000e+00> : vector<16x8xf32>
    %102 = tpu.matmul %100, %101, %cst_58 {dimension_numbers = #tpu.dot_dimension_numbers<[1], [1], [0], [0], [0, 0, 1, 0], [], []>} : vector<16x8xbf16>, vector<8x8xbf16>, vector<16x8xf32> -> vector<16x8xf32>
    %103 = vector.broadcast %9 : vector<1x8xf32> to vector<16x8xf32>
    %104 = arith.addf %102, %103 : vector<16x8xf32>
    %cst_59 = arith.constant dense<0xFF800000> : vector<16xf32>
    %105 = vector.multi_reduction <maximumf>, %104, %cst_59 [1] : vector<16x8xf32> to vector<16xf32>
    %106 = vector.shape_cast %105 : vector<16xf32> to vector<16x1xf32>
    %107 = vector.broadcast %106 : vector<16x1xf32> to vector<16x8xf32>
    %108 = arith.subf %104, %107 : vector<16x8xf32>
    %109 = math.exp %108 : vector<16x8xf32>
    %cst_60 = arith.constant dense<0.000000e+00> : vector<16xf32>
    %110 = vector.multi_reduction <add>, %109, %cst_60 [1] : vector<16x8xf32> to vector<16xf32>
    %111 = vector.shape_cast %110 : vector<16xf32> to vector<16x1xf32>
    %112 = tpu.reciprocal %111 {approx = true} : vector<16x1xf32> -> vector<16x1xf32>
    %113 = arith.truncf %109 : vector<16x8xf32> to vector<16x8xbf16>
    %114 = arith.truncf %99 : vector<8x8xf32> to vector<8x8xbf16>
    %cst_61 = arith.constant dense<0.000000e+00> : vector<16x8xf32>
    %115 = tpu.matmul %113, %114, %cst_61 {dimension_numbers = #tpu.dot_dimension_numbers<[1], [0], [0], [1], [0, 0, 1, 1], [], []>} : vector<16x8xbf16>, vector<8x8xbf16>, vector<16x8xf32> -> vector<16x8xf32>
    %116 = vector.broadcast %112 : vector<16x1xf32> to vector<16x8xf32>
    %117 = arith.mulf %115, %116 : vector<16x8xf32>
    %118 = arith.truncf %117 : vector<16x8xf32> to vector<16x8xbf16>
    %c1_62 = arith.constant 1 : index
    %c0_63 = arith.constant 0 : index
    %c0_64 = arith.constant 0 : index
    %119 = vector.load %arg14[%c1_62, %c0_63, %c0_64] : memref<4x8x32xbf16, #tpu.memory_space<vmem>>, vector<1x8x32xbf16>
    %120 = vector.shape_cast %119 : vector<1x8x32xbf16> to vector<8x32xbf16>
    %cst_65 = arith.constant dense<0.000000e+00> : vector<16x32xf32>
    %121 = tpu.matmul %118, %120, %cst_65 {dimension_numbers = #tpu.dot_dimension_numbers<[1], [0], [0], [1], [0, 0, 1, 1], [], []>} : vector<16x8xbf16>, vector<8x32xbf16>, vector<16x32xf32> -> vector<16x32xf32>
    %122 = arith.addf %90, %121 : vector<16x32xf32>
    %c2 = arith.constant 2 : index
    %c0_66 = arith.constant 0 : index
    %c0_67 = arith.constant 0 : index
    %123 = vector.load %arg11[%c2, %c0_66, %c0_67] : memref<4x32x8xbf16, #tpu.memory_space<vmem>>, vector<1x32x8xbf16>
    %124 = vector.shape_cast %123 : vector<1x32x8xbf16> to vector<32x8xbf16>
    %cst_68 = arith.constant dense<0.000000e+00> : vector<16x8xf32>
    %125 = tpu.matmul %34, %124, %cst_68 {dimension_numbers = #tpu.dot_dimension_numbers<[1], [0], [0], [1], [0, 0, 1, 1], [], []>} : vector<16x32xbf16>, vector<32x8xbf16>, vector<16x8xf32> -> vector<16x8xf32>
    %c2_69 = arith.constant 2 : index
    %c0_70 = arith.constant 0 : index
    %c0_71 = arith.constant 0 : index
    %126 = vector.load %arg12[%c2_69, %c0_70, %c0_71] : memref<4x32x8xbf16, #tpu.memory_space<vmem>>, vector<1x32x8xbf16>
    %127 = vector.shape_cast %126 : vector<1x32x8xbf16> to vector<32x8xbf16>
    %cst_72 = arith.constant dense<0.000000e+00> : vector<8x8xf32>
    %128 = tpu.matmul %59, %127, %cst_72 {dimension_numbers = #tpu.dot_dimension_numbers<[1], [0], [0], [1], [0, 0, 1, 1], [], []>} : vector<8x32xbf16>, vector<32x8xbf16>, vector<8x8xf32> -> vector<8x8xf32>
    %c2_73 = arith.constant 2 : index
    %c0_74 = arith.constant 0 : index
    %c0_75 = arith.constant 0 : index
    %129 = vector.load %arg13[%c2_73, %c0_74, %c0_75] : memref<4x32x8xbf16, #tpu.memory_space<vmem>>, vector<1x32x8xbf16>
    %130 = vector.shape_cast %129 : vector<1x32x8xbf16> to vector<32x8xbf16>
    %cst_76 = arith.constant dense<0.000000e+00> : vector<8x8xf32>
    %131 = tpu.matmul %59, %130, %cst_76 {dimension_numbers = #tpu.dot_dimension_numbers<[1], [0], [0], [1], [0, 0, 1, 1], [], []>} : vector<8x32xbf16>, vector<32x8xbf16>, vector<8x8xf32> -> vector<8x8xf32>
    %132 = arith.truncf %125 : vector<16x8xf32> to vector<16x8xbf16>
    %133 = arith.truncf %128 : vector<8x8xf32> to vector<8x8xbf16>
    %cst_77 = arith.constant dense<0.000000e+00> : vector<16x8xf32>
    %134 = tpu.matmul %132, %133, %cst_77 {dimension_numbers = #tpu.dot_dimension_numbers<[1], [1], [0], [0], [0, 0, 1, 0], [], []>} : vector<16x8xbf16>, vector<8x8xbf16>, vector<16x8xf32> -> vector<16x8xf32>
    %135 = vector.broadcast %9 : vector<1x8xf32> to vector<16x8xf32>
    %136 = arith.addf %134, %135 : vector<16x8xf32>
    %cst_78 = arith.constant dense<0xFF800000> : vector<16xf32>
    %137 = vector.multi_reduction <maximumf>, %136, %cst_78 [1] : vector<16x8xf32> to vector<16xf32>
    %138 = vector.shape_cast %137 : vector<16xf32> to vector<16x1xf32>
    %139 = vector.broadcast %138 : vector<16x1xf32> to vector<16x8xf32>
    %140 = arith.subf %136, %139 : vector<16x8xf32>
    %141 = math.exp %140 : vector<16x8xf32>
    %cst_79 = arith.constant dense<0.000000e+00> : vector<16xf32>
    %142 = vector.multi_reduction <add>, %141, %cst_79 [1] : vector<16x8xf32> to vector<16xf32>
    %143 = vector.shape_cast %142 : vector<16xf32> to vector<16x1xf32>
    %144 = tpu.reciprocal %143 {approx = true} : vector<16x1xf32> -> vector<16x1xf32>
    %145 = arith.truncf %141 : vector<16x8xf32> to vector<16x8xbf16>
    %146 = arith.truncf %131 : vector<8x8xf32> to vector<8x8xbf16>
    %cst_80 = arith.constant dense<0.000000e+00> : vector<16x8xf32>
    %147 = tpu.matmul %145, %146, %cst_80 {dimension_numbers = #tpu.dot_dimension_numbers<[1], [0], [0], [1], [0, 0, 1, 1], [], []>} : vector<16x8xbf16>, vector<8x8xbf16>, vector<16x8xf32> -> vector<16x8xf32>
    %148 = vector.broadcast %144 : vector<16x1xf32> to vector<16x8xf32>
    %149 = arith.mulf %147, %148 : vector<16x8xf32>
    %150 = arith.truncf %149 : vector<16x8xf32> to vector<16x8xbf16>
    %c2_81 = arith.constant 2 : index
    %c0_82 = arith.constant 0 : index
    %c0_83 = arith.constant 0 : index
    %151 = vector.load %arg14[%c2_81, %c0_82, %c0_83] : memref<4x8x32xbf16, #tpu.memory_space<vmem>>, vector<1x8x32xbf16>
    %152 = vector.shape_cast %151 : vector<1x8x32xbf16> to vector<8x32xbf16>
    %cst_84 = arith.constant dense<0.000000e+00> : vector<16x32xf32>
    %153 = tpu.matmul %150, %152, %cst_84 {dimension_numbers = #tpu.dot_dimension_numbers<[1], [0], [0], [1], [0, 0, 1, 1], [], []>} : vector<16x8xbf16>, vector<8x32xbf16>, vector<16x32xf32> -> vector<16x32xf32>
    %154 = arith.addf %122, %153 : vector<16x32xf32>
    %c3 = arith.constant 3 : index
    %c0_85 = arith.constant 0 : index
    %c0_86 = arith.constant 0 : index
    %155 = vector.load %arg11[%c3, %c0_85, %c0_86] : memref<4x32x8xbf16, #tpu.memory_space<vmem>>, vector<1x32x8xbf16>
    %156 = vector.shape_cast %155 : vector<1x32x8xbf16> to vector<32x8xbf16>
    %cst_87 = arith.constant dense<0.000000e+00> : vector<16x8xf32>
    %157 = tpu.matmul %34, %156, %cst_87 {dimension_numbers = #tpu.dot_dimension_numbers<[1], [0], [0], [1], [0, 0, 1, 1], [], []>} : vector<16x32xbf16>, vector<32x8xbf16>, vector<16x8xf32> -> vector<16x8xf32>
    %c3_88 = arith.constant 3 : index
    %c0_89 = arith.constant 0 : index
    %c0_90 = arith.constant 0 : index
    %158 = vector.load %arg12[%c3_88, %c0_89, %c0_90] : memref<4x32x8xbf16, #tpu.memory_space<vmem>>, vector<1x32x8xbf16>
    %159 = vector.shape_cast %158 : vector<1x32x8xbf16> to vector<32x8xbf16>
    %cst_91 = arith.constant dense<0.000000e+00> : vector<8x8xf32>
    %160 = tpu.matmul %59, %159, %cst_91 {dimension_numbers = #tpu.dot_dimension_numbers<[1], [0], [0], [1], [0, 0, 1, 1], [], []>} : vector<8x32xbf16>, vector<32x8xbf16>, vector<8x8xf32> -> vector<8x8xf32>
    %c3_92 = arith.constant 3 : index
    %c0_93 = arith.constant 0 : index
    %c0_94 = arith.constant 0 : index
    %161 = vector.load %arg13[%c3_92, %c0_93, %c0_94] : memref<4x32x8xbf16, #tpu.memory_space<vmem>>, vector<1x32x8xbf16>
    %162 = vector.shape_cast %161 : vector<1x32x8xbf16> to vector<32x8xbf16>
    %cst_95 = arith.constant dense<0.000000e+00> : vector<8x8xf32>
    %163 = tpu.matmul %59, %162, %cst_95 {dimension_numbers = #tpu.dot_dimension_numbers<[1], [0], [0], [1], [0, 0, 1, 1], [], []>} : vector<8x32xbf16>, vector<32x8xbf16>, vector<8x8xf32> -> vector<8x8xf32>
    %164 = arith.truncf %157 : vector<16x8xf32> to vector<16x8xbf16>
    %165 = arith.truncf %160 : vector<8x8xf32> to vector<8x8xbf16>
    %cst_96 = arith.constant dense<0.000000e+00> : vector<16x8xf32>
    %166 = tpu.matmul %164, %165, %cst_96 {dimension_numbers = #tpu.dot_dimension_numbers<[1], [1], [0], [0], [0, 0, 1, 0], [], []>} : vector<16x8xbf16>, vector<8x8xbf16>, vector<16x8xf32> -> vector<16x8xf32>
    %167 = vector.broadcast %9 : vector<1x8xf32> to vector<16x8xf32>
    %168 = arith.addf %166, %167 : vector<16x8xf32>
    %cst_97 = arith.constant dense<0xFF800000> : vector<16xf32>
    %169 = vector.multi_reduction <maximumf>, %168, %cst_97 [1] : vector<16x8xf32> to vector<16xf32>
    %170 = vector.shape_cast %169 : vector<16xf32> to vector<16x1xf32>
    %171 = vector.broadcast %170 : vector<16x1xf32> to vector<16x8xf32>
    %172 = arith.subf %168, %171 : vector<16x8xf32>
    %173 = math.exp %172 : vector<16x8xf32>
    %cst_98 = arith.constant dense<0.000000e+00> : vector<16xf32>
    %174 = vector.multi_reduction <add>, %173, %cst_98 [1] : vector<16x8xf32> to vector<16xf32>
    %175 = vector.shape_cast %174 : vector<16xf32> to vector<16x1xf32>
    %176 = tpu.reciprocal %175 {approx = true} : vector<16x1xf32> -> vector<16x1xf32>
    %177 = arith.truncf %173 : vector<16x8xf32> to vector<16x8xbf16>
    %178 = arith.truncf %163 : vector<8x8xf32> to vector<8x8xbf16>
    %cst_99 = arith.constant dense<0.000000e+00> : vector<16x8xf32>
    %179 = tpu.matmul %177, %178, %cst_99 {dimension_numbers = #tpu.dot_dimension_numbers<[1], [0], [0], [1], [0, 0, 1, 1], [], []>} : vector<16x8xbf16>, vector<8x8xbf16>, vector<16x8xf32> -> vector<16x8xf32>
    %180 = vector.broadcast %176 : vector<16x1xf32> to vector<16x8xf32>
    %181 = arith.mulf %179, %180 : vector<16x8xf32>
    %182 = arith.truncf %181 : vector<16x8xf32> to vector<16x8xbf16>
    %c3_100 = arith.constant 3 : index
    %c0_101 = arith.constant 0 : index
    %c0_102 = arith.constant 0 : index
    %183 = vector.load %arg14[%c3_100, %c0_101, %c0_102] : memref<4x8x32xbf16, #tpu.memory_space<vmem>>, vector<1x8x32xbf16>
    %184 = vector.shape_cast %183 : vector<1x8x32xbf16> to vector<8x32xbf16>
    %cst_103 = arith.constant dense<0.000000e+00> : vector<16x32xf32>
    %185 = tpu.matmul %182, %184, %cst_103 {dimension_numbers = #tpu.dot_dimension_numbers<[1], [0], [0], [1], [0, 0, 1, 1], [], []>} : vector<16x8xbf16>, vector<8x32xbf16>, vector<16x32xf32> -> vector<16x32xf32>
    %186 = arith.addf %154, %185 : vector<16x32xf32>
    %c0_104 = arith.constant 0 : index
    %c0_105 = arith.constant 0 : index
    %187 = vector.load %arg15[%c0_104, %c0_105] : memref<1x32xf32, #tpu.memory_space<vmem>>, vector<1x32xf32>
    %188 = vector.broadcast %187 : vector<1x32xf32> to vector<16x32xf32>
    %189 = arith.addf %186, %188 : vector<16x32xf32>
    %c0_106 = arith.constant 0 : index
    %c0_107 = arith.constant 0 : index
    %c0_108 = arith.constant 0 : index
    %190 = vector.load %arg19[%c0_106, %c0_107, %c0_108] : memref<1x16x32xf32, #tpu.memory_space<vmem>>, vector<1x16x32xf32>
    %191 = vector.shape_cast %190 : vector<1x16x32xf32> to vector<16x32xf32>
    %192 = vector.shape_cast %189 : vector<16x32xf32> to vector<1x16x32xf32>
    tpu.vector_store %arg19[%c0_106, %c0_107, %c0_108], %192 {strides = array<i32>} : memref<1x16x32xf32, #tpu.memory_space<vmem>>, vector<1x16x32xf32>,
    %c0_109 = arith.constant 0 : index
    %c0_110 = arith.constant 0 : index
    %193 = vector.load %arg9[%c0_109, %c0_110] : memref<1x32xf32, #tpu.memory_space<vmem>>, vector<1x32xf32>
    %c0_111 = arith.constant 0 : index
    %c0_112 = arith.constant 0 : index
    %194 = vector.load %arg10[%c0_111, %c0_112] : memref<1x32xf32, #tpu.memory_space<vmem>>, vector<1x32xf32>
    %cst_113 = arith.constant dense<0.000000e+00> : vector<16xf32>
    %195 = vector.multi_reduction <add>, %189, %cst_113 [1] : vector<16x32xf32> to vector<16xf32>
    %196 = vector.shape_cast %195 : vector<16xf32> to vector<16x1xf32>
    %cst_114 = arith.constant 3.200000e+01 : f32
    %197 = vector.broadcast %cst_114 : f32 to vector<16x1xf32>
    %198 = arith.divf %196, %197 : vector<16x1xf32>
    %199 = vector.broadcast %198 : vector<16x1xf32> to vector<16x32xf32>
    %200 = arith.subf %189, %199 : vector<16x32xf32>
    %201 = arith.mulf %200, %200 : vector<16x32xf32>
    %cst_115 = arith.constant dense<0.000000e+00> : vector<16xf32>
    %202 = vector.multi_reduction <add>, %201, %cst_115 [1] : vector<16x32xf32> to vector<16xf32>
    %203 = vector.shape_cast %202 : vector<16xf32> to vector<16x1xf32>
    %cst_116 = arith.constant 3.200000e+01 : f32
    %204 = vector.broadcast %cst_116 : f32 to vector<16x1xf32>
    %205 = arith.divf %203, %204 : vector<16x1xf32>
    %206 = vector.broadcast %198 : vector<16x1xf32> to vector<16x32xf32>
    %207 = arith.subf %189, %206 : vector<16x32xf32>
    %cst_117 = arith.constant 9.99999974E-6 : f32
    %208 = vector.broadcast %cst_117 : f32 to vector<16x1xf32>
    %209 = arith.addf %205, %208 : vector<16x1xf32>
    %210 = math.rsqrt %209 : vector<16x1xf32>
    %211 = vector.broadcast %210 : vector<16x1xf32> to vector<16x32xf32>
    %212 = arith.mulf %207, %211 : vector<16x32xf32>
    %213 = vector.broadcast %193 : vector<1x32xf32> to vector<16x32xf32>
    %214 = arith.mulf %212, %213 : vector<16x32xf32>
    %215 = vector.broadcast %194 : vector<1x32xf32> to vector<16x32xf32>
    %216 = arith.addf %214, %215 : vector<16x32xf32>
    %217 = arith.truncf %216 : vector<16x32xf32> to vector<16x32xbf16>
    %c0_118 = arith.constant 0 : index
    %c0_119 = arith.constant 0 : index
    %c0_120 = arith.constant 0 : index
    %218 = vector.load %arg16[%c0_118, %c0_119, %c0_120] : memref<4x32x8xbf16, #tpu.memory_space<vmem>>, vector<1x32x8xbf16>
    %219 = vector.shape_cast %218 : vector<1x32x8xbf16> to vector<32x8xbf16>
    %cst_121 = arith.constant dense<0.000000e+00> : vector<16x8xf32>
    %220 = tpu.matmul %217, %219, %cst_121 {dimension_numbers = #tpu.dot_dimension_numbers<[1], [0], [0], [1], [0, 0, 1, 1], [], []>} : vector<16x32xbf16>, vector<32x8xbf16>, vector<16x8xf32> -> vector<16x8xf32>
    %221 = arith.truncf %220 : vector<16x8xf32> to vector<16x8xbf16>
    %c0_122 = arith.constant 0 : index
    %c0_123 = arith.constant 0 : index
    %c0_124 = arith.constant 0 : index
    %c0_125 = arith.constant 0 : index
    %222 = vector.load %arg20[%c0_122, %c0_123, %c0_124, %c0_125] : memref<1x4x16x8xbf16, #tpu.memory_space<vmem>>, vector<1x1x16x8xbf16>
    %223 = vector.shape_cast %222 : vector<1x1x16x8xbf16> to vector<16x8xbf16>
    %224 = vector.shape_cast %221 : vector<16x8xbf16> to vector<1x1x16x8xbf16>
    tpu.vector_store %arg20[%c0_122, %c0_123, %c0_124, %c0_125], %224 {strides = array<i32>} : memref<1x4x16x8xbf16, #tpu.memory_space<vmem>>, vector<1x1x16x8xbf16>,
    %c0_126 = arith.constant 0 : index
    %c0_127 = arith.constant 0 : index
    %c0_128 = arith.constant 0 : index
    %225 = vector.load %arg17[%c0_126, %c0_127, %c0_128] : memref<4x32x8xbf16, #tpu.memory_space<vmem>>, vector<1x32x8xbf16>
    %226 = vector.shape_cast %225 : vector<1x32x8xbf16> to vector<32x8xbf16>
    %cst_129 = arith.constant dense<0.000000e+00> : vector<16x8xf32>
    %227 = tpu.matmul %217, %226, %cst_129 {dimension_numbers = #tpu.dot_dimension_numbers<[1], [0], [0], [1], [0, 0, 1, 1], [], []>} : vector<16x32xbf16>, vector<32x8xbf16>, vector<16x8xf32> -> vector<16x8xf32>
    %228 = arith.truncf %227 : vector<16x8xf32> to vector<16x8xbf16>
    %c0_130 = arith.constant 0 : index
    %c0_131 = arith.constant 0 : index
    %c0_132 = arith.constant 0 : index
    %c0_133 = arith.constant 0 : index
    %229 = vector.load %arg21[%c0_130, %c0_131, %c0_132, %c0_133] : memref<1x4x16x8xbf16, #tpu.memory_space<vmem>>, vector<1x1x16x8xbf16>
    %230 = vector.shape_cast %229 : vector<1x1x16x8xbf16> to vector<16x8xbf16>
    %231 = vector.shape_cast %228 : vector<16x8xbf16> to vector<1x1x16x8xbf16>
    tpu.vector_store %arg21[%c0_130, %c0_131, %c0_132, %c0_133], %231 {strides = array<i32>} : memref<1x4x16x8xbf16, #tpu.memory_space<vmem>>, vector<1x1x16x8xbf16>,
    %c0_134 = arith.constant 0 : index
    %c0_135 = arith.constant 0 : index
    %c0_136 = arith.constant 0 : index
    %232 = vector.load %arg18[%c0_134, %c0_135, %c0_136] : memref<4x32x8xbf16, #tpu.memory_space<vmem>>, vector<1x32x8xbf16>
    %233 = vector.shape_cast %232 : vector<1x32x8xbf16> to vector<32x8xbf16>
    %cst_137 = arith.constant dense<0.000000e+00> : vector<16x8xf32>
    %234 = tpu.matmul %217, %233, %cst_137 {dimension_numbers = #tpu.dot_dimension_numbers<[1], [0], [0], [1], [0, 0, 1, 1], [], []>} : vector<16x32xbf16>, vector<32x8xbf16>, vector<16x8xf32> -> vector<16x8xf32>
    %235 = arith.truncf %234 : vector<16x8xf32> to vector<16x8xbf16>
    %c0_138 = arith.constant 0 : index
    %c0_139 = arith.constant 0 : index
    %c0_140 = arith.constant 0 : index
    %c0_141 = arith.constant 0 : index
    %236 = vector.load %arg22[%c0_138, %c0_139, %c0_140, %c0_141] : memref<1x4x16x8xbf16, #tpu.memory_space<vmem>>, vector<1x1x16x8xbf16>
    %237 = vector.shape_cast %236 : vector<1x1x16x8xbf16> to vector<16x8xbf16>
    %238 = vector.shape_cast %235 : vector<16x8xbf16> to vector<1x1x16x8xbf16>
    tpu.vector_store %arg22[%c0_138, %c0_139, %c0_140, %c0_141], %238 {strides = array<i32>} : memref<1x4x16x8xbf16, #tpu.memory_space<vmem>>, vector<1x1x16x8xbf16>,
    %c1_142 = arith.constant 1 : index
    %c0_143 = arith.constant 0 : index
    %c0_144 = arith.constant 0 : index
    %239 = vector.load %arg16[%c1_142, %c0_143, %c0_144] : memref<4x32x8xbf16, #tpu.memory_space<vmem>>, vector<1x32x8xbf16>
    %240 = vector.shape_cast %239 : vector<1x32x8xbf16> to vector<32x8xbf16>
    %cst_145 = arith.constant dense<0.000000e+00> : vector<16x8xf32>
    %241 = tpu.matmul %217, %240, %cst_145 {dimension_numbers = #tpu.dot_dimension_numbers<[1], [0], [0], [1], [0, 0, 1, 1], [], []>} : vector<16x32xbf16>, vector<32x8xbf16>, vector<16x8xf32> -> vector<16x8xf32>
    %242 = arith.truncf %241 : vector<16x8xf32> to vector<16x8xbf16>
    %c0_146 = arith.constant 0 : index
    %c1_147 = arith.constant 1 : index
    %c0_148 = arith.constant 0 : index
    %c0_149 = arith.constant 0 : index
    %243 = vector.load %arg20[%c0_146, %c1_147, %c0_148, %c0_149] : memref<1x4x16x8xbf16, #tpu.memory_space<vmem>>, vector<1x1x16x8xbf16>
    %244 = vector.shape_cast %243 : vector<1x1x16x8xbf16> to vector<16x8xbf16>
    %245 = vector.shape_cast %242 : vector<16x8xbf16> to vector<1x1x16x8xbf16>
    tpu.vector_store %arg20[%c0_146, %c1_147, %c0_148, %c0_149], %245 {strides = array<i32>} : memref<1x4x16x8xbf16, #tpu.memory_space<vmem>>, vector<1x1x16x8xbf16>,
    %c1_150 = arith.constant 1 : index
    %c0_151 = arith.constant 0 : index
    %c0_152 = arith.constant 0 : index
    %246 = vector.load %arg17[%c1_150, %c0_151, %c0_152] : memref<4x32x8xbf16, #tpu.memory_space<vmem>>, vector<1x32x8xbf16>
    %247 = vector.shape_cast %246 : vector<1x32x8xbf16> to vector<32x8xbf16>
    %cst_153 = arith.constant dense<0.000000e+00> : vector<16x8xf32>
    %248 = tpu.matmul %217, %247, %cst_153 {dimension_numbers = #tpu.dot_dimension_numbers<[1], [0], [0], [1], [0, 0, 1, 1], [], []>} : vector<16x32xbf16>, vector<32x8xbf16>, vector<16x8xf32> -> vector<16x8xf32>
    %249 = arith.truncf %248 : vector<16x8xf32> to vector<16x8xbf16>
    %c0_154 = arith.constant 0 : index
    %c1_155 = arith.constant 1 : index
    %c0_156 = arith.constant 0 : index
    %c0_157 = arith.constant 0 : index
    %250 = vector.load %arg21[%c0_154, %c1_155, %c0_156, %c0_157] : memref<1x4x16x8xbf16, #tpu.memory_space<vmem>>, vector<1x1x16x8xbf16>
    %251 = vector.shape_cast %250 : vector<1x1x16x8xbf16> to vector<16x8xbf16>
    %252 = vector.shape_cast %249 : vector<16x8xbf16> to vector<1x1x16x8xbf16>
    tpu.vector_store %arg21[%c0_154, %c1_155, %c0_156, %c0_157], %252 {strides = array<i32>} : memref<1x4x16x8xbf16, #tpu.memory_space<vmem>>, vector<1x1x16x8xbf16>,
    %c1_158 = arith.constant 1 : index
    %c0_159 = arith.constant 0 : index
    %c0_160 = arith.constant 0 : index
    %253 = vector.load %arg18[%c1_158, %c0_159, %c0_160] : memref<4x32x8xbf16, #tpu.memory_space<vmem>>, vector<1x32x8xbf16>
    %254 = vector.shape_cast %253 : vector<1x32x8xbf16> to vector<32x8xbf16>
    %cst_161 = arith.constant dense<0.000000e+00> : vector<16x8xf32>
    %255 = tpu.matmul %217, %254, %cst_161 {dimension_numbers = #tpu.dot_dimension_numbers<[1], [0], [0], [1], [0, 0, 1, 1], [], []>} : vector<16x32xbf16>, vector<32x8xbf16>, vector<16x8xf32> -> vector<16x8xf32>
    %256 = arith.truncf %255 : vector<16x8xf32> to vector<16x8xbf16>
    %c0_162 = arith.constant 0 : index
    %c1_163 = arith.constant 1 : index
    %c0_164 = arith.constant 0 : index
    %c0_165 = arith.constant 0 : index
    %257 = vector.load %arg22[%c0_162, %c1_163, %c0_164, %c0_165] : memref<1x4x16x8xbf16, #tpu.memory_space<vmem>>, vector<1x1x16x8xbf16>
    %258 = vector.shape_cast %257 : vector<1x1x16x8xbf16> to vector<16x8xbf16>
    %259 = vector.shape_cast %256 : vector<16x8xbf16> to vector<1x1x16x8xbf16>
    tpu.vector_store %arg22[%c0_162, %c1_163, %c0_164, %c0_165], %259 {strides = array<i32>} : memref<1x4x16x8xbf16, #tpu.memory_space<vmem>>, vector<1x1x16x8xbf16>,
    %c2_166 = arith.constant 2 : index
    %c0_167 = arith.constant 0 : index
    %c0_168 = arith.constant 0 : index
    %260 = vector.load %arg16[%c2_166, %c0_167, %c0_168] : memref<4x32x8xbf16, #tpu.memory_space<vmem>>, vector<1x32x8xbf16>
    %261 = vector.shape_cast %260 : vector<1x32x8xbf16> to vector<32x8xbf16>
    %cst_169 = arith.constant dense<0.000000e+00> : vector<16x8xf32>
    %262 = tpu.matmul %217, %261, %cst_169 {dimension_numbers = #tpu.dot_dimension_numbers<[1], [0], [0], [1], [0, 0, 1, 1], [], []>} : vector<16x32xbf16>, vector<32x8xbf16>, vector<16x8xf32> -> vector<16x8xf32>
    %263 = arith.truncf %262 : vector<16x8xf32> to vector<16x8xbf16>
    %c0_170 = arith.constant 0 : index
    %c2_171 = arith.constant 2 : index
    %c0_172 = arith.constant 0 : index
    %c0_173 = arith.constant 0 : index
    %264 = vector.load %arg20[%c0_170, %c2_171, %c0_172, %c0_173] : memref<1x4x16x8xbf16, #tpu.memory_space<vmem>>, vector<1x1x16x8xbf16>
    %265 = vector.shape_cast %264 : vector<1x1x16x8xbf16> to vector<16x8xbf16>
    %266 = vector.shape_cast %263 : vector<16x8xbf16> to vector<1x1x16x8xbf16>
    tpu.vector_store %arg20[%c0_170, %c2_171, %c0_172, %c0_173], %266 {strides = array<i32>} : memref<1x4x16x8xbf16, #tpu.memory_space<vmem>>, vector<1x1x16x8xbf16>,
    %c2_174 = arith.constant 2 : index
    %c0_175 = arith.constant 0 : index
    %c0_176 = arith.constant 0 : index
    %267 = vector.load %arg17[%c2_174, %c0_175, %c0_176] : memref<4x32x8xbf16, #tpu.memory_space<vmem>>, vector<1x32x8xbf16>
    %268 = vector.shape_cast %267 : vector<1x32x8xbf16> to vector<32x8xbf16>
    %cst_177 = arith.constant dense<0.000000e+00> : vector<16x8xf32>
    %269 = tpu.matmul %217, %268, %cst_177 {dimension_numbers = #tpu.dot_dimension_numbers<[1], [0], [0], [1], [0, 0, 1, 1], [], []>} : vector<16x32xbf16>, vector<32x8xbf16>, vector<16x8xf32> -> vector<16x8xf32>
    %270 = arith.truncf %269 : vector<16x8xf32> to vector<16x8xbf16>
    %c0_178 = arith.constant 0 : index
    %c2_179 = arith.constant 2 : index
    %c0_180 = arith.constant 0 : index
    %c0_181 = arith.constant 0 : index
    %271 = vector.load %arg21[%c0_178, %c2_179, %c0_180, %c0_181] : memref<1x4x16x8xbf16, #tpu.memory_space<vmem>>, vector<1x1x16x8xbf16>
    %272 = vector.shape_cast %271 : vector<1x1x16x8xbf16> to vector<16x8xbf16>
    %273 = vector.shape_cast %270 : vector<16x8xbf16> to vector<1x1x16x8xbf16>
    tpu.vector_store %arg21[%c0_178, %c2_179, %c0_180, %c0_181], %273 {strides = array<i32>} : memref<1x4x16x8xbf16, #tpu.memory_space<vmem>>, vector<1x1x16x8xbf16>,
    %c2_182 = arith.constant 2 : index
    %c0_183 = arith.constant 0 : index
    %c0_184 = arith.constant 0 : index
    %274 = vector.load %arg18[%c2_182, %c0_183, %c0_184] : memref<4x32x8xbf16, #tpu.memory_space<vmem>>, vector<1x32x8xbf16>
    %275 = vector.shape_cast %274 : vector<1x32x8xbf16> to vector<32x8xbf16>
    %cst_185 = arith.constant dense<0.000000e+00> : vector<16x8xf32>
    %276 = tpu.matmul %217, %275, %cst_185 {dimension_numbers = #tpu.dot_dimension_numbers<[1], [0], [0], [1], [0, 0, 1, 1], [], []>} : vector<16x32xbf16>, vector<32x8xbf16>, vector<16x8xf32> -> vector<16x8xf32>
    %277 = arith.truncf %276 : vector<16x8xf32> to vector<16x8xbf16>
    %c0_186 = arith.constant 0 : index
    %c2_187 = arith.constant 2 : index
    %c0_188 = arith.constant 0 : index
    %c0_189 = arith.constant 0 : index
    %278 = vector.load %arg22[%c0_186, %c2_187, %c0_188, %c0_189] : memref<1x4x16x8xbf16, #tpu.memory_space<vmem>>, vector<1x1x16x8xbf16>
    %279 = vector.shape_cast %278 : vector<1x1x16x8xbf16> to vector<16x8xbf16>
    %280 = vector.shape_cast %277 : vector<16x8xbf16> to vector<1x1x16x8xbf16>
    tpu.vector_store %arg22[%c0_186, %c2_187, %c0_188, %c0_189], %280 {strides = array<i32>} : memref<1x4x16x8xbf16, #tpu.memory_space<vmem>>, vector<1x1x16x8xbf16>,
    %c3_190 = arith.constant 3 : index
    %c0_191 = arith.constant 0 : index
    %c0_192 = arith.constant 0 : index
    %281 = vector.load %arg16[%c3_190, %c0_191, %c0_192] : memref<4x32x8xbf16, #tpu.memory_space<vmem>>, vector<1x32x8xbf16>
    %282 = vector.shape_cast %281 : vector<1x32x8xbf16> to vector<32x8xbf16>
    %cst_193 = arith.constant dense<0.000000e+00> : vector<16x8xf32>
    %283 = tpu.matmul %217, %282, %cst_193 {dimension_numbers = #tpu.dot_dimension_numbers<[1], [0], [0], [1], [0, 0, 1, 1], [], []>} : vector<16x32xbf16>, vector<32x8xbf16>, vector<16x8xf32> -> vector<16x8xf32>
    %284 = arith.truncf %283 : vector<16x8xf32> to vector<16x8xbf16>
    %c0_194 = arith.constant 0 : index
    %c3_195 = arith.constant 3 : index
    %c0_196 = arith.constant 0 : index
    %c0_197 = arith.constant 0 : index
    %285 = vector.load %arg20[%c0_194, %c3_195, %c0_196, %c0_197] : memref<1x4x16x8xbf16, #tpu.memory_space<vmem>>, vector<1x1x16x8xbf16>
    %286 = vector.shape_cast %285 : vector<1x1x16x8xbf16> to vector<16x8xbf16>
    %287 = vector.shape_cast %284 : vector<16x8xbf16> to vector<1x1x16x8xbf16>
    tpu.vector_store %arg20[%c0_194, %c3_195, %c0_196, %c0_197], %287 {strides = array<i32>} : memref<1x4x16x8xbf16, #tpu.memory_space<vmem>>, vector<1x1x16x8xbf16>,
    %c3_198 = arith.constant 3 : index
    %c0_199 = arith.constant 0 : index
    %c0_200 = arith.constant 0 : index
    %288 = vector.load %arg17[%c3_198, %c0_199, %c0_200] : memref<4x32x8xbf16, #tpu.memory_space<vmem>>, vector<1x32x8xbf16>
    %289 = vector.shape_cast %288 : vector<1x32x8xbf16> to vector<32x8xbf16>
    %cst_201 = arith.constant dense<0.000000e+00> : vector<16x8xf32>
    %290 = tpu.matmul %217, %289, %cst_201 {dimension_numbers = #tpu.dot_dimension_numbers<[1], [0], [0], [1], [0, 0, 1, 1], [], []>} : vector<16x32xbf16>, vector<32x8xbf16>, vector<16x8xf32> -> vector<16x8xf32>
    %291 = arith.truncf %290 : vector<16x8xf32> to vector<16x8xbf16>
    %c0_202 = arith.constant 0 : index
    %c3_203 = arith.constant 3 : index
    %c0_204 = arith.constant 0 : index
    %c0_205 = arith.constant 0 : index
    %292 = vector.load %arg21[%c0_202, %c3_203, %c0_204, %c0_205] : memref<1x4x16x8xbf16, #tpu.memory_space<vmem>>, vector<1x1x16x8xbf16>
    %293 = vector.shape_cast %292 : vector<1x1x16x8xbf16> to vector<16x8xbf16>
    %294 = vector.shape_cast %291 : vector<16x8xbf16> to vector<1x1x16x8xbf16>
    tpu.vector_store %arg21[%c0_202, %c3_203, %c0_204, %c0_205], %294 {strides = array<i32>} : memref<1x4x16x8xbf16, #tpu.memory_space<vmem>>, vector<1x1x16x8xbf16>,
    %c3_206 = arith.constant 3 : index
    %c0_207 = arith.constant 0 : index
    %c0_208 = arith.constant 0 : index
    %295 = vector.load %arg18[%c3_206, %c0_207, %c0_208] : memref<4x32x8xbf16, #tpu.memory_space<vmem>>, vector<1x32x8xbf16>
    %296 = vector.shape_cast %295 : vector<1x32x8xbf16> to vector<32x8xbf16>
    %cst_209 = arith.constant dense<0.000000e+00> : vector<16x8xf32>
    %297 = tpu.matmul %217, %296, %cst_209 {dimension_numbers = #tpu.dot_dimension_numbers<[1], [0], [0], [1], [0, 0, 1, 1], [], []>} : vector<16x32xbf16>, vector<32x8xbf16>, vector<16x8xf32> -> vector<16x8xf32>
    %298 = arith.truncf %297 : vector<16x8xf32> to vector<16x8xbf16>
    %c0_210 = arith.constant 0 : index
    %c3_211 = arith.constant 3 : index
    %c0_212 = arith.constant 0 : index
    %c0_213 = arith.constant 0 : index
    %299 = vector.load %arg22[%c0_210, %c3_211, %c0_212, %c0_213] : memref<1x4x16x8xbf16, #tpu.memory_space<vmem>>, vector<1x1x16x8xbf16>
    %300 = vector.shape_cast %299 : vector<1x1x16x8xbf16> to vector<16x8xbf16>
    %301 = vector.shape_cast %298 : vector<16x8xbf16> to vector<1x1x16x8xbf16>
    tpu.vector_store %arg22[%c0_210, %c3_211, %c0_212, %c0_213], %301 {strides = array<i32>} : memref<1x4x16x8xbf16, #tpu.memory_space<vmem>>, vector<1x1x16x8xbf16>,
    return
  }
  func.func @transform_0(%arg0: i32, %arg1: i32) -> (i32, i32, i32) {
    %c0_i32 = arith.constant 0 : i32
    %c0_i32_0 = arith.constant 0 : i32
    return %arg0, %arg1, %c0_i32 : i32, i32, i32
  }
  func.func @transform_1(%arg0: i32, %arg1: i32) -> (i32, i32, i32) {
    %c0_i32 = arith.constant 0 : i32
    %c0_i32_0 = arith.constant 0 : i32
    %c0_i32_1 = arith.constant 0 : i32
    return %arg0, %c0_i32, %c0_i32_0 : i32, i32, i32
  }
  func.func @transform_2(%arg0: i32, %arg1: i32) -> (i32, i32, i32) {
    %c0_i32 = arith.constant 0 : i32
    %c0_i32_0 = arith.constant 0 : i32
    %c0_i32_1 = arith.constant 0 : i32
    return %arg0, %c0_i32, %c0_i32_0 : i32, i32, i32
  }
  func.func @transform_3(%arg0: i32, %arg1: i32) -> (i32, i32) {
    %c0_i32 = arith.constant 0 : i32
    %c0_i32_0 = arith.constant 0 : i32
    %c0_i32_1 = arith.constant 0 : i32
    return %c0_i32, %c0_i32_0 : i32, i32
  }
  func.func @transform_4(%arg0: i32, %arg1: i32) -> (i32, i32) {
    %c0_i32 = arith.constant 0 : i32
    %c0_i32_0 = arith.constant 0 : i32
    %c0_i32_1 = arith.constant 0 : i32
    return %c0_i32, %c0_i32_0 : i32, i32
  }
  func.func @transform_5(%arg0: i32, %arg1: i32) -> (i32, i32) {
    %c0_i32 = arith.constant 0 : i32
    %c0_i32_0 = arith.constant 0 : i32
    %c0_i32_1 = arith.constant 0 : i32
    return %c0_i32, %c0_i32_0 : i32, i32
  }
  func.func @transform_6(%arg0: i32, %arg1: i32) -> (i32, i32) {
    %c0_i32 = arith.constant 0 : i32
    %c0_i32_0 = arith.constant 0 : i32
    %c0_i32_1 = arith.constant 0 : i32
    return %c0_i32, %c0_i32_0 : i32, i32
  }
  func.func @transform_7(%arg0: i32, %arg1: i32) -> (i32, i32) {
    %c0_i32 = arith.constant 0 : i32
    %c0_i32_0 = arith.constant 0 : i32
    %c0_i32_1 = arith.constant 0 : i32
    return %c0_i32, %c0_i32_0 : i32, i32
  }
  func.func @transform_8(%arg0: i32, %arg1: i32) -> (i32, i32) {
    %c0_i32 = arith.constant 0 : i32
    %c0_i32_0 = arith.constant 0 : i32
    %c0_i32_1 = arith.constant 0 : i32
    return %c0_i32, %c0_i32_0 : i32, i32
  }
  func.func @transform_9(%arg0: i32, %arg1: i32) -> (i32, i32, i32) {
    %c0_i32 = arith.constant 0 : i32
    %c0_i32_0 = arith.constant 0 : i32
    %c0_i32_1 = arith.constant 0 : i32
    %c0_i32_2 = arith.constant 0 : i32
    return %c0_i32, %c0_i32_0, %c0_i32_1 : i32, i32, i32
  }
  func.func @transform_10(%arg0: i32, %arg1: i32) -> (i32, i32, i32) {
    %c0_i32 = arith.constant 0 : i32
    %c0_i32_0 = arith.constant 0 : i32
    %c0_i32_1 = arith.constant 0 : i32
    %c0_i32_2 = arith.constant 0 : i32
    return %c0_i32, %c0_i32_0, %c0_i32_1 : i32, i32, i32
  }
  func.func @transform_11(%arg0: i32, %arg1: i32) -> (i32, i32, i32) {
    %c0_i32 = arith.constant 0 : i32
    %c0_i32_0 = arith.constant 0 : i32
    %c0_i32_1 = arith.constant 0 : i32
    %c0_i32_2 = arith.constant 0 : i32
    return %c0_i32, %c0_i32_0, %c0_i32_1 : i32, i32, i32
  }
  func.func @transform_12(%arg0: i32, %arg1: i32) -> (i32, i32, i32) {
    %c0_i32 = arith.constant 0 : i32
    %c0_i32_0 = arith.constant 0 : i32
    %c0_i32_1 = arith.constant 0 : i32
    %c0_i32_2 = arith.constant 0 : i32
    return %c0_i32, %c0_i32_0, %c0_i32_1 : i32, i32, i32
  }
  func.func @transform_13(%arg0: i32, %arg1: i32) -> (i32, i32) {
    %c0_i32 = arith.constant 0 : i32
    %c0_i32_0 = arith.constant 0 : i32
    %c0_i32_1 = arith.constant 0 : i32
    return %c0_i32, %c0_i32_0 : i32, i32
  }
  func.func @transform_14(%arg0: i32, %arg1: i32) -> (i32, i32, i32) {
    %c0_i32 = arith.constant 0 : i32
    %c0_i32_0 = arith.constant 0 : i32
    %c0_i32_1 = arith.constant 0 : i32
    %c0_i32_2 = arith.constant 0 : i32
    return %c0_i32, %c0_i32_0, %c0_i32_1 : i32, i32, i32
  }
  func.func @transform_15(%arg0: i32, %arg1: i32) -> (i32, i32, i32) {
    %c0_i32 = arith.constant 0 : i32
    %c0_i32_0 = arith.constant 0 : i32
    %c0_i32_1 = arith.constant 0 : i32
    %c0_i32_2 = arith.constant 0 : i32
    return %c0_i32, %c0_i32_0, %c0_i32_1 : i32, i32, i32
  }
  func.func @transform_16(%arg0: i32, %arg1: i32) -> (i32, i32, i32) {
    %c0_i32 = arith.constant 0 : i32
    %c0_i32_0 = arith.constant 0 : i32
    %c0_i32_1 = arith.constant 0 : i32
    %c0_i32_2 = arith.constant 0 : i32
    return %c0_i32, %c0_i32_0, %c0_i32_1 : i32, i32, i32
  }
  func.func @transform_17(%arg0: i32, %arg1: i32) -> (i32, i32, i32) {
    %c0_i32 = arith.constant 0 : i32
    %c0_i32_0 = arith.constant 0 : i32
    return %arg0, %arg1, %c0_i32 : i32, i32, i32
  }
  func.func @transform_18(%arg0: i32, %arg1: i32) -> (i32, i32, i32, i32) {
    %c0_i32 = arith.constant 0 : i32
    %c0_i32_0 = arith.constant 0 : i32
    %c0_i32_1 = arith.constant 0 : i32
    return %arg0, %c0_i32, %arg1, %c0_i32_0 : i32, i32, i32, i32
  }
  func.func @transform_19(%arg0: i32, %arg1: i32) -> (i32, i32, i32, i32) {
    %c0_i32 = arith.constant 0 : i32
    %c0_i32_0 = arith.constant 0 : i32
    %c0_i32_1 = arith.constant 0 : i32
    return %arg0, %c0_i32, %arg1, %c0_i32_0 : i32, i32, i32, i32
  }
  func.func @transform_20(%arg0: i32, %arg1: i32) -> (i32, i32, i32, i32) {
    %c0_i32 = arith.constant 0 : i32
    %c0_i32_0 = arith.constant 0 : i32
    %c0_i32_1 = arith.constant 0 : i32
    return %arg0, %c0_i32, %arg1, %c0_i32_0 : i32, i32, i32, i32
  }
}

</mosaic_0001>

<llo_original>
// kernel: tpu_custom_call.1
$region0: #{tpu_custom_call.1}
  #allocation0 [shape = 'u32[]', space=smem, size = 0x4, offset = 0x4, fixed_abs, tag = 'smem constant byte address 0x4 - core index']
  #allocation1 [shape = 'u32[144,128]{1,0:T(1,128)}', space=vmem, size = 0x12000, scoped, tag = 'internal scratch']
  #allocation35 [shape = 's32[]', space=sflag, size = 0x4, offset = 0, fixed_abs, tag = 'sflag constant byte address 0x0 - dummy sync flag']
  #allocation37 [shape = 's32[]', space=sflag, size = 0x4, offset = 0, fixed_abs, tag = 'sflag constant byte address 0x0 - dummy sync flag']
  #allocation39 [shape = 's32[]', space=sflag, size = 0x4, offset = 0, fixed_abs, tag = 'sflag constant byte address 0x0 - dummy sync flag']
  %s0 = inlined_call_operand.hbm [shape: f32[2,32,32], index: 0, kind: input, shape index: {}]
  %s1 = inlined_call_operand.hbm [shape: f32[2,8,32], index: 1, kind: input, shape index: {}]
  %s2 = inlined_call_operand.hbm [shape: f32[2,1,8], index: 2, kind: input, shape index: {}]
  %s3 = inlined_call_operand.hbm [shape: f32[1,32], index: 3, kind: input, shape index: {}]
  %s4 = inlined_call_operand.hbm [shape: f32[1,32], index: 4, kind: input, shape index: {}]
  %s5 = inlined_call_operand.hbm [shape: f32[1,32], index: 5, kind: input, shape index: {}]
  %s6 = inlined_call_operand.hbm [shape: f32[1,32], index: 6, kind: input, shape index: {}]
  %s7 = inlined_call_operand.hbm [shape: f32[1,32], index: 7, kind: input, shape index: {}]
  %s8 = inlined_call_operand.hbm [shape: f32[1,32], index: 8, kind: input, shape index: {}]
  %s9 = inlined_call_operand.hbm [shape: bf16[4,32,8], index: 9, kind: input, shape index: {}]
  %s10 = inlined_call_operand.hbm [shape: bf16[4,32,8], index: 10, kind: input, shape index: {}]
  %s11 = inlined_call_operand.hbm [shape: bf16[4,32,8], index: 11, kind: input, shape index: {}]
  %s12 = inlined_call_operand.hbm [shape: bf16[4,8,32], index: 12, kind: input, shape index: {}]
  %s13 = inlined_call_operand.hbm [shape: f32[1,32], index: 13, kind: input, shape index: {}]
  %s14 = inlined_call_operand.hbm [shape: bf16[4,32,8], index: 14, kind: input, shape index: {}]
  %s15 = inlined_call_operand.hbm [shape: bf16[4,32,8], index: 15, kind: input, shape index: {}]
  %s16 = inlined_call_operand.hbm [shape: bf16[4,32,8], index: 16, kind: input, shape index: {}]
  %s17 = inlined_call_operand.hbm [shape: f32[2,32,32], index: 17, kind: output, shape index: {0}]
  %s18 = inlined_call_operand.hbm [shape: bf16[2,4,32,8], index: 18, kind: output, shape index: {1}]
  %s19 = inlined_call_operand.hbm [shape: bf16[2,4,32,8], index: 19, kind: output, shape index: {2}]
  %s20 = inlined_call_operand.hbm [shape: bf16[2,4,32,8], index: 20, kind: output, shape index: {3}]
  %21 = xla_tuple %s17, %s18, %s19, %s20
  %s22 = sld [smem:[#allocation0]]
  $region193: #{tpu_custom_call.1} parent=0
    _
  %s24 = ssub.s32 1, %s22
  %s25 = scalar_select 0, %s24, %s22
  $region1: #{tpu_custom_call.1} parent=0
    #allocation2 [shape = 'u8[16384]{0}', space=vmem, size = 0x4000, scoped, tag = 'input window, operand 0']
    #allocation3 [shape = 's32[2]{0}', space=sflag, size = 0x8, scoped, tag = 'scoped memory for tpu_custom_call.1']
    #allocation4 [shape = 's32[2]{0}', space=sflag, size = 0x8, scoped, tag = 'scoped memory for tpu_custom_call.1']
    #allocation5 [shape = 'u8[8192]{0}', space=vmem, size = 0x2000, scoped, tag = 'input window, operand 1']
    #allocation6 [shape = 's32[2]{0}', space=sflag, size = 0x8, scoped, tag = 'scoped memory for tpu_custom_call.1']
    #allocation7 [shape = 'u8[1024]{0}', space=vmem, size = 0x400, scoped, tag = 'input window, operand 2']
    #allocation8 [shape = 'u8[512]{0}', space=vmem, size = 0x400, scoped, tag = 'input window, operand 3, single buffered']
    #allocation9 [shape = 's32[1]{0}', space=sflag, size = 0x4, scoped, tag = 'scoped memory for tpu_custom_call.1']
    #allocation10 [shape = 'u8[512]{0}', space=vmem, size = 0x400, scoped, tag = 'input window, operand 4, single buffered']
    #allocation11 [shape = 'u8[512]{0}', space=vmem, size = 0x400, scoped, tag = 'input window, operand 5, single buffered']
    #allocation12 [shape = 's32[1]{0}', space=sflag, size = 0x4, scoped, tag = 'scoped memory for tpu_custom_call.1']
    #allocation13 [shape = 'u8[512]{0}', space=vmem, size = 0x400, scoped, tag = 'input window, operand 6, single buffered']
    #allocation14 [shape = 'u8[512]{0}', space=vmem, size = 0x400, scoped, tag = 'input window, operand 7, single buffered']
    #allocation15 [shape = 's32[1]{0}', space=sflag, size = 0x4, scoped, tag = 'scoped memory for tpu_custom_call.1']
    #allocation16 [shape = 'u8[512]{0}', space=vmem, size = 0x400, scoped, tag = 'input window, operand 8, single buffered']
    #allocation17 [shape = 'u8[32768]{0}', space=vmem, size = 0x8000, scoped, tag = 'input window, operand 9, single buffered']
    #allocation18 [shape = 's32[1]{0}', space=sflag, size = 0x4, scoped, tag = 'scoped memory for tpu_custom_call.1']
    #allocation19 [shape = 'u8[32768]{0}', space=vmem, size = 0x8000, scoped, tag = 'input window, operand 10, single buffered']
    #allocation20 [shape = 'u8[32768]{0}', space=vmem, size = 0x8000, scoped, tag = 'input window, operand 11, single buffered']
    #allocation21 [shape = 's32[1]{0}', space=sflag, size = 0x4, scoped, tag = 'scoped memory for tpu_custom_call.1']
    #allocation22 [shape = 'u8[8192]{0}', space=vmem, size = 0x2000, scoped, tag = 'input window, operand 12, single buffered']
    #allocation23 [shape = 'u8[512]{0}', space=vmem, size = 0x400, scoped, tag = 'input window, operand 13, single buffered']
    #allocation24 [shape = 's32[1]{0}', space=sflag, size = 0x4, scoped, tag = 'scoped memory for tpu_custom_call.1']
    #allocation25 [shape = 'u8[32768]{0}', space=vmem, size = 0x8000, scoped, tag = 'input window, operand 14, single buffered']
    #allocation26 [shape = 'u8[32768]{0}', space=vmem, size = 0x8000, scoped, tag = 'input window, operand 15, single buffered']
    #allocation27 [shape = 's32[1]{0}', space=sflag, size = 0x4, scoped, tag = 'scoped memory for tpu_custom_call.1']
    #allocation28 [shape = 'u8[32768]{0}', space=vmem, size = 0x8000, scoped, tag = 'input window, operand 16, single buffered']
    #allocation29 [shape = 'u8[16384]{0}', space=vmem, size = 0x4000, scoped, tag = 'output window, operand 0']
    #allocation30 [shape = 'u8[32768]{0}', space=vmem, size = 0x8000, scoped, tag = 'output window, operand 1']
    #allocation31 [shape = 's32[2]{0}', space=sflag, size = 0x8, scoped, tag = 'scoped memory for tpu_custom_call.1']
    #allocation32 [shape = 'u8[32768]{0}', space=vmem, size = 0x8000, scoped, tag = 'output window, operand 2']
    #allocation33 [shape = 'u8[32768]{0}', space=vmem, size = 0x8000, scoped, tag = 'output window, operand 3']
    #allocation34 [shape = 's32[2]{0}', space=sflag, size = 0x8, scoped, tag = 'scoped memory for tpu_custom_call.1']
    %26 = vsyncpa [#allocation3], 0
    %s27 = scalar_lea.sflag [#allocation3], 1
    %28 = vsyncpa %s27, 0
    %29 = vsyncpa [#allocation6], 0
    %s30 = scalar_lea.sflag [#allocation6], 1
    %31 = vsyncpa %s30, 0
    %32 = vsyncpa [#allocation9], 0
    %33 = vsyncpa [#allocation12], 0
    %34 = vsyncpa [#allocation15], 0
    %35 = vsyncpa [#allocation18], 0
    %36 = vsyncpa [#allocation21], 0
    %37 = vsyncpa [#allocation24], 0
    %38 = vsyncpa [#allocation27], 0
    %39 = vsyncpa [#allocation4], 0
    %s40 = scalar_lea.sflag [#allocation4], 1
    %41 = vsyncpa %s40, 0
    %42 = vsyncpa [#allocation31], 0
    %s43 = scalar_lea.sflag [#allocation31], 1
    %44 = vsyncpa %s43, 0
    %45 = vsyncpa [#allocation34], 0
    %s46 = scalar_lea.sflag [#allocation34], 1
    %47 = vsyncpa %s46, 0
    loop: start=0, step=1, limit=6
    $region2: #{tpu_custom_call.1} parent=1 // loop_pre_header
      _
    $region3: #{tpu_custom_call.1} parent=1 // loop_header
      %s49 = sphi 0, %s53
      %p50 = scmp.ge.s32.totalorder %s49, 6
      %s56 = sphi 0, %s68
      %s57 = sphi 0, %s64
      %s58 = sphi 0, %s56
      %s59 = sphi 0, %s57
      %s60 = sphi 0, %s58
      %s61 = sphi 0, %s59
      %s73 = sphi 0, %s75
      %s76 = sphi 0, %s73
      %s77 = sphi 0, %s76
      %s93 = sphi 0, %s77
      %s99 = sphi 0, %s101
      %s102 = sphi 0, %s99
      %s103 = sphi 0, %s102
      %s119 = sphi 0, %s103
      %s125 = sphi 0, %s127
      %s128 = sphi 0, %s125
      %s129 = sphi 0, %s128
      %s145 = sphi 0, %s129
      %s149 = sphi 0, %s149
      %s151 = sphi 0, %s149
      %s152 = sphi 0, %s151
      %s166 = sphi 0, %s152
      %s170 = sphi 0, %s170
      %s172 = sphi 0, %s170
      %s173 = sphi 0, %s172
      %s187 = sphi 0, %s173
      %s191 = sphi 0, %s191
      %s193 = sphi 0, %s191
      %s194 = sphi 0, %s193
      %s208 = sphi 0, %s194
      %s212 = sphi 0, %s212
      %s214 = sphi 0, %s212
      %s215 = sphi 0, %s214
      %s229 = sphi 0, %s215
      %s233 = sphi 0, %s233
      %s235 = sphi 0, %s233
      %s236 = sphi 0, %s235
      %s250 = sphi 0, %s236
      %s254 = sphi 0, %s254
      %s256 = sphi 0, %s254
      %s257 = sphi 0, %s256
      %s271 = sphi 0, %s257
      %s275 = sphi 0, %s275
      %s277 = sphi 0, %s275
      %s278 = sphi 0, %s277
      %s292 = sphi 0, %s278
      %s296 = sphi 0, %s296
      %s298 = sphi 0, %s296
      %s299 = sphi 0, %s298
      %s313 = sphi 0, %s299
      %s317 = sphi 0, %s317
      %s319 = sphi 0, %s317
      %s320 = sphi 0, %s319
      %s334 = sphi 0, %s320
      %s338 = sphi 0, %s338
      %s340 = sphi 0, %s338
      %s341 = sphi 0, %s340
      %s355 = sphi 0, %s341
      %s359 = sphi 0, %s359
      %s361 = sphi 0, %s359
      %s362 = sphi 0, %s361
      %s376 = sphi 0, %s362
      %s380 = sphi 0, %s380
      %s382 = sphi 0, %s380
      %s383 = sphi 0, %s382
      %s397 = sphi 0, %s383
      %s401 = sphi 0, %s401
      %s403 = sphi 0, %s401
      %s404 = sphi 0, %s403
      %s418 = sphi 0, %s404
      %s422 = sphi 0, %s422
      %s424 = sphi 0, %s422
      %s425 = sphi 0, %s424
      %s439 = sphi 0, %s425
      %s447 = sphi 0, %s449
      %s450 = sphi 0, %s447
      %s451 = sphi 0, %s450
      %s467 = sphi 0, %s451
      %s475 = sphi 0, %s477
      %s478 = sphi 0, %s475
      %s479 = sphi 0, %s478
      %s495 = sphi 0, %s479
      %s503 = sphi 0, %s505
      %s506 = sphi 0, %s503
      %s507 = sphi 0, %s506
      %s523 = sphi 0, %s507
      %s531 = sphi 0, %s533
      %s534 = sphi 0, %s531
      %s535 = sphi 0, %s534
      %s551 = sphi 0, %s535
    $region4: #{tpu_custom_call.1} parent=1 // loop_header_branch
      %52 = sbr.rel (%p50) target = $region8
    $region5: #{tpu_custom_call.1} parent=1 // loop_body
      %s54 = ssub.s32 %s49, 1
      %s55 = ssub.s32 %s49, 2
      %s62 = sadd.s32 1, %s57
      %p63 = scmp.ge.s32.totalorder %s62, 2
      %s64 = scalar_select %p63, 0, %s62
      %s65 = sadd.s32 1, %s56
      %s66 = scalar_select %p63, %s65, %s56
      %p67 = scmp.ge.s32.totalorder %s66, 2
      %s68 = scalar_select %p67, 0, %s66
      %s69 = ssub.s32 %s56, %s68
      %s70 = ssub.s32 %s57, %s64
      %s71 = sor.u32 %s69, %s70
      %p72 = scmp.eq.s32.totalorder %s71, 0
      %s74 = sadd.s32 %s73, 1
      %s75 = scalar_select %p72, %s73, %s74
      %p78 = pneg %p72
      %p79 = scmp.eq.s32.totalorder %s49, 3
      %p80 = por %p78, %p79
      %p81 = scmp.ne.s32.totalorder %s73, %s76
      %p82 = scmp.eq.s32.totalorder %s49, 0
      %p83 = por %p81, %p82
      %p84 = scmp.ne.s32.totalorder %s73, %s76
      %p85 = scmp.eq.s32.totalorder %s54, 3
      %p86 = por %p84, %p85
      %p87 = scmp.ne.s32.totalorder %s76, %s77
      %p88 = scmp.eq.s32.totalorder %s54, 0
      %p89 = por %p87, %p88
      %p90 = scmp.ne.s32.totalorder %s76, %s77
      %p91 = scmp.eq.s32.totalorder %s55, 3
      %p92 = por %p90, %p91
      %p94 = scmp.ne.s32.totalorder %s77, %s93
      %p95 = scmp.eq.s32.totalorder %s55, 0
      %p96 = por %p94, %p95
      %s97 = ssub.s32 %s56, %s68
      %p98 = scmp.eq.s32.totalorder %s97, 0
      %s100 = sadd.s32 %s99, 1
      %s101 = scalar_select %p98, %s99, %s100
      %p104 = pneg %p98
      %p105 = scmp.eq.s32.totalorder %s49, 3
      %p106 = por %p104, %p105
      %p107 = scmp.ne.s32.totalorder %s99, %s102
      %p108 = scmp.eq.s32.totalorder %s49, 0
      %p109 = por %p107, %p108
      %p110 = scmp.ne.s32.totalorder %s99, %s102
      %p111 = scmp.eq.s32.totalorder %s54, 3
      %p112 = por %p110, %p111
      %p113 = scmp.ne.s32.totalorder %s102, %s103
      %p114 = scmp.eq.s32.totalorder %s54, 0
      %p115 = por %p113, %p114
      %p116 = scmp.ne.s32.totalorder %s102, %s103
      %p117 = scmp.eq.s32.totalorder %s55, 3
      %p118 = por %p116, %p117
      %p120 = scmp.ne.s32.totalorder %s103, %s119
      %p121 = scmp.eq.s32.totalorder %s55, 0
      %p122 = por %p120, %p121
      %s123 = ssub.s32 %s56, %s68
      %p124 = scmp.eq.s32.totalorder %s123, 0
      %s126 = sadd.s32 %s125, 1
      %s127 = scalar_select %p124, %s125, %s126
      %p130 = pneg %p124
      %p131 = scmp.eq.s32.totalorder %s49, 3
      %p132 = por %p130, %p131
      %p133 = scmp.ne.s32.totalorder %s125, %s128
      %p134 = scmp.eq.s32.totalorder %s49, 0
      %p135 = por %p133, %p134
      %p136 = scmp.ne.s32.totalorder %s125, %s128
      %p137 = scmp.eq.s32.totalorder %s54, 3
      %p138 = por %p136, %p137
      %p139 = scmp.ne.s32.totalorder %s128, %s129
      %p140 = scmp.eq.s32.totalorder %s54, 0
      %p141 = por %p139, %p140
      %p142 = scmp.ne.s32.totalorder %s128, %s129
      %p143 = scmp.eq.s32.totalorder %s55, 3
      %p144 = por %p142, %p143
      %p146 = scmp.ne.s32.totalorder %s129, %s145
      %p147 = scmp.eq.s32.totalorder %s55, 0
      %p148 = por %p146, %p147
      %s150 = sadd.s32 %s149, 1
      %p153 = scmp.eq.s32.totalorder %s49, 3
      %p154 = scmp.ne.s32.totalorder %s149, %s151
      %p155 = scmp.eq.s32.totalorder %s49, 0
      %p156 = por %p154, %p155
      %p157 = scmp.ne.s32.totalorder %s149, %s151
      %p158 = scmp.eq.s32.totalorder %s54, 3
      %p159 = por %p157, %p158
      %p160 = scmp.ne.s32.totalorder %s151, %s152
      %p161 = scmp.eq.s32.totalorder %s54, 0
      %p162 = por %p160, %p161
      %p163 = scmp.ne.s32.totalorder %s151, %s152
      %p164 = scmp.eq.s32.totalorder %s55, 3
      %p165 = por %p163, %p164
      %p167 = scmp.ne.s32.totalorder %s152, %s166
      %p168 = scmp.eq.s32.totalorder %s55, 0
      %p169 = por %p167, %p168
      %s171 = sadd.s32 %s170, 1
      %p174 = scmp.eq.s32.totalorder %s49, 3
      %p175 = scmp.ne.s32.totalorder %s170, %s172
      %p176 = scmp.eq.s32.totalorder %s49, 0
      %p177 = por %p175, %p176
      %p178 = scmp.ne.s32.totalorder %s170, %s172
      %p179 = scmp.eq.s32.totalorder %s54, 3
      %p180 = por %p178, %p179
      %p181 = scmp.ne.s32.totalorder %s172, %s173
      %p182 = scmp.eq.s32.totalorder %s54, 0
      %p183 = por %p181, %p182
      %p184 = scmp.ne.s32.totalorder %s172, %s173
      %p185 = scmp.eq.s32.totalorder %s55, 3
      %p186 = por %p184, %p185
      %p188 = scmp.ne.s32.totalorder %s173, %s187
      %p189 = scmp.eq.s32.totalorder %s55, 0
      %p190 = por %p188, %p189
      %s192 = sadd.s32 %s191, 1
      %p195 = scmp.eq.s32.totalorder %s49, 3
      %p196 = scmp.ne.s32.totalorder %s191, %s193
      %p197 = scmp.eq.s32.totalorder %s49, 0
      %p198 = por %p196, %p197
      %p199 = scmp.ne.s32.totalorder %s191, %s193
      %p200 = scmp.eq.s32.totalorder %s54, 3
      %p201 = por %p199, %p200
      %p202 = scmp.ne.s32.totalorder %s193, %s194
      %p203 = scmp.eq.s32.totalorder %s54, 0
      %p204 = por %p202, %p203
      %p205 = scmp.ne.s32.totalorder %s193, %s194
      %p206 = scmp.eq.s32.totalorder %s55, 3
      %p207 = por %p205, %p206
      %p209 = scmp.ne.s32.totalorder %s194, %s208
      %p210 = scmp.eq.s32.totalorder %s55, 0
      %p211 = por %p209, %p210
      %s213 = sadd.s32 %s212, 1
      %p216 = scmp.eq.s32.totalorder %s49, 3
      %p217 = scmp.ne.s32.totalorder %s212, %s214
      %p218 = scmp.eq.s32.totalorder %s49, 0
      %p219 = por %p217, %p218
      %p220 = scmp.ne.s32.totalorder %s212, %s214
      %p221 = scmp.eq.s32.totalorder %s54, 3
      %p222 = por %p220, %p221
      %p223 = scmp.ne.s32.totalorder %s214, %s215
      %p224 = scmp.eq.s32.totalorder %s54, 0
      %p225 = por %p223, %p224
      %p226 = scmp.ne.s32.totalorder %s214, %s215
      %p227 = scmp.eq.s32.totalorder %s55, 3
      %p228 = por %p226, %p227
      %p230 = scmp.ne.s32.totalorder %s215, %s229
      %p231 = scmp.eq.s32.totalorder %s55, 0
      %p232 = por %p230, %p231
      %s234 = sadd.s32 %s233, 1
      %p237 = scmp.eq.s32.totalorder %s49, 3
      %p238 = scmp.ne.s32.totalorder %s233, %s235
      %p239 = scmp.eq.s32.totalorder %s49, 0
      %p240 = por %p238, %p239
      %p241 = scmp.ne.s32.totalorder %s233, %s235
      %p242 = scmp.eq.s32.totalorder %s54, 3
      %p243 = por %p241, %p242
      %p244 = scmp.ne.s32.totalorder %s235, %s236
      %p245 = scmp.eq.s32.totalorder %s54, 0
      %p246 = por %p244, %p245
      %p247 = scmp.ne.s32.totalorder %s235, %s236
      %p248 = scmp.eq.s32.totalorder %s55, 3
      %p249 = por %p247, %p248
      %p251 = scmp.ne.s32.totalorder %s236, %s250
      %p252 = scmp.eq.s32.totalorder %s55, 0
      %p253 = por %p251, %p252
      %s255 = sadd.s32 %s254, 1
      %p258 = scmp.eq.s32.totalorder %s49, 3
      %p259 = scmp.ne.s32.totalorder %s254, %s256
      %p260 = scmp.eq.s32.totalorder %s49, 0
      %p261 = por %p259, %p260
      %p262 = scmp.ne.s32.totalorder %s254, %s256
      %p263 = scmp.eq.s32.totalorder %s54, 3
      %p264 = por %p262, %p263
      %p265 = scmp.ne.s32.totalorder %s256, %s257
      %p266 = scmp.eq.s32.totalorder %s54, 0
      %p267 = por %p265, %p266
      %p268 = scmp.ne.s32.totalorder %s256, %s257
      %p269 = scmp.eq.s32.totalorder %s55, 3
      %p270 = por %p268, %p269
      %p272 = scmp.ne.s32.totalorder %s257, %s271
      %p273 = scmp.eq.s32.totalorder %s55, 0
      %p274 = por %p272, %p273
      %s276 = sadd.s32 %s275, 1
      %p279 = scmp.eq.s32.totalorder %s49, 3
      %p280 = scmp.ne.s32.totalorder %s275, %s277
      %p281 = scmp.eq.s32.totalorder %s49, 0
      %p282 = por %p280, %p281
      %p283 = scmp.ne.s32.totalorder %s275, %s277
      %p284 = scmp.eq.s32.totalorder %s54, 3
      %p285 = por %p283, %p284
      %p286 = scmp.ne.s32.totalorder %s277, %s278
      %p287 = scmp.eq.s32.totalorder %s54, 0
      %p288 = por %p286, %p287
      %p289 = scmp.ne.s32.totalorder %s277, %s278
      %p290 = scmp.eq.s32.totalorder %s55, 3
      %p291 = por %p289, %p290
      %p293 = scmp.ne.s32.totalorder %s278, %s292
      %p294 = scmp.eq.s32.totalorder %s55, 0
      %p295 = por %p293, %p294
      %s297 = sadd.s32 %s296, 1
      %p300 = scmp.eq.s32.totalorder %s49, 3
      %p301 = scmp.ne.s32.totalorder %s296, %s298
      %p302 = scmp.eq.s32.totalorder %s49, 0
      %p303 = por %p301, %p302
      %p304 = scmp.ne.s32.totalorder %s296, %s298
      %p305 = scmp.eq.s32.totalorder %s54, 3
      %p306 = por %p304, %p305
      %p307 = scmp.ne.s32.totalorder %s298, %s299
      %p308 = scmp.eq.s32.totalorder %s54, 0
      %p309 = por %p307, %p308
      %p310 = scmp.ne.s32.totalorder %s298, %s299
      %p311 = scmp.eq.s32.totalorder %s55, 3
      %p312 = por %p310, %p311
      %p314 = scmp.ne.s32.totalorder %s299, %s313
      %p315 = scmp.eq.s32.totalorder %s55, 0
      %p316 = por %p314, %p315
      %s318 = sadd.s32 %s317, 1
      %p321 = scmp.eq.s32.totalorder %s49, 3
      %p322 = scmp.ne.s32.totalorder %s317, %s319
      %p323 = scmp.eq.s32.totalorder %s49, 0
      %p324 = por %p322, %p323
      %p325 = scmp.ne.s32.totalorder %s317, %s319
      %p326 = scmp.eq.s32.totalorder %s54, 3
      %p327 = por %p325, %p326
      %p328 = scmp.ne.s32.totalorder %s319, %s320
      %p329 = scmp.eq.s32.totalorder %s54, 0
      %p330 = por %p328, %p329
      %p331 = scmp.ne.s32.totalorder %s319, %s320
      %p332 = scmp.eq.s32.totalorder %s55, 3
      %p333 = por %p331, %p332
      %p335 = scmp.ne.s32.totalorder %s320, %s334
      %p336 = scmp.eq.s32.totalorder %s55, 0
      %p337 = por %p335, %p336
      %s339 = sadd.s32 %s338, 1
      %p342 = scmp.eq.s32.totalorder %s49, 3
      %p343 = scmp.ne.s32.totalorder %s338, %s340
      %p344 = scmp.eq.s32.totalorder %s49, 0
      %p345 = por %p343, %p344
      %p346 = scmp.ne.s32.totalorder %s338, %s340
      %p347 = scmp.eq.s32.totalorder %s54, 3
      %p348 = por %p346, %p347
      %p349 = scmp.ne.s32.totalorder %s340, %s341
      %p350 = scmp.eq.s32.totalorder %s54, 0
      %p351 = por %p349, %p350
      %p352 = scmp.ne.s32.totalorder %s340, %s341
      %p353 = scmp.eq.s32.totalorder %s55, 3
      %p354 = por %p352, %p353
      %p356 = scmp.ne.s32.totalorder %s341, %s355
      %p357 = scmp.eq.s32.totalorder %s55, 0
      %p358 = por %p356, %p357
      %s360 = sadd.s32 %s359, 1
      %p363 = scmp.eq.s32.totalorder %s49, 3
      %p364 = scmp.ne.s32.totalorder %s359, %s361
      %p365 = scmp.eq.s32.totalorder %s49, 0
      %p366 = por %p364, %p365
      %p367 = scmp.ne.s32.totalorder %s359, %s361
      %p368 = scmp.eq.s32.totalorder %s54, 3
      %p369 = por %p367, %p368
      %p370 = scmp.ne.s32.totalorder %s361, %s362
      %p371 = scmp.eq.s32.totalorder %s54, 0
      %p372 = por %p370, %p371
      %p373 = scmp.ne.s32.totalorder %s361, %s362
      %p374 = scmp.eq.s32.totalorder %s55, 3
      %p375 = por %p373, %p374
      %p377 = scmp.ne.s32.totalorder %s362, %s376
      %p378 = scmp.eq.s32.totalorder %s55, 0
      %p379 = por %p377, %p378
      %s381 = sadd.s32 %s380, 1
      %p384 = scmp.eq.s32.totalorder %s49, 3
      %p385 = scmp.ne.s32.totalorder %s380, %s382
      %p386 = scmp.eq.s32.totalorder %s49, 0
      %p387 = por %p385, %p386
      %p388 = scmp.ne.s32.totalorder %s380, %s382
      %p389 = scmp.eq.s32.totalorder %s54, 3
      %p390 = por %p388, %p389
      %p391 = scmp.ne.s32.totalorder %s382, %s383
      %p392 = scmp.eq.s32.totalorder %s54, 0
      %p393 = por %p391, %p392
      %p394 = scmp.ne.s32.totalorder %s382, %s383
      %p395 = scmp.eq.s32.totalorder %s55, 3
      %p396 = por %p394, %p395
      %p398 = scmp.ne.s32.totalorder %s383, %s397
      %p399 = scmp.eq.s32.totalorder %s55, 0
      %p400 = por %p398, %p399
      %s402 = sadd.s32 %s401, 1
      %p405 = scmp.eq.s32.totalorder %s49, 3
      %p406 = scmp.ne.s32.totalorder %s401, %s403
      %p407 = scmp.eq.s32.totalorder %s49, 0
      %p408 = por %p406, %p407
      %p409 = scmp.ne.s32.totalorder %s401, %s403
      %p410 = scmp.eq.s32.totalorder %s54, 3
      %p411 = por %p409, %p410
      %p412 = scmp.ne.s32.totalorder %s403, %s404
      %p413 = scmp.eq.s32.totalorder %s54, 0
      %p414 = por %p412, %p413
      %p415 = scmp.ne.s32.totalorder %s403, %s404
      %p416 = scmp.eq.s32.totalorder %s55, 3
      %p417 = por %p415, %p416
      %p419 = scmp.ne.s32.totalorder %s404, %s418
      %p420 = scmp.eq.s32.totalorder %s55, 0
      %p421 = por %p419, %p420
      %s423 = sadd.s32 %s422, 1
      %p426 = scmp.eq.s32.totalorder %s49, 3
      %p427 = scmp.ne.s32.totalorder %s422, %s424
      %p428 = scmp.eq.s32.totalorder %s49, 0
      %p429 = por %p427, %p428
      %p430 = scmp.ne.s32.totalorder %s422, %s424
      %p431 = scmp.eq.s32.totalorder %s54, 3
      %p432 = por %p430, %p431
      %p433 = scmp.ne.s32.totalorder %s424, %s425
      %p434 = scmp.eq.s32.totalorder %s54, 0
      %p435 = por %p433, %p434
      %p436 = scmp.ne.s32.totalorder %s424, %s425
      %p437 = scmp.eq.s32.totalorder %s55, 3
      %p438 = por %p436, %p437
      %p440 = scmp.ne.s32.totalorder %s425, %s439
      %p441 = scmp.eq.s32.totalorder %s55, 0
      %p442 = por %p440, %p441
      %s443 = ssub.s32 %s56, %s68
      %s444 = ssub.s32 %s57, %s64
      %s445 = sor.u32 %s443, %s444
      %p446 = scmp.eq.s32.totalorder %s445, 0
      %s448 = sadd.s32 %s447, 1
      %s449 = scalar_select %p446, %s447, %s448
      %p452 = pneg %p446
      %p453 = scmp.eq.s32.totalorder %s49, 3
      %p454 = por %p452, %p453
      %p455 = scmp.ne.s32.totalorder %s447, %s450
      %p456 = scmp.eq.s32.totalorder %s49, 0
      %p457 = por %p455, %p456
      %p458 = scmp.ne.s32.totalorder %s447, %s450
      %p459 = scmp.eq.s32.totalorder %s54, 3
      %p460 = por %p458, %p459
      %p461 = scmp.ne.s32.totalorder %s450, %s451
      %p462 = scmp.eq.s32.totalorder %s54, 0
      %p463 = por %p461, %p462
      %p464 = scmp.ne.s32.totalorder %s450, %s451
      %p465 = scmp.eq.s32.totalorder %s55, 3
      %p466 = por %p464, %p465
      %p468 = scmp.ne.s32.totalorder %s451, %s467
      %p469 = scmp.eq.s32.totalorder %s55, 0
      %p470 = por %p468, %p469
      %s471 = ssub.s32 %s56, %s68
      %s472 = ssub.s32 %s57, %s64
      %s473 = sor.u32 %s471, %s472
      %p474 = scmp.eq.s32.totalorder %s473, 0
      %s476 = sadd.s32 %s475, 1
      %s477 = scalar_select %p474, %s475, %s476
      %p480 = pneg %p474
      %p481 = scmp.eq.s32.totalorder %s49, 3
      %p482 = por %p480, %p481
      %p483 = scmp.ne.s32.totalorder %s475, %s478
      %p484 = scmp.eq.s32.totalorder %s49, 0
      %p485 = por %p483, %p484
      %p486 = scmp.ne.s32.totalorder %s475, %s478
      %p487 = scmp.eq.s32.totalorder %s54, 3
      %p488 = por %p486, %p487
      %p489 = scmp.ne.s32.totalorder %s478, %s479
      %p490 = scmp.eq.s32.totalorder %s54, 0
      %p491 = por %p489, %p490
      %p492 = scmp.ne.s32.totalorder %s478, %s479
      %p493 = scmp.eq.s32.totalorder %s55, 3
      %p494 = por %p492, %p493
      %p496 = scmp.ne.s32.totalorder %s479, %s495
      %p497 = scmp.eq.s32.totalorder %s55, 0
      %p498 = por %p496, %p497
      %s499 = ssub.s32 %s56, %s68
      %s500 = ssub.s32 %s57, %s64
      %s501 = sor.u32 %s499, %s500
      %p502 = scmp.eq.s32.totalorder %s501, 0
      %s504 = sadd.s32 %s503, 1
      %s505 = scalar_select %p502, %s503, %s504
      %p508 = pneg %p502
      %p509 = scmp.eq.s32.totalorder %s49, 3
      %p510 = por %p508, %p509
      %p511 = scmp.ne.s32.totalorder %s503, %s506
      %p512 = scmp.eq.s32.totalorder %s49, 0
      %p513 = por %p511, %p512
      %p514 = scmp.ne.s32.totalorder %s503, %s506
      %p515 = scmp.eq.s32.totalorder %s54, 3
      %p516 = por %p514, %p515
      %p517 = scmp.ne.s32.totalorder %s506, %s507
      %p518 = scmp.eq.s32.totalorder %s54, 0
      %p519 = por %p517, %p518
      %p520 = scmp.ne.s32.totalorder %s506, %s507
      %p521 = scmp.eq.s32.totalorder %s55, 3
      %p522 = por %p520, %p521
      %p524 = scmp.ne.s32.totalorder %s507, %s523
      %p525 = scmp.eq.s32.totalorder %s55, 0
      %p526 = por %p524, %p525
      %s527 = ssub.s32 %s56, %s68
      %s528 = ssub.s32 %s57, %s64
      %s529 = sor.u32 %s527, %s528
      %p530 = scmp.eq.s32.totalorder %s529, 0
      %s532 = sadd.s32 %s531, 1
      %s533 = scalar_select %p530, %s531, %s532
      %p536 = pneg %p530
      %p537 = scmp.eq.s32.totalorder %s49, 3
      %p538 = por %p536, %p537
      %p539 = scmp.ne.s32.totalorder %s531, %s534
      %p540 = scmp.eq.s32.totalorder %s49, 0
      %p541 = por %p539, %p540
      %p542 = scmp.ne.s32.totalorder %s531, %s534
      %p543 = scmp.eq.s32.totalorder %s54, 3
      %p544 = por %p542, %p543
      %p545 = scmp.ne.s32.totalorder %s534, %s535
      %p546 = scmp.eq.s32.totalorder %s54, 0
      %p547 = por %p545, %p546
      %p548 = scmp.ne.s32.totalorder %s534, %s535
      %p549 = scmp.eq.s32.totalorder %s55, 3
      %p550 = por %p548, %p549
      %p552 = scmp.ne.s32.totalorder %s535, %s551
      %p553 = scmp.eq.s32.totalorder %s55, 0
      %p554 = por %p552, %p553
      %p555 = scmp.le.s32.totalorder 1, %s49
      %p556 = scmp.lt.s32.totalorder %s49, 5
      %p557 = pnand %p555, %p556
      %p558 = pneg %p557
      // Predicated region
      $region9: #{tpu_custom_call.1} parent=5 // pred_check
        _
      $region10: #{tpu_custom_call.1} parent=5 // pred_check_branch
        %560 = sbr.rel (%p557) target = $region12
      $region11: #{tpu_custom_call.1} parent=5 // pred_region
        %s561 = ssub.s32 %s49, 1
        // Predicated region
        $region13: #{tpu_custom_call.1} parent=11 // pred_check
          %p562 = pneg %p162
        $region14: #{tpu_custom_call.1} parent=11 // pred_check_branch
          %564 = sbr.rel (%p562) target = $region16
        $region15: #{tpu_custom_call.1} parent=11 // pred_region
          %s566 = ssub.s32 16, 16
          %567 = vsyncadd [#allocation9], %s566
          %s569 = sshll.u32 [#allocation8], 4
          %s570 = int_to_ptr.vmem [resolvable:$true] %s569
          %572 = dma.hbm_to_vmem [thread:$0]  %s3, 16, %s570, [#allocation9]
        $region16: #{tpu_custom_call.1} parent=11 // pred_fallthru
          _
        // Predicated region
        $region17: #{tpu_custom_call.1} parent=11 // pred_check
          %p573 = pneg %p183
        $region18: #{tpu_custom_call.1} parent=11 // pred_check_branch
          %575 = sbr.rel (%p573) target = $region20
        $region19: #{tpu_custom_call.1} parent=11 // pred_region
          %s577 = ssub.s32 16, 16
          %578 = vsyncadd [#allocation9], %s577
          %s580 = sshll.u32 [#allocation10], 4
          %s581 = int_to_ptr.vmem [resolvable:$true] %s580
          %583 = dma.hbm_to_vmem [thread:$0]  %s4, 16, %s581, [#allocation9]
        $region20: #{tpu_custom_call.1} parent=11 // pred_fallthru
          _
        // Predicated region
        $region21: #{tpu_custom_call.1} parent=11 // pred_check
          %p584 = pneg %p204
        $region22: #{tpu_custom_call.1} parent=11 // pred_check_branch
          %586 = sbr.rel (%p584) target = $region24
        $region23: #{tpu_custom_call.1} parent=11 // pred_region
          %s588 = ssub.s32 16, 16
          %589 = vsyncadd [#allocation12], %s588
          %s591 = sshll.u32 [#allocation11], 4
          %s592 = int_to_ptr.vmem [resolvable:$true] %s591
          %594 = dma.hbm_to_vmem [thread:$0]  %s5, 16, %s592, [#allocation12]
        $region24: #{tpu_custom_call.1} parent=11 // pred_fallthru
          _
        // Predicated region
        $region25: #{tpu_custom_call.1} parent=11 // pred_check
          %p595 = pneg %p225
        $region26: #{tpu_custom_call.1} parent=11 // pred_check_branch
          %597 = sbr.rel (%p595) target = $region28
        $region27: #{tpu_custom_call.1} parent=11 // pred_region
          %s599 = ssub.s32 16, 16
          %600 = vsyncadd [#allocation12], %s599
          %s602 = sshll.u32 [#allocation13], 4
          %s603 = int_to_ptr.vmem [resolvable:$true] %s602
          %605 = dma.hbm_to_vmem [thread:$0]  %s6, 16, %s603, [#allocation12]
        $region28: #{tpu_custom_call.1} parent=11 // pred_fallthru
          _
        // Predicated region
        $region29: #{tpu_custom_call.1} parent=11 // pred_check
          %p606 = pneg %p246
        $region30: #{tpu_custom_call.1} parent=11 // pred_check_branch
          %608 = sbr.rel (%p606) target = $region32
        $region31: #{tpu_custom_call.1} parent=11 // pred_region
          %s610 = ssub.s32 16, 16
          %611 = vsyncadd [#allocation15], %s610
          %s613 = sshll.u32 [#allocation14], 4
          %s614 = int_to_ptr.vmem [resolvable:$true] %s613
          %616 = dma.hbm_to_vmem [thread:$0]  %s7, 16, %s614, [#allocation15]
        $region32: #{tpu_custom_call.1} parent=11 // pred_fallthru
          _
        // Predicated region
        $region33: #{tpu_custom_call.1} parent=11 // pred_check
          %p617 = pneg %p267
        $region34: #{tpu_custom_call.1} parent=11 // pred_check_branch
          %619 = sbr.rel (%p617) target = $region36
        $region35: #{tpu_custom_call.1} parent=11 // pred_region
          %s621 = ssub.s32 16, 16
          %622 = vsyncadd [#allocation15], %s621
          %s624 = sshll.u32 [#allocation16], 4
          %s625 = int_to_ptr.vmem [resolvable:$true] %s624
          %627 = dma.hbm_to_vmem [thread:$0]  %s8, 16, %s625, [#allocation15]
        $region36: #{tpu_custom_call.1} parent=11 // pred_fallthru
          _
        // Predicated region
        $region37: #{tpu_custom_call.1} parent=11 // pred_check
          %p628 = pneg %p288
        $region38: #{tpu_custom_call.1} parent=11 // pred_check_branch
          %630 = sbr.rel (%p628) target = $region40
        $region39: #{tpu_custom_call.1} parent=11 // pred_region
          %s632 = ssub.s32 1024, 1024
          %633 = vsyncadd [#allocation18], %s632
          %s634 = sshll.u32 [#allocation17], 4
          %s635 = int_to_ptr.vmem [resolvable:$true] %s634
          %640 = dma.hbm_to_vmem [thread:$0]  %s9, 1024, %s635, [#allocation18], 64, 64, 4
        $region40: #{tpu_custom_call.1} parent=11 // pred_fallthru
          _
        // Predicated region
        $region41: #{tpu_custom_call.1} parent=11 // pred_check
          %p641 = pneg %p309
        $region42: #{tpu_custom_call.1} parent=11 // pred_check_branch
          %643 = sbr.rel (%p641) target = $region44
        $region43: #{tpu_custom_call.1} parent=11 // pred_region
          %s645 = ssub.s32 1024, 1024
          %646 = vsyncadd [#allocation18], %s645
          %s647 = sshll.u32 [#allocation19], 4
          %s648 = int_to_ptr.vmem [resolvable:$true] %s647
          %653 = dma.hbm_to_vmem [thread:$0]  %s10, 1024, %s648, [#allocation18], 64, 64, 4
        $region44: #{tpu_custom_call.1} parent=11 // pred_fallthru
          _
        // Predicated region
        $region45: #{tpu_custom_call.1} parent=11 // pred_check
          %p654 = pneg %p330
        $region46: #{tpu_custom_call.1} parent=11 // pred_check_branch
          %656 = sbr.rel (%p654) target = $region48
        $region47: #{tpu_custom_call.1} parent=11 // pred_region
          %s658 = ssub.s32 1024, 1024
          %659 = vsyncadd [#allocation21], %s658
          %s660 = sshll.u32 [#allocation20], 4
          %s661 = int_to_ptr.vmem [resolvable:$true] %s660
          %666 = dma.hbm_to_vmem [thread:$0]  %s11, 1024, %s661, [#allocation21], 64, 64, 4
        $region48: #{tpu_custom_call.1} parent=11 // pred_fallthru
          _
        // Predicated region
        $region49: #{tpu_custom_call.1} parent=11 // pred_check
          %p667 = pneg %p351
        $region50: #{tpu_custom_call.1} parent=11 // pred_check_branch
          %669 = sbr.rel (%p667) target = $region52
        $region51: #{tpu_custom_call.1} parent=11 // pred_region
          %s671 = ssub.s32 256, 256
          %672 = vsyncadd [#allocation21], %s671
          %s673 = sshll.u32 [#allocation22], 4
          %s674 = int_to_ptr.vmem [resolvable:$true] %s673
          %679 = dma.hbm_to_vmem [thread:$0]  %s12, 256, %s674, [#allocation21], 64, 64, 4
        $region52: #{tpu_custom_call.1} parent=11 // pred_fallthru
          _
        // Predicated region
        $region53: #{tpu_custom_call.1} parent=11 // pred_check
          %p680 = pneg %p372
        $region54: #{tpu_custom_call.1} parent=11 // pred_check_branch
          %682 = sbr.rel (%p680) target = $region56
        $region55: #{tpu_custom_call.1} parent=11 // pred_region
          %s684 = ssub.s32 16, 16
          %685 = vsyncadd [#allocation24], %s684
          %s687 = sshll.u32 [#allocation23], 4
          %s688 = int_to_ptr.vmem [resolvable:$true] %s687
          %690 = dma.hbm_to_vmem [thread:$0]  %s13, 16, %s688, [#allocation24]
        $region56: #{tpu_custom_call.1} parent=11 // pred_fallthru
          _
        // Predicated region
        $region57: #{tpu_custom_call.1} parent=11 // pred_check
          %p691 = pneg %p393
        $region58: #{tpu_custom_call.1} parent=11 // pred_check_branch
          %693 = sbr.rel (%p691) target = $region60
        $region59: #{tpu_custom_call.1} parent=11 // pred_region
          %s695 = ssub.s32 1024, 1024
          %696 = vsyncadd [#allocation24], %s695
          %s697 = sshll.u32 [#allocation25], 4
          %s698 = int_to_ptr.vmem [resolvable:$true] %s697
          %703 = dma.hbm_to_vmem [thread:$0]  %s14, 1024, %s698, [#allocation24], 64, 64, 4
        $region60: #{tpu_custom_call.1} parent=11 // pred_fallthru
          _
        // Predicated region
        $region61: #{tpu_custom_call.1} parent=11 // pred_check
          %p704 = pneg %p414
        $region62: #{tpu_custom_call.1} parent=11 // pred_check_branch
          %706 = sbr.rel (%p704) target = $region64
        $region63: #{tpu_custom_call.1} parent=11 // pred_region
          %s708 = ssub.s32 1024, 1024
          %709 = vsyncadd [#allocation27], %s708
          %s710 = sshll.u32 [#allocation26], 4
          %s711 = int_to_ptr.vmem [resolvable:$true] %s710
          %716 = dma.hbm_to_vmem [thread:$0]  %s15, 1024, %s711, [#allocation27], 64, 64, 4
        $region64: #{tpu_custom_call.1} parent=11 // pred_fallthru
          _
        // Predicated region
        $region65: #{tpu_custom_call.1} parent=11 // pred_check
          %p717 = pneg %p435
        $region66: #{tpu_custom_call.1} parent=11 // pred_check_branch
          %719 = sbr.rel (%p717) target = $region68
        $region67: #{tpu_custom_call.1} parent=11 // pred_region
          %s721 = ssub.s32 1024, 1024
          %722 = vsyncadd [#allocation27], %s721
          %s723 = sshll.u32 [#allocation28], 4
          %s724 = int_to_ptr.vmem [resolvable:$true] %s723
          %729 = dma.hbm_to_vmem [thread:$0]  %s16, 1024, %s724, [#allocation27], 64, 64, 4
        $region68: #{tpu_custom_call.1} parent=11 // pred_fallthru
          _
      $region12: #{tpu_custom_call.1} parent=5 // pred_fallthru
        _
      %p730 = scmp.lt.s32.totalorder %s49, 4
      // Predicated region
      $region69: #{tpu_custom_call.1} parent=5 // pred_check
        %p731 = pneg %p730
      $region70: #{tpu_custom_call.1} parent=5 // pred_check_branch
        %733 = sbr.rel (%p731) target = $region72
      $region71: #{tpu_custom_call.1} parent=5 // pred_region
        // Predicated region
        $region73: #{tpu_custom_call.1} parent=71 // pred_check
          %p734 = pneg %p83
        $region74: #{tpu_custom_call.1} parent=71 // pred_check_branch
          %736 = sbr.rel (%p734) target = $region76
        $region75: #{tpu_custom_call.1} parent=71 // pred_region
          %s737 = sand.u32 %s73, 1
          %s738 = scalar_lea.sflag [#allocation3], %s737
          %s739 = sand.u32 %s73, 1
          %s740 = smul.addr %s739, 16
          %s741 = scalar_lea.vmem [#allocation2], %s740
          %s742 = smul.u32 2, %s57
          %s744 = ssub.s32 256, 256
          %745 = vsyncadd %s738, %s744
          %s746 = smul.addr %s56, 4
          %s747 = sadd.s32 %s742, %s746
          %s748 = smul.addr %s747, 128
          %s749 = scalar_lea.hbm %s0, %s748
          %s750 = sshll.u32 %s741, 4
          %s751 = int_to_ptr.vmem [resolvable:$true] %s750
          %756 = dma.hbm_to_vmem [thread:$0]  %s749, 256, %s751, %s738, 128, 128, 8
        $region76: #{tpu_custom_call.1} parent=71 // pred_fallthru
          _
        // Predicated region
        $region77: #{tpu_custom_call.1} parent=71 // pred_check
          %p757 = pneg %p109
        $region78: #{tpu_custom_call.1} parent=71 // pred_check_branch
          %759 = sbr.rel (%p757) target = $region80
        $region79: #{tpu_custom_call.1} parent=71 // pred_region
          %s760 = sand.u32 %s49, 1
          %s761 = scalar_lea.sflag [#allocation6], %s760
          %s762 = sand.u32 %s99, 1
          %s763 = smul.addr %s762, 8
          %s764 = scalar_lea.vmem [#allocation5], %s763
          %s766 = ssub.s32 128, 128
          %767 = vsyncadd %s761, %s766
          %s768 = smul.addr %s56, 128
          %s769 = scalar_lea.hbm %s1, %s768
          %s771 = sshll.u32 %s764, 4
          %s772 = int_to_ptr.vmem [resolvable:$true] %s771
          %774 = dma.hbm_to_vmem [thread:$0]  %s769, 128, %s772, %s761
        $region80: #{tpu_custom_call.1} parent=71 // pred_fallthru
          _
        // Predicated region
        $region81: #{tpu_custom_call.1} parent=71 // pred_check
          %p775 = pneg %p135
        $region82: #{tpu_custom_call.1} parent=71 // pred_check_branch
          %777 = sbr.rel (%p775) target = $region84
        $region83: #{tpu_custom_call.1} parent=71 // pred_region
          %s778 = sand.u32 %s49, 1
          %s779 = scalar_lea.sflag [#allocation6], %s778
          %s780 = sand.u32 %s125, 1
          %s781 = scalar_lea.vmem [#allocation7], %s780
          %s783 = ssub.s32 16, 16
          %784 = vsyncadd %s779, %s783
          %s785 = smul.addr %s56, 16
          %s786 = scalar_lea.hbm %s2, %s785
          %s788 = sshll.u32 %s781, 4
          %s789 = int_to_ptr.vmem [resolvable:$true] %s788
          %791 = dma.hbm_to_vmem [thread:$0]  %s786, 16, %s789, %s779
        $region84: #{tpu_custom_call.1} parent=71 // pred_fallthru
          _
      $region72: #{tpu_custom_call.1} parent=5 // pred_fallthru
        _
      %p792 = scmp.le.s32.totalorder 1, %s49
      %p793 = scmp.lt.s32.totalorder %s49, 5
      %p794 = pnand %p792, %p793
      %p795 = pneg %p794
      // Predicated region
      $region85: #{tpu_custom_call.1} parent=5 // pred_check
        _
      $region86: #{tpu_custom_call.1} parent=5 // pred_check_branch
        %797 = sbr.rel (%p794) target = $region88
      $region87: #{tpu_custom_call.1} parent=5 // pred_region
        %s798 = ssub.s32 %s49, 1
        %s799 = sand.u32 %s76, 1
        %s800 = scalar_lea.sflag [#allocation3], %s799
        %s801 = sand.u32 %s76, 1
        %s802 = smul.addr %s801, 16
        %s803 = scalar_lea.vmem [#allocation2], %s802
        // Predicated region
        $region89: #{tpu_custom_call.1} parent=87 // pred_check
          %p804 = pneg %p89
        $region90: #{tpu_custom_call.1} parent=87 // pred_check_branch
          %806 = sbr.rel (%p804) target = $region92
        $region91: #{tpu_custom_call.1} parent=87 // pred_region
          %807 = dma.done %s800, 256
        $region92: #{tpu_custom_call.1} parent=87 // pred_fallthru
          _
        %s808 = sand.u32 %s54, 1
        %s809 = scalar_lea.sflag [#allocation6], %s808
        %s810 = sand.u32 %s102, 1
        %s811 = smul.addr %s810, 8
        %s812 = scalar_lea.vmem [#allocation5], %s811
        // Predicated region
        $region93: #{tpu_custom_call.1} parent=87 // pred_check
          %p813 = pneg %p115
        $region94: #{tpu_custom_call.1} parent=87 // pred_check_branch
          %815 = sbr.rel (%p813) target = $region96
        $region95: #{tpu_custom_call.1} parent=87 // pred_region
          %816 = dma.done %s809, 128
        $region96: #{tpu_custom_call.1} parent=87 // pred_fallthru
          _
        %s817 = sand.u32 %s54, 1
        %s818 = scalar_lea.sflag [#allocation6], %s817
        %s819 = sand.u32 %s128, 1
        %s820 = scalar_lea.vmem [#allocation7], %s819
        // Predicated region
        $region97: #{tpu_custom_call.1} parent=87 // pred_check
          %p821 = pneg %p141
        $region98: #{tpu_custom_call.1} parent=87 // pred_check_branch
          %823 = sbr.rel (%p821) target = $region100
        $region99: #{tpu_custom_call.1} parent=87 // pred_region
          %824 = dma.done %s818, 16
        $region100: #{tpu_custom_call.1} parent=87 // pred_fallthru
          _
        // Predicated region
        $region101: #{tpu_custom_call.1} parent=87 // pred_check
          %p825 = pneg %p162
        $region102: #{tpu_custom_call.1} parent=87 // pred_check_branch
          %827 = sbr.rel (%p825) target = $region104
        $region103: #{tpu_custom_call.1} parent=87 // pred_region
          %828 = dma.done [#allocation9], 16
        $region104: #{tpu_custom_call.1} parent=87 // pred_fallthru
          _
        // Predicated region
        $region105: #{tpu_custom_call.1} parent=87 // pred_check
          %p829 = pneg %p183
        $region106: #{tpu_custom_call.1} parent=87 // pred_check_branch
          %831 = sbr.rel (%p829) target = $region108
        $region107: #{tpu_custom_call.1} parent=87 // pred_region
          %832 = dma.done [#allocation9], 16
        $region108: #{tpu_custom_call.1} parent=87 // pred_fallthru
          _
        // Predicated region
        $region109: #{tpu_custom_call.1} parent=87 // pred_check
          %p833 = pneg %p204
        $region110: #{tpu_custom_call.1} parent=87 // pred_check_branch
          %835 = sbr.rel (%p833) target = $region112
        $region111: #{tpu_custom_call.1} parent=87 // pred_region
          %836 = dma.done [#allocation12], 16
        $region112: #{tpu_custom_call.1} parent=87 // pred_fallthru
          _
        // Predicated region
        $region113: #{tpu_custom_call.1} parent=87 // pred_check
          %p837 = pneg %p225
        $region114: #{tpu_custom_call.1} parent=87 // pred_check_branch
          %839 = sbr.rel (%p837) target = $region116
        $region115: #{tpu_custom_call.1} parent=87 // pred_region
          %840 = dma.done [#allocation12], 16
        $region116: #{tpu_custom_call.1} parent=87 // pred_fallthru
          _
        // Predicated region
        $region117: #{tpu_custom_call.1} parent=87 // pred_check
          %p841 = pneg %p246
        $region118: #{tpu_custom_call.1} parent=87 // pred_check_branch
          %843 = sbr.rel (%p841) target = $region120
        $region119: #{tpu_custom_call.1} parent=87 // pred_region
          %844 = dma.done [#allocation15], 16
        $region120: #{tpu_custom_call.1} parent=87 // pred_fallthru
          _
        // Predicated region
        $region121: #{tpu_custom_call.1} parent=87 // pred_check
          %p845 = pneg %p267
        $region122: #{tpu_custom_call.1} parent=87 // pred_check_branch
          %847 = sbr.rel (%p845) target = $region124
        $region123: #{tpu_custom_call.1} parent=87 // pred_region
          %848 = dma.done [#allocation15], 16
        $region124: #{tpu_custom_call.1} parent=87 // pred_fallthru
          _
        // Predicated region
        $region125: #{tpu_custom_call.1} parent=87 // pred_check
          %p849 = pneg %p288
        $region126: #{tpu_custom_call.1} parent=87 // pred_check_branch
          %851 = sbr.rel (%p849) target = $region128
        $region127: #{tpu_custom_call.1} parent=87 // pred_region
          %852 = dma.done [#allocation18], 1024
        $region128: #{tpu_custom_call.1} parent=87 // pred_fallthru
          _
        // Predicated region
        $region129: #{tpu_custom_call.1} parent=87 // pred_check
          %p853 = pneg %p309
        $region130: #{tpu_custom_call.1} parent=87 // pred_check_branch
          %855 = sbr.rel (%p853) target = $region132
        $region131: #{tpu_custom_call.1} parent=87 // pred_region
          %856 = dma.done [#allocation18], 1024
        $region132: #{tpu_custom_call.1} parent=87 // pred_fallthru
          _
        // Predicated region
        $region133: #{tpu_custom_call.1} parent=87 // pred_check
          %p857 = pneg %p330
        $region134: #{tpu_custom_call.1} parent=87 // pred_check_branch
          %859 = sbr.rel (%p857) target = $region136
        $region135: #{tpu_custom_call.1} parent=87 // pred_region
          %860 = dma.done [#allocation21], 1024
        $region136: #{tpu_custom_call.1} parent=87 // pred_fallthru
          _
        // Predicated region
        $region137: #{tpu_custom_call.1} parent=87 // pred_check
          %p861 = pneg %p351
        $region138: #{tpu_custom_call.1} parent=87 // pred_check_branch
          %863 = sbr.rel (%p861) target = $region140
        $region139: #{tpu_custom_call.1} parent=87 // pred_region
          %864 = dma.done [#allocation21], 256
        $region140: #{tpu_custom_call.1} parent=87 // pred_fallthru
          _
        // Predicated region
        $region141: #{tpu_custom_call.1} parent=87 // pred_check
          %p865 = pneg %p372
        $region142: #{tpu_custom_call.1} parent=87 // pred_check_branch
          %867 = sbr.rel (%p865) target = $region144
        $region143: #{tpu_custom_call.1} parent=87 // pred_region
          %868 = dma.done [#allocation24], 16
        $region144: #{tpu_custom_call.1} parent=87 // pred_fallthru
          _
        // Predicated region
        $region145: #{tpu_custom_call.1} parent=87 // pred_check
          %p869 = pneg %p393
        $region146: #{tpu_custom_call.1} parent=87 // pred_check_branch
          %871 = sbr.rel (%p869) target = $region148
        $region147: #{tpu_custom_call.1} parent=87 // pred_region
          %872 = dma.done [#allocation24], 1024
        $region148: #{tpu_custom_call.1} parent=87 // pred_fallthru
          _
        // Predicated region
        $region149: #{tpu_custom_call.1} parent=87 // pred_check
          %p873 = pneg %p414
        $region150: #{tpu_custom_call.1} parent=87 // pred_check_branch
          %875 = sbr.rel (%p873) target = $region152
        $region151: #{tpu_custom_call.1} parent=87 // pred_region
          %876 = dma.done [#allocation27], 1024
        $region152: #{tpu_custom_call.1} parent=87 // pred_fallthru
          _
        // Predicated region
        $region153: #{tpu_custom_call.1} parent=87 // pred_check
          %p877 = pneg %p435
        $region154: #{tpu_custom_call.1} parent=87 // pred_check_branch
          %879 = sbr.rel (%p877) target = $region156
        $region155: #{tpu_custom_call.1} parent=87 // pred_region
          %880 = dma.done [#allocation27], 1024
        $region156: #{tpu_custom_call.1} parent=87 // pred_fallthru
          _
        %s881 = sand.u32 %s76, 1
        %s882 = scalar_lea.sflag [#allocation3], %s881
        %s883 = sand.u32 %s76, 1
        %s884 = smul.addr %s883, 16
        %s885 = scalar_lea.vmem [#allocation2], %s884
        %p886 = pneg %p89
        %p887 = pneg %p86
        %s888 = sand.u32 %s54, 1
        %s889 = scalar_lea.sflag [#allocation6], %s888
        %s890 = sand.u32 %s102, 1
        %s891 = smul.addr %s890, 8
        %s892 = scalar_lea.vmem [#allocation5], %s891
        %p893 = pneg %p115
        %p894 = pneg %p112
        %s895 = sand.u32 %s54, 1
        %s896 = scalar_lea.sflag [#allocation6], %s895
        %s897 = sand.u32 %s128, 1
        %s898 = scalar_lea.vmem [#allocation7], %s897
        %p899 = pneg %p141
        %p900 = pneg %p138
        %p901 = pneg %p162
        %p902 = pneg %p159
        %p903 = pneg %p183
        %p904 = pneg %p180
        %p905 = pneg %p204
        %p906 = pneg %p201
        %p907 = pneg %p225
        %p908 = pneg %p222
        %p909 = pneg %p246
        %p910 = pneg %p243
        %p911 = pneg %p267
        %p912 = pneg %p264
        %p913 = pneg %p288
        %p914 = pneg %p285
        %p915 = pneg %p309
        %p916 = pneg %p306
        %p917 = pneg %p330
        %p918 = pneg %p327
        %p919 = pneg %p351
        %p920 = pneg %p348
        %p921 = pneg %p372
        %p922 = pneg %p369
        %p923 = pneg %p393
        %p924 = pneg %p390
        %p925 = pneg %p414
        %p926 = pneg %p411
        %p927 = pneg %p435
        %p928 = pneg %p432
        %p929 = pneg %p463
        %p930 = pneg %p460
        %s931 = sand.u32 %s450, 1
        %s932 = scalar_lea.sflag [#allocation4], %s931
        %s933 = sand.u32 %s450, 1
        %s934 = smul.addr %s933, 16
        %s935 = scalar_lea.vmem [#allocation29], %s934
        %p936 = pneg %p491
        %p937 = pneg %p488
        %s938 = sand.u32 %s54, 1
        %s939 = scalar_lea.sflag [#allocation31], %s938
        %s940 = sand.u32 %s478, 1
        %s941 = smul.addr %s940, 32
        %s942 = scalar_lea.vmem [#allocation30], %s941
        %p943 = pneg %p519
        %p944 = pneg %p516
        %s945 = sand.u32 %s54, 1
        %s946 = scalar_lea.sflag [#allocation31], %s945
        %s947 = sand.u32 %s506, 1
        %s948 = smul.addr %s947, 32
        %s949 = scalar_lea.vmem [#allocation32], %s948
        %p950 = pneg %p547
        %p951 = pneg %p544
        %s952 = sand.u32 %s534, 1
        %s953 = scalar_lea.sflag [#allocation34], %s952
        %s954 = sand.u32 %s534, 1
        %s955 = smul.addr %s954, 32
        %s956 = scalar_lea.vmem [#allocation33], %s955
        %s957 = smul.u32 2, %s59
        %s958 = smul.u32 2, %s59
        %s959 = smul.u32 2, %s59
        %s960 = smul.u32 2, %s59
        %s961 = smul.u32 2, %s59
        %v963 = vld [vmem:[%s803] sm:$0xff]
        %v964 = vld [vmem:[%s803 + $0x8] sm:$0xff]
        %v965 = vld [vmem:[%s812] sm:$0xff]
        %v966 = vld [vmem:[%s820] sm:$0x1]
        %v967 = vsub.f32 1.0, %v966
        %v968 = vmul.f32 %v967, -10000.0
        %v969 = vld [vmem:[#allocation8] sm:$0x1]
        %v970 = vld [vmem:[#allocation10] sm:$0x1]
        %vm971 = vcmask 261120
        %v972 = vsel %vm971, %v963, 0.0
        %973 = vadd.xlane.f32.xlu0 %v972
        %v974 = vpop.xlane.xlu0 %973
        %v975 = vsel %vm971, %v964, 0.0
        %976 = vadd.xlane.f32.xlu0 %v975
        %v977 = vpop.xlane.xlu0 %976
        %v978 = vrcp.pop 32.0
        %v979 = vmul.f32 %v974, %v978
        %v980 = vmul.f32 %v977, %v978
        %v981 = vsub.f32 %v963, %v979
        %v982 = vsub.f32 %v964, %v980
        %v983 = vmul.f32 %v981, %v981
        %v984 = vmul.f32 %v982, %v982
        %v985 = vsel %vm971, %v983, 0.0
        %986 = vadd.xlane.f32.xlu0 %v985
        %v987 = vpop.xlane.xlu0 %986
        %v988 = vsel %vm971, %v984, 0.0
        %989 = vadd.xlane.f32.xlu0 %v988
        %v990 = vpop.xlane.xlu0 %989
        %v991 = vmul.f32 %v987, %v978
        %v992 = vmul.f32 %v990, %v978
        %v993 = vadd.f32 %v991, 1e-05
        %v994 = vadd.f32 %v992, 1e-05
        %v995 = vrsqrt.pop %v993
        %v996 = vrsqrt.pop %v994
        %v997 = vmul.f32 %v981, %v995
        %v998 = vmul.f32 %v982, %v996
        %v1000 = vlaneseq
        %v1001 = vshrl.u32 %v1000, 7
        %v1002 = vsub.s32 0, %v1001
        %v1003 = vrot.slane %v969, %v1002
        %v1005 = vmul.f32 %v997, %v1003
        %v1006 = vmul.f32 %v998, %v1003
        %v1008 = vlaneseq
        %v1009 = vshrl.u32 %v1008, 7
        %v1010 = vsub.s32 0, %v1009
        %v1011 = vrot.slane %v970, %v1010
        %v1013 = vadd.f32 %v1005, %v1011
        %v1014 = vadd.f32 %v1006, %v1011
        %v1015 = vpack.c.bf16 %v1014, %v1013
        %v1016 = vld [vmem:[#allocation11] sm:$0x1]
        %v1017 = vld [vmem:[#allocation13] sm:$0x1]
        %v1018 = vsel %vm971, %v965, 0.0
        %1019 = vadd.xlane.f32.xlu0 %v1018
        %v1020 = vpop.xlane.xlu0 %1019
        %v1021 = vmul.f32 %v1020, %v978
        %v1022 = vsub.f32 %v965, %v1021
        %v1023 = vmul.f32 %v1022, %v1022
        %v1024 = vsel %vm971, %v1023, 0.0
        %1025 = vadd.xlane.f32.xlu0 %v1024
        %v1026 = vpop.xlane.xlu0 %1025
        %v1027 = vmul.f32 %v1026, %v978
        %v1028 = vadd.f32 %v1027, 1e-05
        %v1029 = vrsqrt.pop %v1028
        %v1030 = vmul.f32 %v1022, %v1029
        %v1032 = vlaneseq
        %v1033 = vshrl.u32 %v1032, 7
        %v1034 = vsub.s32 0, %v1033
        %v1035 = vrot.slane %v1016, %v1034
        %v1037 = vmul.f32 %v1030, %v1035
        %v1039 = vlaneseq
        %v1040 = vshrl.u32 %v1039, 7
        %v1041 = vsub.s32 0, %v1040
        %v1042 = vrot.slane %v1017, %v1041
        %v1044 = vadd.f32 %v1037, %v1042
        %v1045 = vpack.c.bf16 %v1044, %v1044
        %v1046 = vld [vmem:[#allocation17] sm:$0xf]
        %v1047 = vld [vmem:[#allocation17 + $0x4] sm:$0xf]
        %v1048 = vld [vmem:[#allocation17 + $0x8] sm:$0xf]
        %v1049 = vld [vmem:[#allocation17 + $0xc] sm:$0xf]
        %v1054 = vunpack.c.l.b16 %v1046
        %v1055 = vunpack.c.l.b16 %v1047
        %v1056 = vunpack.c.l.b16 %v1048
        %v1057 = vunpack.c.l.b16 %v1049
        %v1058 = vpack.c.b16 %v1055, %v1054
        %v1059 = vpack.c.b16 %v1057, %v1056
        %v1063 = vsel %vm971, %v1015, 0
        %1065 = vmatprep.subr.bf16.mxu0 0
        %1066 = vmatpush1.bf16.msra.mxu0 %v1058
        %1067 = vmatprep.subr.bf16.mxu0 0
        %1068 = vmatpush1.bf16.msra.mxu0 %v1059
        %1069 = vmatprep.subr.bf16.mxu0 0
        %1070 = vmatpush1.bf16.msra.mxu0 0
        %1071 = vmatprep.subr.bf16.mxu0 0
        %1072 = vmatpush1.bf16.msra.mxu0 0
        %1073 = vmatprep.subr.bf16.mxu0 0
        %1074 = vmatpush1.bf16.msra.mxu0 0
        %1075 = vmatprep.subr.bf16.mxu0 0
        %1076 = vmatpush1.bf16.msra.mxu0 0
        %1077 = vmatprep.subr.bf16.mxu0 0
        %1078 = vmatpush1.bf16.msra.mxu0 0
        %1079 = vmatprep.subr.bf16.mxu0 0
        %1080 = vmatpush1.bf16.msra.mxu0 0
        %1081 = vmatprep.subr.bf16.mxu0 0
        %1082 = vmatpush1.bf16.msra.mxu0 0
        %1083 = vmatprep.subr.bf16.mxu0 0
        %1084 = vmatpush1.bf16.msra.mxu0 0
        %1085 = vmatprep.subr.bf16.mxu0 0
        %1086 = vmatpush1.bf16.msra.mxu0 0
        %1087 = vmatprep.subr.bf16.mxu0 0
        %1088 = vmatpush1.bf16.msra.mxu0 0
        %1089 = vmatprep.subr.bf16.mxu0 0
        %1090 = vmatpush1.bf16.msra.mxu0 0
        %1091 = vmatprep.subr.bf16.mxu0 0
        %1092 = vmatpush1.bf16.msra.mxu0 0
        %1093 = vmatprep.subr.bf16.mxu0 0
        %1094 = vmatpush1.bf16.msra.mxu0 0
        %1095 = vmatprep.subr.bf16.mxu0 0
        %1096 = vmatpush1.bf16.msra.mxu0 0
        %1097 = vmatprep.mubr.bf16.mxu0 0
        %1098 = vmatmul.mubr.bf16.gmra.mrb[0].mxu0 %v1063
        %v1099 = vpop.f32.mrb[0].mxu0
        %v1100 = vadd.f32 0.0, %v1099
        %v1101 = vpop.f32.mrb[0].mxu0
        %v1102 = vpop.f32.mrb[0].mxu0
        %v1103 = vadd.f32 0.0, %v1102
        %v1104 = vpop.f32.mrb[0].mxu0
        %1105 = vdwg.mxu0
        %v1106 = vld [vmem:[#allocation19] sm:$0xf]
        %v1107 = vld [vmem:[#allocation19 + $0x4] sm:$0xf]
        %v1108 = vld [vmem:[#allocation19 + $0x8] sm:$0xf]
        %v1109 = vld [vmem:[#allocation19 + $0xc] sm:$0xf]
        %v1114 = vunpack.c.l.b16 %v1106
        %v1115 = vunpack.c.l.b16 %v1107
        %v1116 = vunpack.c.l.b16 %v1108
        %v1117 = vunpack.c.l.b16 %v1109
        %v1118 = vpack.c.b16 %v1115, %v1114
        %v1119 = vpack.c.b16 %v1117, %v1116
        %v1123 = vsel %vm971, %v1045, 0
        %1125 = vmatprep.subr.bf16.mxu0 0
        %1126 = vmatpush1.bf16.msra.mxu0 %v1118
        %1127 = vmatprep.subr.bf16.mxu0 0
        %1128 = vmatpush1.bf16.msra.mxu0 %v1119
        %1129 = vmatprep.subr.bf16.mxu0 0
        %1130 = vmatpush1.bf16.msra.mxu0 0
        %1131 = vmatprep.subr.bf16.mxu0 0
        %1132 = vmatpush1.bf16.msra.mxu0 0
        %1133 = vmatprep.subr.bf16.mxu0 0
        %1134 = vmatpush1.bf16.msra.mxu0 0
        %1135 = vmatprep.subr.bf16.mxu0 0
        %1136 = vmatpush1.bf16.msra.mxu0 0
        %1137 = vmatprep.subr.bf16.mxu0 0
        %1138 = vmatpush1.bf16.msra.mxu0 0
        %1139 = vmatprep.subr.bf16.mxu0 0
        %1140 = vmatpush1.bf16.msra.mxu0 0
        %1141 = vmatprep.subr.bf16.mxu0 0
        %1142 = vmatpush1.bf16.msra.mxu0 0
        %1143 = vmatprep.subr.bf16.mxu0 0
        %1144 = vmatpush1.bf16.msra.mxu0 0
        %1145 = vmatprep.subr.bf16.mxu0 0
        %1146 = vmatpush1.bf16.msra.mxu0 0
        %1147 = vmatprep.subr.bf16.mxu0 0
        %1148 = vmatpush1.bf16.msra.mxu0 0
        %1149 = vmatprep.subr.bf16.mxu0 0
        %1150 = vmatpush1.bf16.msra.mxu0 0
        %1151 = vmatprep.subr.bf16.mxu0 0
        %1152 = vmatpush1.bf16.msra.mxu0 0
        %1153 = vmatprep.subr.bf16.mxu0 0
        %1154 = vmatpush1.bf16.msra.mxu0 0
        %1155 = vmatprep.subr.bf16.mxu0 0
        %1156 = vmatpush1.bf16.msra.mxu0 0
        %1157 = vmatprep.mubr.bf16.mxu0 0
        %1158 = vmatmul.mubr.bf16.gmra.mrb[0].mxu0 %v1123
        %v1159 = vpop.f32.mrb[0].mxu0
        %v1160 = vadd.f32 0.0, %v1159
        %v1161 = vpop.f32.mrb[0].mxu0
        %v1162 = vpop.f32.mrb[0].mxu0
        %v1163 = vpop.f32.mrb[0].mxu0
        %1164 = vdwg.mxu0
        %v1165 = vld [vmem:[#allocation20] sm:$0xf]
        %v1166 = vld [vmem:[#allocation20 + $0x4] sm:$0xf]
        %v1167 = vld [vmem:[#allocation20 + $0x8] sm:$0xf]
        %v1168 = vld [vmem:[#allocation20 + $0xc] sm:$0xf]
        %v1173 = vunpack.c.l.b16 %v1165
        %v1174 = vunpack.c.l.b16 %v1166
        %v1175 = vunpack.c.l.b16 %v1167
        %v1176 = vunpack.c.l.b16 %v1168
        %v1177 = vpack.c.b16 %v1174, %v1173
        %v1178 = vpack.c.b16 %v1176, %v1175
        %1181 = vmatprep.subr.bf16.mxu0 0
        %1182 = vmatpush1.bf16.msra.mxu0 %v1177
        %1183 = vmatprep.subr.bf16.mxu0 0
        %1184 = vmatpush1.bf16.msra.mxu0 %v1178
        %1185 = vmatprep.subr.bf16.mxu0 0
        %1186 = vmatpush1.bf16.msra.mxu0 0
        %1187 = vmatprep.subr.bf16.mxu0 0
        %1188 = vmatpush1.bf16.msra.mxu0 0
        %1189 = vmatprep.subr.bf16.mxu0 0
        %1190 = vmatpush1.bf16.msra.mxu0 0
        %1191 = vmatprep.subr.bf16.mxu0 0
        %1192 = vmatpush1.bf16.msra.mxu0 0
        %1193 = vmatprep.subr.bf16.mxu0 0
        %1194 = vmatpush1.bf16.msra.mxu0 0
        %1195 = vmatprep.subr.bf16.mxu0 0
        %1196 = vmatpush1.bf16.msra.mxu0 0
        %1197 = vmatprep.subr.bf16.mxu0 0
        %1198 = vmatpush1.bf16.msra.mxu0 0
        %1199 = vmatprep.subr.bf16.mxu0 0
        %1200 = vmatpush1.bf16.msra.mxu0 0
        %1201 = vmatprep.subr.bf16.mxu0 0
        %1202 = vmatpush1.bf16.msra.mxu0 0
        %1203 = vmatprep.subr.bf16.mxu0 0
        %1204 = vmatpush1.bf16.msra.mxu0 0
        %1205 = vmatprep.subr.bf16.mxu0 0
        %1206 = vmatpush1.bf16.msra.mxu0 0
        %1207 = vmatprep.subr.bf16.mxu0 0
        %1208 = vmatpush1.bf16.msra.mxu0 0
        %1209 = vmatprep.subr.bf16.mxu0 0
        %1210 = vmatpush1.bf16.msra.mxu0 0
        %1211 = vmatprep.subr.bf16.mxu0 0
        %1212 = vmatpush1.bf16.msra.mxu0 0
        %1213 = vmatprep.mubr.bf16.mxu0 0
        %1214 = vmatmul.mubr.bf16.gmra.mrb[0].mxu0 %v1123
        %v1215 = vpop.f32.mrb[0].mxu0
        %v1216 = vadd.f32 0.0, %v1215
        %v1217 = vpop.f32.mrb[0].mxu0
        %v1218 = vpop.f32.mrb[0].mxu0
        %v1219 = vpop.f32.mrb[0].mxu0
        %1220 = vdwg.mxu0
        %v1221 = vpack.c.bf16 %v1103, %v1100
        %v1222 = vpack.c.bf16 %v1160, %v1160
        %v1224 = vlaneseq
        %v1225 = vshrl.u32 %v1224, 7
        %v1226 = vsub.s32 0, %v1225
        %v1227 = vrot.slane %v968, %v1226
        %vm1229 = vcmask 64512
        %v1231 = vsel %vm1229, %v1221, 0
        %v1234 = vsel %vm1229, %v1222, 0
        %1236 = vmatprep.subr.bf16.mxu0 0
        %1237 = vmatpush1.bf16.xpose.msra.mxu0 %v1234
        %1238 = vmatprep.subr.bf16.mxu0 0
        %1239 = vmatpush1.bf16.xpose.msra.mxu0 0
        %1240 = vmatprep.subr.bf16.mxu0 0
        %1241 = vmatpush1.bf16.xpose.msra.mxu0 0
        %1242 = vmatprep.subr.bf16.mxu0 0
        %1243 = vmatpush1.bf16.xpose.msra.mxu0 0
        %1244 = vmatprep.subr.bf16.mxu0 0
        %1245 = vmatpush1.bf16.xpose.msra.mxu0 0
        %1246 = vmatprep.subr.bf16.mxu0 0
        %1247 = vmatpush1.bf16.xpose.msra.mxu0 0
        %1248 = vmatprep.subr.bf16.mxu0 0
        %1249 = vmatpush1.bf16.xpose.msra.mxu0 0
        %1250 = vmatprep.subr.bf16.mxu0 0
        %1251 = vmatpush1.bf16.xpose.msra.mxu0 0
        %1252 = vmatprep.subr.bf16.mxu0 0
        %1253 = vmatpush1.bf16.xpose.msra.mxu0 0
        %1254 = vmatprep.subr.bf16.mxu0 0
        %1255 = vmatpush1.bf16.xpose.msra.mxu0 0
        %1256 = vmatprep.subr.bf16.mxu0 0
        %1257 = vmatpush1.bf16.xpose.msra.mxu0 0
        %1258 = vmatprep.subr.bf16.mxu0 0
        %1259 = vmatpush1.bf16.xpose.msra.mxu0 0
        %1260 = vmatprep.subr.bf16.mxu0 0
        %1261 = vmatpush1.bf16.xpose.msra.mxu0 0
        %1262 = vmatprep.subr.bf16.mxu0 0
        %1263 = vmatpush1.bf16.xpose.msra.mxu0 0
        %1264 = vmatprep.subr.bf16.mxu0 0
        %1265 = vmatpush1.bf16.xpose.msra.mxu0 0
        %1266 = vmatprep.subr.bf16.mxu0 0
        %1267 = vmatpush1.bf16.xpose.msra.mxu0 0
        %1268 = vmatprep.mubr.bf16.mxu0 0
        %1269 = vmatmul.mubr.bf16.gmra.mrb[0].mxu0 %v1231
        %v1270 = vpop.f32.mrb[0].mxu0
        %v1271 = vadd.f32 %v1227, %v1270
        %v1272 = vpop.f32.mrb[0].mxu0
        %v1273 = vpop.f32.mrb[0].mxu0
        %v1274 = vadd.f32 %v1227, %v1273
        %v1275 = vpop.f32.mrb[0].mxu0
        %1276 = vdwg.mxu0
        %v1277 = vsel %vm1229, %v1271, -inf
        %1278 = vmax.xlane.f32.xlu0 %v1277
        %v1279 = vpop.xlane.xlu0 %1278
        %v1280 = vsel %vm1229, %v1274, -inf
        %1281 = vmax.xlane.f32.xlu0 %v1280
        %v1282 = vpop.xlane.xlu0 %1281
        %v1283 = vsub.f32 %v1271, %v1279
        %v1284 = vsub.f32 %v1274, %v1282
        %v1285 = vmul.f32 %v1283, 1.442695
        %v1286 = vpow.pop %v1285
        %v1287 = vmul.f32 %v1284, 1.442695
        %v1288 = vpow.pop %v1287
        %v1289 = vsel %vm1229, %v1286, 0.0
        %1290 = vadd.xlane.f32.xlu0 %v1289
        %v1291 = vpop.xlane.xlu0 %1290
        %v1292 = vsel %vm1229, %v1288, 0.0
        %1293 = vadd.xlane.f32.xlu0 %v1292
        %v1294 = vpop.xlane.xlu0 %1293
        %v1295 = vrcp.pop %v1291
        %v1296 = vrcp.pop %v1294
        %v1297 = vpack.c.bf16 %v1288, %v1286
        %v1298 = vpack.c.bf16 %v1216, %v1216
        %v1300 = vsel %vm1229, %v1297, 0
        %vm1302 = vcmask 1043456
        %v1304 = vsel %vm1302, %v1298, 0
        %1306 = vmatprep.subr.bf16.mxu0 0
        %1307 = vmatpush1.bf16.msra.mxu0 %v1304
        %1308 = vmatprep.subr.bf16.mxu0 0
        %1309 = vmatpush1.bf16.msra.mxu0 0
        %1310 = vmatprep.subr.bf16.mxu0 0
        %1311 = vmatpush1.bf16.msra.mxu0 0
        %1312 = vmatprep.subr.bf16.mxu0 0
        %1313 = vmatpush1.bf16.msra.mxu0 0
        %1314 = vmatprep.subr.bf16.mxu0 0
        %1315 = vmatpush1.bf16.msra.mxu0 0
        %1316 = vmatprep.subr.bf16.mxu0 0
        %1317 = vmatpush1.bf16.msra.mxu0 0
        %1318 = vmatprep.subr.bf16.mxu0 0
        %1319 = vmatpush1.bf16.msra.mxu0 0
        %1320 = vmatprep.subr.bf16.mxu0 0
        %1321 = vmatpush1.bf16.msra.mxu0 0
        %1322 = vmatprep.subr.bf16.mxu0 0
        %1323 = vmatpush1.bf16.msra.mxu0 0
        %1324 = vmatprep.subr.bf16.mxu0 0
        %1325 = vmatpush1.bf16.msra.mxu0 0
        %1326 = vmatprep.subr.bf16.mxu0 0
        %1327 = vmatpush1.bf16.msra.mxu0 0
        %1328 = vmatprep.subr.bf16.mxu0 0
        %1329 = vmatpush1.bf16.msra.mxu0 0
        %1330 = vmatprep.subr.bf16.mxu0 0
        %1331 = vmatpush1.bf16.msra.mxu0 0
        %1332 = vmatprep.subr.bf16.mxu0 0
        %1333 = vmatpush1.bf16.msra.mxu0 0
        %1334 = vmatprep.subr.bf16.mxu0 0
        %1335 = vmatpush1.bf16.msra.mxu0 0
        %1336 = vmatprep.subr.bf16.mxu0 0
        %1337 = vmatpush1.bf16.msra.mxu0 0
        %1338 = vmatprep.mubr.bf16.mxu0 0
        %1339 = vmatmul.mubr.bf16.gmra.mrb[0].mxu0 %v1300
        %v1340 = vpop.f32.mrb[0].mxu0
        %v1341 = vadd.f32 0.0, %v1340
        %v1342 = vpop.f32.mrb[0].mxu0
        %v1343 = vpop.f32.mrb[0].mxu0
        %v1344 = vadd.f32 0.0, %v1343
        %v1345 = vpop.f32.mrb[0].mxu0
        %1346 = vdwg.mxu0
        %v1347 = vmul.f32 %v1341, %v1295
        %v1348 = vmul.f32 %v1344, %v1296
        %v1349 = vpack.c.bf16 %v1348, %v1347
        %v1350 = vld [vmem:[#allocation22] sm:$0xf]
        %s1351 = scalar_lea.vmem [#allocation17], 16
        %v1352 = vld [vmem:[%s1351] sm:$0xf]
        %v1353 = vld [vmem:[%s1351 + $0x4] sm:$0xf]
        %v1354 = vld [vmem:[%s1351 + $0x8] sm:$0xf]
        %v1355 = vld [vmem:[%s1351 + $0xc] sm:$0xf]
        %v1360 = vunpack.c.l.b16 %v1352
        %v1361 = vunpack.c.l.b16 %v1353
        %v1362 = vunpack.c.l.b16 %v1354
        %v1363 = vunpack.c.l.b16 %v1355
        %v1364 = vpack.c.b16 %v1361, %v1360
        %v1365 = vpack.c.b16 %v1363, %v1362
        %1368 = vmatprep.subr.bf16.mxu0 0
        %1369 = vmatpush1.bf16.msra.mxu0 %v1364
        %1370 = vmatprep.subr.bf16.mxu0 0
        %1371 = vmatpush1.bf16.msra.mxu0 %v1365
        %1372 = vmatprep.subr.bf16.mxu0 0
        %1373 = vmatpush1.bf16.msra.mxu0 0
        %1374 = vmatprep.subr.bf16.mxu0 0
        %1375 = vmatpush1.bf16.msra.mxu0 0
        %1376 = vmatprep.subr.bf16.mxu0 0
        %1377 = vmatpush1.bf16.msra.mxu0 0
        %1378 = vmatprep.subr.bf16.mxu0 0
        %1379 = vmatpush1.bf16.msra.mxu0 0
        %1380 = vmatprep.subr.bf16.mxu0 0
        %1381 = vmatpush1.bf16.msra.mxu0 0
        %1382 = vmatprep.subr.bf16.mxu0 0
        %1383 = vmatpush1.bf16.msra.mxu0 0
        %1384 = vmatprep.subr.bf16.mxu0 0
        %1385 = vmatpush1.bf16.msra.mxu0 0
        %1386 = vmatprep.subr.bf16.mxu0 0
        %1387 = vmatpush1.bf16.msra.mxu0 0
        %1388 = vmatprep.subr.bf16.mxu0 0
        %1389 = vmatpush1.bf16.msra.mxu0 0
        %1390 = vmatprep.subr.bf16.mxu0 0
        %1391 = vmatpush1.bf16.msra.mxu0 0
        %1392 = vmatprep.subr.bf16.mxu0 0
        %1393 = vmatpush1.bf16.msra.mxu0 0
        %1394 = vmatprep.subr.bf16.mxu0 0
        %1395 = vmatpush1.bf16.msra.mxu0 0
        %1396 = vmatprep.subr.bf16.mxu0 0
        %1397 = vmatpush1.bf16.msra.mxu0 0
        %1398 = vmatprep.subr.bf16.mxu0 0
        %1399 = vmatpush1.bf16.msra.mxu0 0
        %1400 = vmatprep.mubr.bf16.mxu0 0
        %1401 = vmatmul.mubr.bf16.gmra.mrb[0].mxu0 %v1063
        %v1402 = vpop.f32.mrb[0].mxu0
        %v1403 = vadd.f32 0.0, %v1402
        %v1404 = vpop.f32.mrb[0].mxu0
        %v1405 = vpop.f32.mrb[0].mxu0
        %v1406 = vadd.f32 0.0, %v1405
        %v1407 = vpop.f32.mrb[0].mxu0
        %1408 = vdwg.mxu0
        %s1409 = scalar_lea.vmem [#allocation19], 16
        %v1410 = vld [vmem:[%s1409] sm:$0xf]
        %v1411 = vld [vmem:[%s1409 + $0x4] sm:$0xf]
        %v1412 = vld [vmem:[%s1409 + $0x8] sm:$0xf]
        %v1413 = vld [vmem:[%s1409 + $0xc] sm:$0xf]
        %v1418 = vunpack.c.l.b16 %v1410
        %v1419 = vunpack.c.l.b16 %v1411
        %v1420 = vunpack.c.l.b16 %v1412
        %v1421 = vunpack.c.l.b16 %v1413
        %v1422 = vpack.c.b16 %v1419, %v1418
        %v1423 = vpack.c.b16 %v1421, %v1420
        %1426 = vmatprep.subr.bf16.mxu0 0
        %1427 = vmatpush1.bf16.msra.mxu0 %v1422
        %1428 = vmatprep.subr.bf16.mxu0 0
        %1429 = vmatpush1.bf16.msra.mxu0 %v1423
        %1430 = vmatprep.subr.bf16.mxu0 0
        %1431 = vmatpush1.bf16.msra.mxu0 0
        %1432 = vmatprep.subr.bf16.mxu0 0
        %1433 = vmatpush1.bf16.msra.mxu0 0
        %1434 = vmatprep.subr.bf16.mxu0 0
        %1435 = vmatpush1.bf16.msra.mxu0 0
        %1436 = vmatprep.subr.bf16.mxu0 0
        %1437 = vmatpush1.bf16.msra.mxu0 0
        %1438 = vmatprep.subr.bf16.mxu0 0
        %1439 = vmatpush1.bf16.msra.mxu0 0
        %1440 = vmatprep.subr.bf16.mxu0 0
        %1441 = vmatpush1.bf16.msra.mxu0 0
        %1442 = vmatprep.subr.bf16.mxu0 0
        %1443 = vmatpush1.bf16.msra.mxu0 0
        %1444 = vmatprep.subr.bf16.mxu0 0
        %1445 = vmatpush1.bf16.msra.mxu0 0
        %1446 = vmatprep.subr.bf16.mxu0 0
        %1447 = vmatpush1.bf16.msra.mxu0 0
        %1448 = vmatprep.subr.bf16.mxu0 0
        %1449 = vmatpush1.bf16.msra.mxu0 0
        %1450 = vmatprep.subr.bf16.mxu0 0
        %1451 = vmatpush1.bf16.msra.mxu0 0
        %1452 = vmatprep.subr.bf16.mxu0 0
        %1453 = vmatpush1.bf16.msra.mxu0 0
        %1454 = vmatprep.subr.bf16.mxu0 0
        %1455 = vmatpush1.bf16.msra.mxu0 0
        %1456 = vmatprep.subr.bf16.mxu0 0
        %1457 = vmatpush1.bf16.msra.mxu0 0
        %1458 = vmatprep.mubr.bf16.mxu0 0
        %1459 = vmatmul.mubr.bf16.gmra.mrb[0].mxu0 %v1123
        %v1460 = vpop.f32.mrb[0].mxu0
        %v1461 = vadd.f32 0.0, %v1460
        %v1462 = vpop.f32.mrb[0].mxu0
        %v1463 = vpop.f32.mrb[0].mxu0
        %v1464 = vpop.f32.mrb[0].mxu0
        %1465 = vdwg.mxu0
        %s1466 = scalar_lea.vmem [#allocation20], 16
        %v1467 = vld [vmem:[%s1466] sm:$0xf]
        %v1468 = vld [vmem:[%s1466 + $0x4] sm:$0xf]
        %v1469 = vld [vmem:[%s1466 + $0x8] sm:$0xf]
        %v1470 = vld [vmem:[%s1466 + $0xc] sm:$0xf]
        %v1475 = vunpack.c.l.b16 %v1467
        %v1476 = vunpack.c.l.b16 %v1468
        %v1477 = vunpack.c.l.b16 %v1469
        %v1478 = vunpack.c.l.b16 %v1470
        %v1479 = vpack.c.b16 %v1476, %v1475
        %v1480 = vpack.c.b16 %v1478, %v1477
        %1483 = vmatprep.subr.bf16.mxu0 0
        %1484 = vmatpush1.bf16.msra.mxu0 %v1479
        %1485 = vmatprep.subr.bf16.mxu0 0
        %1486 = vmatpush1.bf16.msra.mxu0 %v1480
        %1487 = vmatprep.subr.bf16.mxu0 0
        %1488 = vmatpush1.bf16.msra.mxu0 0
        %1489 = vmatprep.subr.bf16.mxu0 0
        %1490 = vmatpush1.bf16.msra.mxu0 0
        %1491 = vmatprep.subr.bf16.mxu0 0
        %1492 = vmatpush1.bf16.msra.mxu0 0
        %1493 = vmatprep.subr.bf16.mxu0 0
        %1494 = vmatpush1.bf16.msra.mxu0 0
        %1495 = vmatprep.subr.bf16.mxu0 0
        %1496 = vmatpush1.bf16.msra.mxu0 0
        %1497 = vmatprep.subr.bf16.mxu0 0
        %1498 = vmatpush1.bf16.msra.mxu0 0
        %1499 = vmatprep.subr.bf16.mxu0 0
        %1500 = vmatpush1.bf16.msra.mxu0 0
        %1501 = vmatprep.subr.bf16.mxu0 0
        %1502 = vmatpush1.bf16.msra.mxu0 0
        %1503 = vmatprep.subr.bf16.mxu0 0
        %1504 = vmatpush1.bf16.msra.mxu0 0
        %1505 = vmatprep.subr.bf16.mxu0 0
        %1506 = vmatpush1.bf16.msra.mxu0 0
        %1507 = vmatprep.subr.bf16.mxu0 0
        %1508 = vmatpush1.bf16.msra.mxu0 0
        %1509 = vmatprep.subr.bf16.mxu0 0
        %1510 = vmatpush1.bf16.msra.mxu0 0
        %1511 = vmatprep.subr.bf16.mxu0 0
        %1512 = vmatpush1.bf16.msra.mxu0 0
        %1513 = vmatprep.subr.bf16.mxu0 0
        %1514 = vmatpush1.bf16.msra.mxu0 0
        %1515 = vmatprep.mubr.bf16.mxu0 0
        %1516 = vmatmul.mubr.bf16.gmra.mrb[0].mxu0 %v1123
        %v1517 = vpop.f32.mrb[0].mxu0
        %v1518 = vadd.f32 0.0, %v1517
        %v1519 = vpop.f32.mrb[0].mxu0
        %v1520 = vpop.f32.mrb[0].mxu0
        %v1521 = vpop.f32.mrb[0].mxu0
        %1522 = vdwg.mxu0
        %v1523 = vpack.c.bf16 %v1406, %v1403
        %v1524 = vpack.c.bf16 %v1461, %v1461
        %v1526 = vsel %vm1229, %v1523, 0
        %v1529 = vsel %vm1229, %v1524, 0
        %1531 = vmatprep.subr.bf16.mxu0 0
        %1532 = vmatpush1.bf16.xpose.msra.mxu0 %v1529
        %1533 = vmatprep.subr.bf16.mxu0 0
        %1534 = vmatpush1.bf16.xpose.msra.mxu0 0
        %1535 = vmatprep.subr.bf16.mxu0 0
        %1536 = vmatpush1.bf16.xpose.msra.mxu0 0
        %1537 = vmatprep.subr.bf16.mxu0 0
        %1538 = vmatpush1.bf16.xpose.msra.mxu0 0
        %1539 = vmatprep.subr.bf16.mxu0 0
        %1540 = vmatpush1.bf16.xpose.msra.mxu0 0
        %1541 = vmatprep.subr.bf16.mxu0 0
        %1542 = vmatpush1.bf16.xpose.msra.mxu0 0
        %1543 = vmatprep.subr.bf16.mxu0 0
        %1544 = vmatpush1.bf16.xpose.msra.mxu0 0
        %1545 = vmatprep.subr.bf16.mxu0 0
        %1546 = vmatpush1.bf16.xpose.msra.mxu0 0
        %1547 = vmatprep.subr.bf16.mxu0 0
        %1548 = vmatpush1.bf16.xpose.msra.mxu0 0
        %1549 = vmatprep.subr.bf16.mxu0 0
        %1550 = vmatpush1.bf16.xpose.msra.mxu0 0
        %1551 = vmatprep.subr.bf16.mxu0 0
        %1552 = vmatpush1.bf16.xpose.msra.mxu0 0
        %1553 = vmatprep.subr.bf16.mxu0 0
        %1554 = vmatpush1.bf16.xpose.msra.mxu0 0
        %1555 = vmatprep.subr.bf16.mxu0 0
        %1556 = vmatpush1.bf16.xpose.msra.mxu0 0
        %1557 = vmatprep.subr.bf16.mxu0 0
        %1558 = vmatpush1.bf16.xpose.msra.mxu0 0
        %1559 = vmatprep.subr.bf16.mxu0 0
        %1560 = vmatpush1.bf16.xpose.msra.mxu0 0
        %1561 = vmatprep.subr.bf16.mxu0 0
        %1562 = vmatpush1.bf16.xpose.msra.mxu0 0
        %1563 = vmatprep.mubr.bf16.mxu0 0
        %1564 = vmatmul.mubr.bf16.gmra.mrb[0].mxu0 %v1526
        %v1565 = vpop.f32.mrb[0].mxu0
        %v1566 = vadd.f32 %v1227, %v1565
        %v1567 = vpop.f32.mrb[0].mxu0
        %v1568 = vpop.f32.mrb[0].mxu0
        %v1569 = vadd.f32 %v1227, %v1568
        %v1570 = vpop.f32.mrb[0].mxu0
        %1571 = vdwg.mxu0
        %v1572 = vsel %vm1229, %v1566, -inf
        %1573 = vmax.xlane.f32.xlu0 %v1572
        %v1574 = vpop.xlane.xlu0 %1573
        %v1575 = vsel %vm1229, %v1569, -inf
        %1576 = vmax.xlane.f32.xlu0 %v1575
        %v1577 = vpop.xlane.xlu0 %1576
        %v1578 = vsub.f32 %v1566, %v1574
        %v1579 = vsub.f32 %v1569, %v1577
        %v1580 = vmul.f32 %v1578, 1.442695
        %v1581 = vpow.pop %v1580
        %v1582 = vmul.f32 %v1579, 1.442695
        %v1583 = vpow.pop %v1582
        %v1584 = vsel %vm1229, %v1581, 0.0
        %1585 = vadd.xlane.f32.xlu0 %v1584
        %v1586 = vpop.xlane.xlu0 %1585
        %v1587 = vsel %vm1229, %v1583, 0.0
        %1588 = vadd.xlane.f32.xlu0 %v1587
        %v1589 = vpop.xlane.xlu0 %1588
        %v1590 = vrcp.pop %v1586
        %v1591 = vrcp.pop %v1589
        %v1592 = vpack.c.bf16 %v1583, %v1581
        %v1593 = vpack.c.bf16 %v1518, %v1518
        %v1595 = vsel %vm1229, %v1592, 0
        %v1598 = vsel %vm1302, %v1593, 0
        %1600 = vmatprep.subr.bf16.mxu0 0
        %1601 = vmatpush1.bf16.msra.mxu0 %v1598
        %1602 = vmatprep.subr.bf16.mxu0 0
        %1603 = vmatpush1.bf16.msra.mxu0 0
        %1604 = vmatprep.subr.bf16.mxu0 0
        %1605 = vmatpush1.bf16.msra.mxu0 0
        %1606 = vmatprep.subr.bf16.mxu0 0
        %1607 = vmatpush1.bf16.msra.mxu0 0
        %1608 = vmatprep.subr.bf16.mxu0 0
        %1609 = vmatpush1.bf16.msra.mxu0 0
        %1610 = vmatprep.subr.bf16.mxu0 0
        %1611 = vmatpush1.bf16.msra.mxu0 0
        %1612 = vmatprep.subr.bf16.mxu0 0
        %1613 = vmatpush1.bf16.msra.mxu0 0
        %1614 = vmatprep.subr.bf16.mxu0 0
        %1615 = vmatpush1.bf16.msra.mxu0 0
        %1616 = vmatprep.subr.bf16.mxu0 0
        %1617 = vmatpush1.bf16.msra.mxu0 0
        %1618 = vmatprep.subr.bf16.mxu0 0
        %1619 = vmatpush1.bf16.msra.mxu0 0
        %1620 = vmatprep.subr.bf16.mxu0 0
        %1621 = vmatpush1.bf16.msra.mxu0 0
        %1622 = vmatprep.subr.bf16.mxu0 0
        %1623 = vmatpush1.bf16.msra.mxu0 0
        %1624 = vmatprep.subr.bf16.mxu0 0
        %1625 = vmatpush1.bf16.msra.mxu0 0
        %1626 = vmatprep.subr.bf16.mxu0 0
        %1627 = vmatpush1.bf16.msra.mxu0 0
        %1628 = vmatprep.subr.bf16.mxu0 0
        %1629 = vmatpush1.bf16.msra.mxu0 0
        %1630 = vmatprep.subr.bf16.mxu0 0
        %1631 = vmatpush1.bf16.msra.mxu0 0
        %1632 = vmatprep.mubr.bf16.mxu0 0
        %1633 = vmatmul.mubr.bf16.gmra.mrb[0].mxu0 %v1595
        %v1634 = vpop.f32.mrb[0].mxu0
        %v1635 = vadd.f32 0.0, %v1634
        %v1636 = vpop.f32.mrb[0].mxu0
        %v1637 = vpop.f32.mrb[0].mxu0
        %v1638 = vadd.f32 0.0, %v1637
        %v1639 = vpop.f32.mrb[0].mxu0
        %1640 = vdwg.mxu0
        %v1641 = vmul.f32 %v1635, %v1590
        %v1642 = vmul.f32 %v1638, %v1591
        %v1643 = vpack.c.bf16 %v1642, %v1641
        %s1644 = scalar_lea.vmem [#allocation22], 4
        %v1645 = vld [vmem:[%s1644] sm:$0xf]
        %v1647 = vsel %vm1229, %v1643, 0
        %v1650 = vsel %vm1302, %v1645, 0
        %1652 = vmatprep.subr.bf16.mxu0 0
        %1653 = vmatpush1.bf16.msra.mxu0 %v1650
        %1654 = vmatprep.subr.bf16.mxu0 0
        %1655 = vmatpush1.bf16.msra.mxu0 0
        %1656 = vmatprep.subr.bf16.mxu0 0
        %1657 = vmatpush1.bf16.msra.mxu0 0
        %1658 = vmatprep.subr.bf16.mxu0 0
        %1659 = vmatpush1.bf16.msra.mxu0 0
        %1660 = vmatprep.subr.bf16.mxu0 0
        %1661 = vmatpush1.bf16.msra.mxu0 0
        %1662 = vmatprep.subr.bf16.mxu0 0
        %1663 = vmatpush1.bf16.msra.mxu0 0
        %1664 = vmatprep.subr.bf16.mxu0 0
        %1665 = vmatpush1.bf16.msra.mxu0 0
        %1666 = vmatprep.subr.bf16.mxu0 0
        %1667 = vmatpush1.bf16.msra.mxu0 0
        %1668 = vmatprep.subr.bf16.mxu0 0
        %1669 = vmatpush1.bf16.msra.mxu0 0
        %1670 = vmatprep.subr.bf16.mxu0 0
        %1671 = vmatpush1.bf16.msra.mxu0 0
        %1672 = vmatprep.subr.bf16.mxu0 0
        %1673 = vmatpush1.bf16.msra.mxu0 0
        %1674 = vmatprep.subr.bf16.mxu0 0
        %1675 = vmatpush1.bf16.msra.mxu0 0
        %1676 = vmatprep.subr.bf16.mxu0 0
        %1677 = vmatpush1.bf16.msra.mxu0 0
        %1678 = vmatprep.subr.bf16.mxu0 0
        %1679 = vmatpush1.bf16.msra.mxu0 0
        %1680 = vmatprep.subr.bf16.mxu0 0
        %1681 = vmatpush1.bf16.msra.mxu0 0
        %1682 = vmatprep.subr.bf16.mxu0 0
        %1683 = vmatpush1.bf16.msra.mxu0 0
        %1684 = vmatprep.mubr.bf16.mxu0 0
        %1685 = vmatmul.mubr.bf16.gmra.mrb[0].mxu0 %v1647
        %v1686 = vpop.f32.mrb[0].mxu0
        %v1687 = vadd.f32 0.0, %v1686
        %v1688 = vpop.f32.mrb[0].mxu0
        %v1689 = vpop.f32.mrb[0].mxu0
        %v1690 = vadd.f32 0.0, %v1689
        %v1691 = vpop.f32.mrb[0].mxu0
        %1692 = vdwg.mxu0
        %v1694 = vsel %vm1229, %v1349, 0
        %v1697 = vsel %vm1302, %v1350, 0
        %1699 = vmatprep.subr.bf16.mxu0 0
        %1700 = vmatpush1.bf16.msra.mxu0 %v1697
        %1701 = vmatprep.subr.bf16.mxu0 0
        %1702 = vmatpush1.bf16.msra.mxu0 0
        %1703 = vmatprep.subr.bf16.mxu0 0
        %1704 = vmatpush1.bf16.msra.mxu0 0
        %1705 = vmatprep.subr.bf16.mxu0 0
        %1706 = vmatpush1.bf16.msra.mxu0 0
        %1707 = vmatprep.subr.bf16.mxu0 0
        %1708 = vmatpush1.bf16.msra.mxu0 0
        %1709 = vmatprep.subr.bf16.mxu0 0
        %1710 = vmatpush1.bf16.msra.mxu0 0
        %1711 = vmatprep.subr.bf16.mxu0 0
        %1712 = vmatpush1.bf16.msra.mxu0 0
        %1713 = vmatprep.subr.bf16.mxu0 0
        %1714 = vmatpush1.bf16.msra.mxu0 0
        %1715 = vmatprep.subr.bf16.mxu0 0
        %1716 = vmatpush1.bf16.msra.mxu0 0
        %1717 = vmatprep.subr.bf16.mxu0 0
        %1718 = vmatpush1.bf16.msra.mxu0 0
        %1719 = vmatprep.subr.bf16.mxu0 0
        %1720 = vmatpush1.bf16.msra.mxu0 0
        %1721 = vmatprep.subr.bf16.mxu0 0
        %1722 = vmatpush1.bf16.msra.mxu0 0
        %1723 = vmatprep.subr.bf16.mxu0 0
        %1724 = vmatpush1.bf16.msra.mxu0 0
        %1725 = vmatprep.subr.bf16.mxu0 0
        %1726 = vmatpush1.bf16.msra.mxu0 0
        %1727 = vmatprep.subr.bf16.mxu0 0
        %1728 = vmatpush1.bf16.msra.mxu0 0
        %1729 = vmatprep.subr.bf16.mxu0 0
        %1730 = vmatpush1.bf16.msra.mxu0 0
        %1731 = vmatprep.mubr.bf16.mxu0 0
        %1732 = vmatmul.mubr.bf16.gmra.mrb[0].mxu0 %v1694
        %v1733 = vpop.f32.mrb[0].mxu0
        %v1734 = vadd.f32 %v1687, %v1733
        %v1735 = vpop.f32.mrb[0].mxu0
        %v1736 = vpop.f32.mrb[0].mxu0
        %v1737 = vadd.f32 %v1690, %v1736
        %v1738 = vpop.f32.mrb[0].mxu0
        %1739 = vdwg.mxu0
        %s1740 = scalar_lea.vmem [#allocation17], 32
        %v1741 = vld [vmem:[%s1740] sm:$0xf]
        %v1742 = vld [vmem:[%s1740 + $0x4] sm:$0xf]
        %v1743 = vld [vmem:[%s1740 + $0x8] sm:$0xf]
        %v1744 = vld [vmem:[%s1740 + $0xc] sm:$0xf]
        %v1749 = vunpack.c.l.b16 %v1741
        %v1750 = vunpack.c.l.b16 %v1742
        %v1751 = vunpack.c.l.b16 %v1743
        %v1752 = vunpack.c.l.b16 %v1744
        %v1753 = vpack.c.b16 %v1750, %v1749
        %v1754 = vpack.c.b16 %v1752, %v1751
        %1757 = vmatprep.subr.bf16.mxu0 0
        %1758 = vmatpush1.bf16.msra.mxu0 %v1753
        %1759 = vmatprep.subr.bf16.mxu0 0
        %1760 = vmatpush1.bf16.msra.mxu0 %v1754
        %1761 = vmatprep.subr.bf16.mxu0 0
        %1762 = vmatpush1.bf16.msra.mxu0 0
        %1763 = vmatprep.subr.bf16.mxu0 0
        %1764 = vmatpush1.bf16.msra.mxu0 0
        %1765 = vmatprep.subr.bf16.mxu0 0
        %1766 = vmatpush1.bf16.msra.mxu0 0
        %1767 = vmatprep.subr.bf16.mxu0 0
        %1768 = vmatpush1.bf16.msra.mxu0 0
        %1769 = vmatprep.subr.bf16.mxu0 0
        %1770 = vmatpush1.bf16.msra.mxu0 0
        %1771 = vmatprep.subr.bf16.mxu0 0
        %1772 = vmatpush1.bf16.msra.mxu0 0
        %1773 = vmatprep.subr.bf16.mxu0 0
        %1774 = vmatpush1.bf16.msra.mxu0 0
        %1775 = vmatprep.subr.bf16.mxu0 0
        %1776 = vmatpush1.bf16.msra.mxu0 0
        %1777 = vmatprep.subr.bf16.mxu0 0
        %1778 = vmatpush1.bf16.msra.mxu0 0
        %1779 = vmatprep.subr.bf16.mxu0 0
        %1780 = vmatpush1.bf16.msra.mxu0 0
        %1781 = vmatprep.subr.bf16.mxu0 0
        %1782 = vmatpush1.bf16.msra.mxu0 0
        %1783 = vmatprep.subr.bf16.mxu0 0
        %1784 = vmatpush1.bf16.msra.mxu0 0
        %1785 = vmatprep.subr.bf16.mxu0 0
        %1786 = vmatpush1.bf16.msra.mxu0 0
        %1787 = vmatprep.subr.bf16.mxu0 0
        %1788 = vmatpush1.bf16.msra.mxu0 0
        %1789 = vmatprep.mubr.bf16.mxu0 0
        %1790 = vmatmul.mubr.bf16.gmra.mrb[0].mxu0 %v1063
        %v1791 = vpop.f32.mrb[0].mxu0
        %v1792 = vadd.f32 0.0, %v1791
        %v1793 = vpop.f32.mrb[0].mxu0
        %v1794 = vpop.f32.mrb[0].mxu0
        %v1795 = vadd.f32 0.0, %v1794
        %v1796 = vpop.f32.mrb[0].mxu0
        %1797 = vdwg.mxu0
        %s1798 = scalar_lea.vmem [#allocation19], 32
        %v1799 = vld [vmem:[%s1798] sm:$0xf]
        %v1800 = vld [vmem:[%s1798 + $0x4] sm:$0xf]
        %v1801 = vld [vmem:[%s1798 + $0x8] sm:$0xf]
        %v1802 = vld [vmem:[%s1798 + $0xc] sm:$0xf]
        %v1807 = vunpack.c.l.b16 %v1799
        %v1808 = vunpack.c.l.b16 %v1800
        %v1809 = vunpack.c.l.b16 %v1801
        %v1810 = vunpack.c.l.b16 %v1802
        %v1811 = vpack.c.b16 %v1808, %v1807
        %v1812 = vpack.c.b16 %v1810, %v1809
        %1815 = vmatprep.subr.bf16.mxu0 0
        %1816 = vmatpush1.bf16.msra.mxu0 %v1811
        %1817 = vmatprep.subr.bf16.mxu0 0
        %1818 = vmatpush1.bf16.msra.mxu0 %v1812
        %1819 = vmatprep.subr.bf16.mxu0 0
        %1820 = vmatpush1.bf16.msra.mxu0 0
        %1821 = vmatprep.subr.bf16.mxu0 0
        %1822 = vmatpush1.bf16.msra.mxu0 0
        %1823 = vmatprep.subr.bf16.mxu0 0
        %1824 = vmatpush1.bf16.msra.mxu0 0
        %1825 = vmatprep.subr.bf16.mxu0 0
        %1826 = vmatpush1.bf16.msra.mxu0 0
        %1827 = vmatprep.subr.bf16.mxu0 0
        %1828 = vmatpush1.bf16.msra.mxu0 0
        %1829 = vmatprep.subr.bf16.mxu0 0
        %1830 = vmatpush1.bf16.msra.mxu0 0
        %1831 = vmatprep.subr.bf16.mxu0 0
        %1832 = vmatpush1.bf16.msra.mxu0 0
        %1833 = vmatprep.subr.bf16.mxu0 0
        %1834 = vmatpush1.bf16.msra.mxu0 0
        %1835 = vmatprep.subr.bf16.mxu0 0
        %1836 = vmatpush1.bf16.msra.mxu0 0
        %1837 = vmatprep.subr.bf16.mxu0 0
        %1838 = vmatpush1.bf16.msra.mxu0 0
        %1839 = vmatprep.subr.bf16.mxu0 0
        %1840 = vmatpush1.bf16.msra.mxu0 0
        %1841 = vmatprep.subr.bf16.mxu0 0
        %1842 = vmatpush1.bf16.msra.mxu0 0
        %1843 = vmatprep.subr.bf16.mxu0 0
        %1844 = vmatpush1.bf16.msra.mxu0 0
        %1845 = vmatprep.subr.bf16.mxu0 0
        %1846 = vmatpush1.bf16.msra.mxu0 0
        %1847 = vmatprep.mubr.bf16.mxu0 0
        %1848 = vmatmul.mubr.bf16.gmra.mrb[0].mxu0 %v1123
        %v1849 = vpop.f32.mrb[0].mxu0
        %v1850 = vadd.f32 0.0, %v1849
        %v1851 = vpop.f32.mrb[0].mxu0
        %v1852 = vpop.f32.mrb[0].mxu0
        %v1853 = vpop.f32.mrb[0].mxu0
        %1854 = vdwg.mxu0
        %s1855 = scalar_lea.vmem [#allocation20], 32
        %v1856 = vld [vmem:[%s1855] sm:$0xf]
        %v1857 = vld [vmem:[%s1855 + $0x4] sm:$0xf]
        %v1858 = vld [vmem:[%s1855 + $0x8] sm:$0xf]
        %v1859 = vld [vmem:[%s1855 + $0xc] sm:$0xf]
        %v1864 = vunpack.c.l.b16 %v1856
        %v1865 = vunpack.c.l.b16 %v1857
        %v1866 = vunpack.c.l.b16 %v1858
        %v1867 = vunpack.c.l.b16 %v1859
        %v1868 = vpack.c.b16 %v1865, %v1864
        %v1869 = vpack.c.b16 %v1867, %v1866
        %1872 = vmatprep.subr.bf16.mxu0 0
        %1873 = vmatpush1.bf16.msra.mxu0 %v1868
        %1874 = vmatprep.subr.bf16.mxu0 0
        %1875 = vmatpush1.bf16.msra.mxu0 %v1869
        %1876 = vmatprep.subr.bf16.mxu0 0
        %1877 = vmatpush1.bf16.msra.mxu0 0
        %1878 = vmatprep.subr.bf16.mxu0 0
        %1879 = vmatpush1.bf16.msra.mxu0 0
        %1880 = vmatprep.subr.bf16.mxu0 0
        %1881 = vmatpush1.bf16.msra.mxu0 0
        %1882 = vmatprep.subr.bf16.mxu0 0
        %1883 = vmatpush1.bf16.msra.mxu0 0
        %1884 = vmatprep.subr.bf16.mxu0 0
        %1885 = vmatpush1.bf16.msra.mxu0 0
        %1886 = vmatprep.subr.bf16.mxu0 0
        %1887 = vmatpush1.bf16.msra.mxu0 0
        %1888 = vmatprep.subr.bf16.mxu0 0
        %1889 = vmatpush1.bf16.msra.mxu0 0
        %1890 = vmatprep.subr.bf16.mxu0 0
        %1891 = vmatpush1.bf16.msra.mxu0 0
        %1892 = vmatprep.subr.bf16.mxu0 0
        %1893 = vmatpush1.bf16.msra.mxu0 0
        %1894 = vmatprep.subr.bf16.mxu0 0
        %1895 = vmatpush1.bf16.msra.mxu0 0
        %1896 = vmatprep.subr.bf16.mxu0 0
        %1897 = vmatpush1.bf16.msra.mxu0 0
        %1898 = vmatprep.subr.bf16.mxu0 0
        %1899 = vmatpush1.bf16.msra.mxu0 0
        %1900 = vmatprep.subr.bf16.mxu0 0
        %1901 = vmatpush1.bf16.msra.mxu0 0
        %1902 = vmatprep.subr.bf16.mxu0 0
        %1903 = vmatpush1.bf16.msra.mxu0 0
        %1904 = vmatprep.mubr.bf16.mxu0 0
        %1905 = vmatmul.mubr.bf16.gmra.mrb[0].mxu0 %v1123
        %v1906 = vpop.f32.mrb[0].mxu0
        %v1907 = vadd.f32 0.0, %v1906
        %v1908 = vpop.f32.mrb[0].mxu0
        %v1909 = vpop.f32.mrb[0].mxu0
        %v1910 = vpop.f32.mrb[0].mxu0
        %1911 = vdwg.mxu0
        %v1912 = vpack.c.bf16 %v1795, %v1792
        %v1913 = vpack.c.bf16 %v1850, %v1850
        %v1915 = vsel %vm1229, %v1912, 0
        %v1918 = vsel %vm1229, %v1913, 0
        %1920 = vmatprep.subr.bf16.mxu0 0
        %1921 = vmatpush1.bf16.xpose.msra.mxu0 %v1918
        %1922 = vmatprep.subr.bf16.mxu0 0
        %1923 = vmatpush1.bf16.xpose.msra.mxu0 0
        %1924 = vmatprep.subr.bf16.mxu0 0
        %1925 = vmatpush1.bf16.xpose.msra.mxu0 0
        %1926 = vmatprep.subr.bf16.mxu0 0
        %1927 = vmatpush1.bf16.xpose.msra.mxu0 0
        %1928 = vmatprep.subr.bf16.mxu0 0
        %1929 = vmatpush1.bf16.xpose.msra.mxu0 0
        %1930 = vmatprep.subr.bf16.mxu0 0
        %1931 = vmatpush1.bf16.xpose.msra.mxu0 0
        %1932 = vmatprep.subr.bf16.mxu0 0
        %1933 = vmatpush1.bf16.xpose.msra.mxu0 0
        %1934 = vmatprep.subr.bf16.mxu0 0
        %1935 = vmatpush1.bf16.xpose.msra.mxu0 0
        %1936 = vmatprep.subr.bf16.mxu0 0
        %1937 = vmatpush1.bf16.xpose.msra.mxu0 0
        %1938 = vmatprep.subr.bf16.mxu0 0
        %1939 = vmatpush1.bf16.xpose.msra.mxu0 0
        %1940 = vmatprep.subr.bf16.mxu0 0
        %1941 = vmatpush1.bf16.xpose.msra.mxu0 0
        %1942 = vmatprep.subr.bf16.mxu0 0
        %1943 = vmatpush1.bf16.xpose.msra.mxu0 0
        %1944 = vmatprep.subr.bf16.mxu0 0
        %1945 = vmatpush1.bf16.xpose.msra.mxu0 0
        %1946 = vmatprep.subr.bf16.mxu0 0
        %1947 = vmatpush1.bf16.xpose.msra.mxu0 0
        %1948 = vmatprep.subr.bf16.mxu0 0
        %1949 = vmatpush1.bf16.xpose.msra.mxu0 0
        %1950 = vmatprep.subr.bf16.mxu0 0
        %1951 = vmatpush1.bf16.xpose.msra.mxu0 0
        %1952 = vmatprep.mubr.bf16.mxu0 0
        %1953 = vmatmul.mubr.bf16.gmra.mrb[0].mxu0 %v1915
        %v1954 = vpop.f32.mrb[0].mxu0
        %v1955 = vadd.f32 %v1227, %v1954
        %v1956 = vpop.f32.mrb[0].mxu0
        %v1957 = vpop.f32.mrb[0].mxu0
        %v1958 = vadd.f32 %v1227, %v1957
        %v1959 = vpop.f32.mrb[0].mxu0
        %1960 = vdwg.mxu0
        %v1961 = vsel %vm1229, %v1955, -inf
        %1962 = vmax.xlane.f32.xlu0 %v1961
        %v1963 = vpop.xlane.xlu0 %1962
        %v1964 = vsel %vm1229, %v1958, -inf
        %1965 = vmax.xlane.f32.xlu0 %v1964
        %v1966 = vpop.xlane.xlu0 %1965
        %v1967 = vsub.f32 %v1955, %v1963
        %v1968 = vsub.f32 %v1958, %v1966
        %v1969 = vmul.f32 %v1967, 1.442695
        %v1970 = vpow.pop %v1969
        %v1971 = vmul.f32 %v1968, 1.442695
        %v1972 = vpow.pop %v1971
        %v1973 = vsel %vm1229, %v1970, 0.0
        %1974 = vadd.xlane.f32.xlu0 %v1973
        %v1975 = vpop.xlane.xlu0 %1974
        %v1976 = vsel %vm1229, %v1972, 0.0
        %1977 = vadd.xlane.f32.xlu0 %v1976
        %v1978 = vpop.xlane.xlu0 %1977
        %v1979 = vrcp.pop %v1975
        %v1980 = vrcp.pop %v1978
        %v1981 = vpack.c.bf16 %v1972, %v1970
        %v1982 = vpack.c.bf16 %v1907, %v1907
        %v1984 = vsel %vm1229, %v1981, 0
        %v1987 = vsel %vm1302, %v1982, 0
        %1989 = vmatprep.subr.bf16.mxu0 0
        %1990 = vmatpush1.bf16.msra.mxu0 %v1987
        %1991 = vmatprep.subr.bf16.mxu0 0
        %1992 = vmatpush1.bf16.msra.mxu0 0
        %1993 = vmatprep.subr.bf16.mxu0 0
        %1994 = vmatpush1.bf16.msra.mxu0 0
        %1995 = vmatprep.subr.bf16.mxu0 0
        %1996 = vmatpush1.bf16.msra.mxu0 0
        %1997 = vmatprep.subr.bf16.mxu0 0
        %1998 = vmatpush1.bf16.msra.mxu0 0
        %1999 = vmatprep.subr.bf16.mxu0 0
        %2000 = vmatpush1.bf16.msra.mxu0 0
        %2001 = vmatprep.subr.bf16.mxu0 0
        %2002 = vmatpush1.bf16.msra.mxu0 0
        %2003 = vmatprep.subr.bf16.mxu0 0
        %2004 = vmatpush1.bf16.msra.mxu0 0
        %2005 = vmatprep.subr.bf16.mxu0 0
        %2006 = vmatpush1.bf16.msra.mxu0 0
        %2007 = vmatprep.subr.bf16.mxu0 0
        %2008 = vmatpush1.bf16.msra.mxu0 0
        %2009 = vmatprep.subr.bf16.mxu0 0
        %2010 = vmatpush1.bf16.msra.mxu0 0
        %2011 = vmatprep.subr.bf16.mxu0 0
        %2012 = vmatpush1.bf16.msra.mxu0 0
        %2013 = vmatprep.subr.bf16.mxu0 0
        %2014 = vmatpush1.bf16.msra.mxu0 0
        %2015 = vmatprep.subr.bf16.mxu0 0
        %2016 = vmatpush1.bf16.msra.mxu0 0
        %2017 = vmatprep.subr.bf16.mxu0 0
        %2018 = vmatpush1.bf16.msra.mxu0 0
        %2019 = vmatprep.subr.bf16.mxu0 0
        %2020 = vmatpush1.bf16.msra.mxu0 0
        %2021 = vmatprep.mubr.bf16.mxu0 0
        %2022 = vmatmul.mubr.bf16.gmra.mrb[0].mxu0 %v1984
        %v2023 = vpop.f32.mrb[0].mxu0
        %v2024 = vadd.f32 0.0, %v2023
        %v2025 = vpop.f32.mrb[0].mxu0
        %v2026 = vpop.f32.mrb[0].mxu0
        %v2027 = vadd.f32 0.0, %v2026
        %v2028 = vpop.f32.mrb[0].mxu0
        %2029 = vdwg.mxu0
        %v2030 = vmul.f32 %v2024, %v1979
        %v2031 = vmul.f32 %v2027, %v1980
        %v2032 = vpack.c.bf16 %v2031, %v2030
        %s2033 = scalar_lea.vmem [#allocation22], 8
        %v2034 = vld [vmem:[%s2033] sm:$0xf]
        %v2036 = vsel %vm1229, %v2032, 0
        %v2039 = vsel %vm1302, %v2034, 0
        %2041 = vmatprep.subr.bf16.mxu0 0
        %2042 = vmatpush1.bf16.msra.mxu0 %v2039
        %2043 = vmatprep.subr.bf16.mxu0 0
        %2044 = vmatpush1.bf16.msra.mxu0 0
        %2045 = vmatprep.subr.bf16.mxu0 0
        %2046 = vmatpush1.bf16.msra.mxu0 0
        %2047 = vmatprep.subr.bf16.mxu0 0
        %2048 = vmatpush1.bf16.msra.mxu0 0
        %2049 = vmatprep.subr.bf16.mxu0 0
        %2050 = vmatpush1.bf16.msra.mxu0 0
        %2051 = vmatprep.subr.bf16.mxu0 0
        %2052 = vmatpush1.bf16.msra.mxu0 0
        %2053 = vmatprep.subr.bf16.mxu0 0
        %2054 = vmatpush1.bf16.msra.mxu0 0
        %2055 = vmatprep.subr.bf16.mxu0 0
        %2056 = vmatpush1.bf16.msra.mxu0 0
        %2057 = vmatprep.subr.bf16.mxu0 0
        %2058 = vmatpush1.bf16.msra.mxu0 0
        %2059 = vmatprep.subr.bf16.mxu0 0
        %2060 = vmatpush1.bf16.msra.mxu0 0
        %2061 = vmatprep.subr.bf16.mxu0 0
        %2062 = vmatpush1.bf16.msra.mxu0 0
        %2063 = vmatprep.subr.bf16.mxu0 0
        %2064 = vmatpush1.bf16.msra.mxu0 0
        %2065 = vmatprep.subr.bf16.mxu0 0
        %2066 = vmatpush1.bf16.msra.mxu0 0
        %2067 = vmatprep.subr.bf16.mxu0 0
        %2068 = vmatpush1.bf16.msra.mxu0 0
        %2069 = vmatprep.subr.bf16.mxu0 0
        %2070 = vmatpush1.bf16.msra.mxu0 0
        %2071 = vmatprep.subr.bf16.mxu0 0
        %2072 = vmatpush1.bf16.msra.mxu0 0
        %2073 = vmatprep.mubr.bf16.mxu0 0
        %2074 = vmatmul.mubr.bf16.gmra.mrb[0].mxu0 %v2036
        %v2075 = vpop.f32.mrb[0].mxu0
        %v2076 = vadd.f32 0.0, %v2075
        %v2077 = vpop.f32.mrb[0].mxu0
        %v2078 = vpop.f32.mrb[0].mxu0
        %v2079 = vadd.f32 0.0, %v2078
        %v2080 = vpop.f32.mrb[0].mxu0
        %2081 = vdwg.mxu0
        %v2082 = vadd.f32 %v1734, %v2076
        %v2083 = vadd.f32 %v1737, %v2079
        %s2084 = scalar_lea.vmem [#allocation17], 48
        %v2085 = vld [vmem:[%s2084] sm:$0xf]
        %v2086 = vld [vmem:[%s2084 + $0x4] sm:$0xf]
        %v2087 = vld [vmem:[%s2084 + $0x8] sm:$0xf]
        %v2088 = vld [vmem:[%s2084 + $0xc] sm:$0xf]
        %v2093 = vunpack.c.l.b16 %v2085
        %v2094 = vunpack.c.l.b16 %v2086
        %v2095 = vunpack.c.l.b16 %v2087
        %v2096 = vunpack.c.l.b16 %v2088
        %v2097 = vpack.c.b16 %v2094, %v2093
        %v2098 = vpack.c.b16 %v2096, %v2095
        %2101 = vmatprep.subr.bf16.mxu0 0
        %2102 = vmatpush1.bf16.msra.mxu0 %v2097
        %2103 = vmatprep.subr.bf16.mxu0 0
        %2104 = vmatpush1.bf16.msra.mxu0 %v2098
        %2105 = vmatprep.subr.bf16.mxu0 0
        %2106 = vmatpush1.bf16.msra.mxu0 0
        %2107 = vmatprep.subr.bf16.mxu0 0
        %2108 = vmatpush1.bf16.msra.mxu0 0
        %2109 = vmatprep.subr.bf16.mxu0 0
        %2110 = vmatpush1.bf16.msra.mxu0 0
        %2111 = vmatprep.subr.bf16.mxu0 0
        %2112 = vmatpush1.bf16.msra.mxu0 0
        %2113 = vmatprep.subr.bf16.mxu0 0
        %2114 = vmatpush1.bf16.msra.mxu0 0
        %2115 = vmatprep.subr.bf16.mxu0 0
        %2116 = vmatpush1.bf16.msra.mxu0 0
        %2117 = vmatprep.subr.bf16.mxu0 0
        %2118 = vmatpush1.bf16.msra.mxu0 0
        %2119 = vmatprep.subr.bf16.mxu0 0
        %2120 = vmatpush1.bf16.msra.mxu0 0
        %2121 = vmatprep.subr.bf16.mxu0 0
        %2122 = vmatpush1.bf16.msra.mxu0 0
        %2123 = vmatprep.subr.bf16.mxu0 0
        %2124 = vmatpush1.bf16.msra.mxu0 0
        %2125 = vmatprep.subr.bf16.mxu0 0
        %2126 = vmatpush1.bf16.msra.mxu0 0
        %2127 = vmatprep.subr.bf16.mxu0 0
        %2128 = vmatpush1.bf16.msra.mxu0 0
        %2129 = vmatprep.subr.bf16.mxu0 0
        %2130 = vmatpush1.bf16.msra.mxu0 0
        %2131 = vmatprep.subr.bf16.mxu0 0
        %2132 = vmatpush1.bf16.msra.mxu0 0
        %2133 = vmatprep.mubr.bf16.mxu0 0
        %2134 = vmatmul.mubr.bf16.gmra.mrb[0].mxu0 %v1063
        %v2135 = vpop.f32.mrb[0].mxu0
        %v2136 = vadd.f32 0.0, %v2135
        %v2137 = vpop.f32.mrb[0].mxu0
        %v2138 = vpop.f32.mrb[0].mxu0
        %v2139 = vadd.f32 0.0, %v2138
        %v2140 = vpop.f32.mrb[0].mxu0
        %2141 = vdwg.mxu0
        %s2142 = scalar_lea.vmem [#allocation19], 48
        %v2143 = vld [vmem:[%s2142] sm:$0xf]
        %v2144 = vld [vmem:[%s2142 + $0x4] sm:$0xf]
        %v2145 = vld [vmem:[%s2142 + $0x8] sm:$0xf]
        %v2146 = vld [vmem:[%s2142 + $0xc] sm:$0xf]
        %v2151 = vunpack.c.l.b16 %v2143
        %v2152 = vunpack.c.l.b16 %v2144
        %v2153 = vunpack.c.l.b16 %v2145
        %v2154 = vunpack.c.l.b16 %v2146
        %v2155 = vpack.c.b16 %v2152, %v2151
        %v2156 = vpack.c.b16 %v2154, %v2153
        %2159 = vmatprep.subr.bf16.mxu0 0
        %2160 = vmatpush1.bf16.msra.mxu0 %v2155
        %2161 = vmatprep.subr.bf16.mxu0 0
        %2162 = vmatpush1.bf16.msra.mxu0 %v2156
        %2163 = vmatprep.subr.bf16.mxu0 0
        %2164 = vmatpush1.bf16.msra.mxu0 0
        %2165 = vmatprep.subr.bf16.mxu0 0
        %2166 = vmatpush1.bf16.msra.mxu0 0
        %2167 = vmatprep.subr.bf16.mxu0 0
        %2168 = vmatpush1.bf16.msra.mxu0 0
        %2169 = vmatprep.subr.bf16.mxu0 0
        %2170 = vmatpush1.bf16.msra.mxu0 0
        %2171 = vmatprep.subr.bf16.mxu0 0
        %2172 = vmatpush1.bf16.msra.mxu0 0
        %2173 = vmatprep.subr.bf16.mxu0 0
        %2174 = vmatpush1.bf16.msra.mxu0 0
        %2175 = vmatprep.subr.bf16.mxu0 0
        %2176 = vmatpush1.bf16.msra.mxu0 0
        %2177 = vmatprep.subr.bf16.mxu0 0
        %2178 = vmatpush1.bf16.msra.mxu0 0
        %2179 = vmatprep.subr.bf16.mxu0 0
        %2180 = vmatpush1.bf16.msra.mxu0 0
        %2181 = vmatprep.subr.bf16.mxu0 0
        %2182 = vmatpush1.bf16.msra.mxu0 0
        %2183 = vmatprep.subr.bf16.mxu0 0
        %2184 = vmatpush1.bf16.msra.mxu0 0
        %2185 = vmatprep.subr.bf16.mxu0 0
        %2186 = vmatpush1.bf16.msra.mxu0 0
        %2187 = vmatprep.subr.bf16.mxu0 0
        %2188 = vmatpush1.bf16.msra.mxu0 0
        %2189 = vmatprep.subr.bf16.mxu0 0
        %2190 = vmatpush1.bf16.msra.mxu0 0
        %2191 = vmatprep.mubr.bf16.mxu0 0
        %2192 = vmatmul.mubr.bf16.gmra.mrb[0].mxu0 %v1123
        %v2193 = vpop.f32.mrb[0].mxu0
        %v2194 = vadd.f32 0.0, %v2193
        %v2195 = vpop.f32.mrb[0].mxu0
        %v2196 = vpop.f32.mrb[0].mxu0
        %v2197 = vpop.f32.mrb[0].mxu0
        %2198 = vdwg.mxu0
        %s2199 = scalar_lea.vmem [#allocation20], 48
        %v2200 = vld [vmem:[%s2199] sm:$0xf]
        %v2201 = vld [vmem:[%s2199 + $0x4] sm:$0xf]
        %v2202 = vld [vmem:[%s2199 + $0x8] sm:$0xf]
        %v2203 = vld [vmem:[%s2199 + $0xc] sm:$0xf]
        %v2208 = vunpack.c.l.b16 %v2200
        %v2209 = vunpack.c.l.b16 %v2201
        %v2210 = vunpack.c.l.b16 %v2202
        %v2211 = vunpack.c.l.b16 %v2203
        %v2212 = vpack.c.b16 %v2209, %v2208
        %v2213 = vpack.c.b16 %v2211, %v2210
        %2216 = vmatprep.subr.bf16.mxu0 0
        %2217 = vmatpush1.bf16.msra.mxu0 %v2212
        %2218 = vmatprep.subr.bf16.mxu0 0
        %2219 = vmatpush1.bf16.msra.mxu0 %v2213
        %2220 = vmatprep.subr.bf16.mxu0 0
        %2221 = vmatpush1.bf16.msra.mxu0 0
        %2222 = vmatprep.subr.bf16.mxu0 0
        %2223 = vmatpush1.bf16.msra.mxu0 0
        %2224 = vmatprep.subr.bf16.mxu0 0
        %2225 = vmatpush1.bf16.msra.mxu0 0
        %2226 = vmatprep.subr.bf16.mxu0 0
        %2227 = vmatpush1.bf16.msra.mxu0 0
        %2228 = vmatprep.subr.bf16.mxu0 0
        %2229 = vmatpush1.bf16.msra.mxu0 0
        %2230 = vmatprep.subr.bf16.mxu0 0
        %2231 = vmatpush1.bf16.msra.mxu0 0
        %2232 = vmatprep.subr.bf16.mxu0 0
        %2233 = vmatpush1.bf16.msra.mxu0 0
        %2234 = vmatprep.subr.bf16.mxu0 0
        %2235 = vmatpush1.bf16.msra.mxu0 0
        %2236 = vmatprep.subr.bf16.mxu0 0
        %2237 = vmatpush1.bf16.msra.mxu0 0
        %2238 = vmatprep.subr.bf16.mxu0 0
        %2239 = vmatpush1.bf16.msra.mxu0 0
        %2240 = vmatprep.subr.bf16.mxu0 0
        %2241 = vmatpush1.bf16.msra.mxu0 0
        %2242 = vmatprep.subr.bf16.mxu0 0
        %2243 = vmatpush1.bf16.msra.mxu0 0
        %2244 = vmatprep.subr.bf16.mxu0 0
        %2245 = vmatpush1.bf16.msra.mxu0 0
        %2246 = vmatprep.subr.bf16.mxu0 0
        %2247 = vmatpush1.bf16.msra.mxu0 0
        %2248 = vmatprep.mubr.bf16.mxu0 0
        %2249 = vmatmul.mubr.bf16.gmra.mrb[0].mxu0 %v1123
        %v2250 = vpop.f32.mrb[0].mxu0
        %v2251 = vadd.f32 0.0, %v2250
        %v2252 = vpop.f32.mrb[0].mxu0
        %v2253 = vpop.f32.mrb[0].mxu0
        %v2254 = vpop.f32.mrb[0].mxu0
        %2255 = vdwg.mxu0
        %v2256 = vpack.c.bf16 %v2139, %v2136
        %v2257 = vpack.c.bf16 %v2194, %v2194
        %v2259 = vsel %vm1229, %v2256, 0
        %v2262 = vsel %vm1229, %v2257, 0
        %2264 = vmatprep.subr.bf16.mxu0 0
        %2265 = vmatpush1.bf16.xpose.msra.mxu0 %v2262
        %2266 = vmatprep.subr.bf16.mxu0 0
        %2267 = vmatpush1.bf16.xpose.msra.mxu0 0
        %2268 = vmatprep.subr.bf16.mxu0 0
        %2269 = vmatpush1.bf16.xpose.msra.mxu0 0
        %2270 = vmatprep.subr.bf16.mxu0 0
        %2271 = vmatpush1.bf16.xpose.msra.mxu0 0
        %2272 = vmatprep.subr.bf16.mxu0 0
        %2273 = vmatpush1.bf16.xpose.msra.mxu0 0
        %2274 = vmatprep.subr.bf16.mxu0 0
        %2275 = vmatpush1.bf16.xpose.msra.mxu0 0
        %2276 = vmatprep.subr.bf16.mxu0 0
        %2277 = vmatpush1.bf16.xpose.msra.mxu0 0
        %2278 = vmatprep.subr.bf16.mxu0 0
        %2279 = vmatpush1.bf16.xpose.msra.mxu0 0
        %2280 = vmatprep.subr.bf16.mxu0 0
        %2281 = vmatpush1.bf16.xpose.msra.mxu0 0
        %2282 = vmatprep.subr.bf16.mxu0 0
        %2283 = vmatpush1.bf16.xpose.msra.mxu0 0
        %2284 = vmatprep.subr.bf16.mxu0 0
        %2285 = vmatpush1.bf16.xpose.msra.mxu0 0
        %2286 = vmatprep.subr.bf16.mxu0 0
        %2287 = vmatpush1.bf16.xpose.msra.mxu0 0
        %2288 = vmatprep.subr.bf16.mxu0 0
        %2289 = vmatpush1.bf16.xpose.msra.mxu0 0
        %2290 = vmatprep.subr.bf16.mxu0 0
        %2291 = vmatpush1.bf16.xpose.msra.mxu0 0
        %2292 = vmatprep.subr.bf16.mxu0 0
        %2293 = vmatpush1.bf16.xpose.msra.mxu0 0
        %2294 = vmatprep.subr.bf16.mxu0 0
        %2295 = vmatpush1.bf16.xpose.msra.mxu0 0
        %2296 = vmatprep.mubr.bf16.mxu0 0
        %2297 = vmatmul.mubr.bf16.gmra.mrb[0].mxu0 %v2259
        %v2298 = vpop.f32.mrb[0].mxu0
        %v2299 = vadd.f32 %v1227, %v2298
        %v2300 = vpop.f32.mrb[0].mxu0
        %v2301 = vpop.f32.mrb[0].mxu0
        %v2302 = vadd.f32 %v1227, %v2301
        %v2303 = vpop.f32.mrb[0].mxu0
        %2304 = vdwg.mxu0
        %v2305 = vsel %vm1229, %v2299, -inf
        %2306 = vmax.xlane.f32.xlu0 %v2305
        %v2307 = vpop.xlane.xlu0 %2306
        %v2308 = vsel %vm1229, %v2302, -inf
        %2309 = vmax.xlane.f32.xlu0 %v2308
        %v2310 = vpop.xlane.xlu0 %2309
        %v2311 = vsub.f32 %v2299, %v2307
        %v2312 = vsub.f32 %v2302, %v2310
        %v2313 = vmul.f32 %v2311, 1.442695
        %v2314 = vpow.pop %v2313
        %v2315 = vmul.f32 %v2312, 1.442695
        %v2316 = vpow.pop %v2315
        %v2317 = vsel %vm1229, %v2314, 0.0
        %2318 = vadd.xlane.f32.xlu0 %v2317
        %v2319 = vpop.xlane.xlu0 %2318
        %v2320 = vsel %vm1229, %v2316, 0.0
        %2321 = vadd.xlane.f32.xlu0 %v2320
        %v2322 = vpop.xlane.xlu0 %2321
        %v2323 = vrcp.pop %v2319
        %v2324 = vrcp.pop %v2322
        %v2325 = vpack.c.bf16 %v2316, %v2314
        %v2326 = vpack.c.bf16 %v2251, %v2251
        %v2328 = vsel %vm1229, %v2325, 0
        %v2331 = vsel %vm1302, %v2326, 0
        %2333 = vmatprep.subr.bf16.mxu0 0
        %2334 = vmatpush1.bf16.msra.mxu0 %v2331
        %2335 = vmatprep.subr.bf16.mxu0 0
        %2336 = vmatpush1.bf16.msra.mxu0 0
        %2337 = vmatprep.subr.bf16.mxu0 0
        %2338 = vmatpush1.bf16.msra.mxu0 0
        %2339 = vmatprep.subr.bf16.mxu0 0
        %2340 = vmatpush1.bf16.msra.mxu0 0
        %2341 = vmatprep.subr.bf16.mxu0 0
        %2342 = vmatpush1.bf16.msra.mxu0 0
        %2343 = vmatprep.subr.bf16.mxu0 0
        %2344 = vmatpush1.bf16.msra.mxu0 0
        %2345 = vmatprep.subr.bf16.mxu0 0
        %2346 = vmatpush1.bf16.msra.mxu0 0
        %2347 = vmatprep.subr.bf16.mxu0 0
        %2348 = vmatpush1.bf16.msra.mxu0 0
        %2349 = vmatprep.subr.bf16.mxu0 0
        %2350 = vmatpush1.bf16.msra.mxu0 0
        %2351 = vmatprep.subr.bf16.mxu0 0
        %2352 = vmatpush1.bf16.msra.mxu0 0
        %2353 = vmatprep.subr.bf16.mxu0 0
        %2354 = vmatpush1.bf16.msra.mxu0 0
        %2355 = vmatprep.subr.bf16.mxu0 0
        %2356 = vmatpush1.bf16.msra.mxu0 0
        %2357 = vmatprep.subr.bf16.mxu0 0
        %2358 = vmatpush1.bf16.msra.mxu0 0
        %2359 = vmatprep.subr.bf16.mxu0 0
        %2360 = vmatpush1.bf16.msra.mxu0 0
        %2361 = vmatprep.subr.bf16.mxu0 0
        %2362 = vmatpush1.bf16.msra.mxu0 0
        %2363 = vmatprep.subr.bf16.mxu0 0
        %2364 = vmatpush1.bf16.msra.mxu0 0
        %2365 = vmatprep.mubr.bf16.mxu0 0
        %2366 = vmatmul.mubr.bf16.gmra.mrb[0].mxu0 %v2328
        %v2367 = vpop.f32.mrb[0].mxu0
        %v2368 = vadd.f32 0.0, %v2367
        %v2369 = vpop.f32.mrb[0].mxu0
        %v2370 = vpop.f32.mrb[0].mxu0
        %v2371 = vadd.f32 0.0, %v2370
        %v2372 = vpop.f32.mrb[0].mxu0
        %2373 = vdwg.mxu0
        %v2374 = vmul.f32 %v2368, %v2323
        %v2375 = vmul.f32 %v2371, %v2324
        %v2376 = vpack.c.bf16 %v2375, %v2374
        %s2377 = scalar_lea.vmem [#allocation22], 12
        %v2378 = vld [vmem:[%s2377] sm:$0xf]
        %v2380 = vsel %vm1229, %v2376, 0
        %v2383 = vsel %vm1302, %v2378, 0
        %2385 = vmatprep.subr.bf16.mxu0 0
        %2386 = vmatpush1.bf16.msra.mxu0 %v2383
        %2387 = vmatprep.subr.bf16.mxu0 0
        %2388 = vmatpush1.bf16.msra.mxu0 0
        %2389 = vmatprep.subr.bf16.mxu0 0
        %2390 = vmatpush1.bf16.msra.mxu0 0
        %2391 = vmatprep.subr.bf16.mxu0 0
        %2392 = vmatpush1.bf16.msra.mxu0 0
        %2393 = vmatprep.subr.bf16.mxu0 0
        %2394 = vmatpush1.bf16.msra.mxu0 0
        %2395 = vmatprep.subr.bf16.mxu0 0
        %2396 = vmatpush1.bf16.msra.mxu0 0
        %2397 = vmatprep.subr.bf16.mxu0 0
        %2398 = vmatpush1.bf16.msra.mxu0 0
        %2399 = vmatprep.subr.bf16.mxu0 0
        %2400 = vmatpush1.bf16.msra.mxu0 0
        %2401 = vmatprep.subr.bf16.mxu0 0
        %2402 = vmatpush1.bf16.msra.mxu0 0
        %2403 = vmatprep.subr.bf16.mxu0 0
        %2404 = vmatpush1.bf16.msra.mxu0 0
        %2405 = vmatprep.subr.bf16.mxu0 0
        %2406 = vmatpush1.bf16.msra.mxu0 0
        %2407 = vmatprep.subr.bf16.mxu0 0
        %2408 = vmatpush1.bf16.msra.mxu0 0
        %2409 = vmatprep.subr.bf16.mxu0 0
        %2410 = vmatpush1.bf16.msra.mxu0 0
        %2411 = vmatprep.subr.bf16.mxu0 0
        %2412 = vmatpush1.bf16.msra.mxu0 0
        %2413 = vmatprep.subr.bf16.mxu0 0
        %2414 = vmatpush1.bf16.msra.mxu0 0
        %2415 = vmatprep.subr.bf16.mxu0 0
        %2416 = vmatpush1.bf16.msra.mxu0 0
        %2417 = vmatprep.mubr.bf16.mxu0 0
        %2418 = vmatmul.mubr.bf16.gmra.mrb[0].mxu0 %v2380
        %v2419 = vpop.f32.mrb[0].mxu0
        %v2420 = vadd.f32 0.0, %v2419
        %v2421 = vpop.f32.mrb[0].mxu0
        %v2422 = vpop.f32.mrb[0].mxu0
        %v2423 = vadd.f32 0.0, %v2422
        %v2424 = vpop.f32.mrb[0].mxu0
        %2425 = vdwg.mxu0
        %v2426 = vadd.f32 %v2082, %v2420
        %v2427 = vadd.f32 %v2083, %v2423
        %v2428 = vld [vmem:[#allocation23] sm:$0x1]
        %v2430 = vlaneseq
        %v2431 = vshrl.u32 %v2430, 7
        %v2432 = vsub.s32 0, %v2431
        %v2433 = vrot.slane %v2428, %v2432
        %v2435 = vadd.f32 %v2426, %v2433
        %v2436 = vadd.f32 %v2427, %v2433
        %2437 = vst.msk [vmem:[%s935] sm:$0xff] %vm971, %v2435
        %2438 = vst.msk [vmem:[%s935 + $0x8] sm:$0xff] %vm971, %v2436
        %v2439 = vld [vmem:[#allocation14] sm:$0x1]
        %v2440 = vld [vmem:[#allocation16] sm:$0x1]
        %v2441 = vsel %vm971, %v2435, 0.0
        %2442 = vadd.xlane.f32.xlu0 %v2441
        %v2443 = vpop.xlane.xlu0 %2442
        %v2444 = vsel %vm971, %v2436, 0.0
        %2445 = vadd.xlane.f32.xlu0 %v2444
        %v2446 = vpop.xlane.xlu0 %2445
        %v2447 = vmul.f32 %v2443, %v978
        %v2448 = vmul.f32 %v2446, %v978
        %v2449 = vsub.f32 %v2435, %v2447
        %v2450 = vsub.f32 %v2436, %v2448
        %v2451 = vmul.f32 %v2449, %v2449
        %v2452 = vmul.f32 %v2450, %v2450
        %v2453 = vsel %vm971, %v2451, 0.0
        %2454 = vadd.xlane.f32.xlu0 %v2453
        %v2455 = vpop.xlane.xlu0 %2454
        %v2456 = vsel %vm971, %v2452, 0.0
        %2457 = vadd.xlane.f32.xlu0 %v2456
        %v2458 = vpop.xlane.xlu0 %2457
        %v2459 = vmul.f32 %v2455, %v978
        %v2460 = vmul.f32 %v2458, %v978
        %v2461 = vadd.f32 %v2459, 1e-05
        %v2462 = vadd.f32 %v2460, 1e-05
        %v2463 = vrsqrt.pop %v2461
        %v2464 = vrsqrt.pop %v2462
        %v2465 = vmul.f32 %v2449, %v2463
        %v2466 = vmul.f32 %v2450, %v2464
        %v2468 = vlaneseq
        %v2469 = vshrl.u32 %v2468, 7
        %v2470 = vsub.s32 0, %v2469
        %v2471 = vrot.slane %v2439, %v2470
        %v2473 = vmul.f32 %v2465, %v2471
        %v2474 = vmul.f32 %v2466, %v2471
        %v2476 = vlaneseq
        %v2477 = vshrl.u32 %v2476, 7
        %v2478 = vsub.s32 0, %v2477
        %v2479 = vrot.slane %v2440, %v2478
        %v2481 = vadd.f32 %v2473, %v2479
        %v2482 = vadd.f32 %v2474, %v2479
        %v2483 = vpack.c.bf16 %v2482, %v2481
        %v2484 = vld [vmem:[#allocation25] sm:$0xf]
        %v2485 = vld [vmem:[#allocation25 + $0x4] sm:$0xf]
        %v2486 = vld [vmem:[#allocation25 + $0x8] sm:$0xf]
        %v2487 = vld [vmem:[#allocation25 + $0xc] sm:$0xf]
        %v2492 = vunpack.c.l.b16 %v2484
        %v2493 = vunpack.c.l.b16 %v2485
        %v2494 = vunpack.c.l.b16 %v2486
        %v2495 = vunpack.c.l.b16 %v2487
        %v2496 = vpack.c.b16 %v2493, %v2492
        %v2497 = vpack.c.b16 %v2495, %v2494
        %v2501 = vsel %vm971, %v2483, 0
        %2503 = vmatprep.subr.bf16.mxu0 0
        %2504 = vmatpush1.bf16.msra.mxu0 %v2496
        %2505 = vmatprep.subr.bf16.mxu0 0
        %2506 = vmatpush1.bf16.msra.mxu0 %v2497
        %2507 = vmatprep.subr.bf16.mxu0 0
        %2508 = vmatpush1.bf16.msra.mxu0 0
        %2509 = vmatprep.subr.bf16.mxu0 0
        %2510 = vmatpush1.bf16.msra.mxu0 0
        %2511 = vmatprep.subr.bf16.mxu0 0
        %2512 = vmatpush1.bf16.msra.mxu0 0
        %2513 = vmatprep.subr.bf16.mxu0 0
        %2514 = vmatpush1.bf16.msra.mxu0 0
        %2515 = vmatprep.subr.bf16.mxu0 0
        %2516 = vmatpush1.bf16.msra.mxu0 0
        %2517 = vmatprep.subr.bf16.mxu0 0
        %2518 = vmatpush1.bf16.msra.mxu0 0
        %2519 = vmatprep.subr.bf16.mxu0 0
        %2520 = vmatpush1.bf16.msra.mxu0 0
        %2521 = vmatprep.subr.bf16.mxu0 0
        %2522 = vmatpush1.bf16.msra.mxu0 0
        %2523 = vmatprep.subr.bf16.mxu0 0
        %2524 = vmatpush1.bf16.msra.mxu0 0
        %2525 = vmatprep.subr.bf16.mxu0 0
        %2526 = vmatpush1.bf16.msra.mxu0 0
        %2527 = vmatprep.subr.bf16.mxu0 0
        %2528 = vmatpush1.bf16.msra.mxu0 0
        %2529 = vmatprep.subr.bf16.mxu0 0
        %2530 = vmatpush1.bf16.msra.mxu0 0
        %2531 = vmatprep.subr.bf16.mxu0 0
        %2532 = vmatpush1.bf16.msra.mxu0 0
        %2533 = vmatprep.subr.bf16.mxu0 0
        %2534 = vmatpush1.bf16.msra.mxu0 0
        %2535 = vmatprep.mubr.bf16.mxu0 0
        %2536 = vmatmul.mubr.bf16.gmra.mrb[0].mxu0 %v2501
        %v2537 = vpop.f32.mrb[0].mxu0
        %v2538 = vadd.f32 0.0, %v2537
        %v2539 = vpop.f32.mrb[0].mxu0
        %v2540 = vpop.f32.mrb[0].mxu0
        %v2541 = vadd.f32 0.0, %v2540
        %v2542 = vpop.f32.mrb[0].mxu0
        %2543 = vdwg.mxu0
        %v2544 = vpack.c.bf16 %v2541, %v2538
        %v2546 = vunpack.c.l.b16 %v2544
        %v2547 = vunpack.c.h.b16 %v2544
        %v2548 = vpack.c.b16 %v2546, %v2546
        %v2549 = vpack.c.b16 %v2547, %v2547
        %vm2552 = vcmask 60416
        %2553 = vst.msk [vmem:[%s942] sm:$0xf] %vm2552, %v2548
        %2554 = vst.msk [vmem:[%s942 + $0x4] sm:$0xf] %vm2552, %v2549
        %v2555 = vld [vmem:[#allocation26] sm:$0xf]
        %v2556 = vld [vmem:[#allocation26 + $0x4] sm:$0xf]
        %v2557 = vld [vmem:[#allocation26 + $0x8] sm:$0xf]
        %v2558 = vld [vmem:[#allocation26 + $0xc] sm:$0xf]
        %v2563 = vunpack.c.l.b16 %v2555
        %v2564 = vunpack.c.l.b16 %v2556
        %v2565 = vunpack.c.l.b16 %v2557
        %v2566 = vunpack.c.l.b16 %v2558
        %v2567 = vpack.c.b16 %v2564, %v2563
        %v2568 = vpack.c.b16 %v2566, %v2565
        %2571 = vmatprep.subr.bf16.mxu0 0
        %2572 = vmatpush1.bf16.msra.mxu0 %v2567
        %2573 = vmatprep.subr.bf16.mxu0 0
        %2574 = vmatpush1.bf16.msra.mxu0 %v2568
        %2575 = vmatprep.subr.bf16.mxu0 0
        %2576 = vmatpush1.bf16.msra.mxu0 0
        %2577 = vmatprep.subr.bf16.mxu0 0
        %2578 = vmatpush1.bf16.msra.mxu0 0
        %2579 = vmatprep.subr.bf16.mxu0 0
        %2580 = vmatpush1.bf16.msra.mxu0 0
        %2581 = vmatprep.subr.bf16.mxu0 0
        %2582 = vmatpush1.bf16.msra.mxu0 0
        %2583 = vmatprep.subr.bf16.mxu0 0
        %2584 = vmatpush1.bf16.msra.mxu0 0
        %2585 = vmatprep.subr.bf16.mxu0 0
        %2586 = vmatpush1.bf16.msra.mxu0 0
        %2587 = vmatprep.subr.bf16.mxu0 0
        %2588 = vmatpush1.bf16.msra.mxu0 0
        %2589 = vmatprep.subr.bf16.mxu0 0
        %2590 = vmatpush1.bf16.msra.mxu0 0
        %2591 = vmatprep.subr.bf16.mxu0 0
        %2592 = vmatpush1.bf16.msra.mxu0 0
        %2593 = vmatprep.subr.bf16.mxu0 0
        %2594 = vmatpush1.bf16.msra.mxu0 0
        %2595 = vmatprep.subr.bf16.mxu0 0
        %2596 = vmatpush1.bf16.msra.mxu0 0
        %2597 = vmatprep.subr.bf16.mxu0 0
        %2598 = vmatpush1.bf16.msra.mxu0 0
        %2599 = vmatprep.subr.bf16.mxu0 0
        %2600 = vmatpush1.bf16.msra.mxu0 0
        %2601 = vmatprep.subr.bf16.mxu0 0
        %2602 = vmatpush1.bf16.msra.mxu0 0
        %2603 = vmatprep.mubr.bf16.mxu0 0
        %2604 = vmatmul.mubr.bf16.gmra.mrb[0].mxu0 %v2501
        %v2605 = vpop.f32.mrb[0].mxu0
        %v2606 = vadd.f32 0.0, %v2605
        %v2607 = vpop.f32.mrb[0].mxu0
        %v2608 = vpop.f32.mrb[0].mxu0
        %v2609 = vadd.f32 0.0, %v2608
        %v2610 = vpop.f32.mrb[0].mxu0
        %2611 = vdwg.mxu0
        %v2612 = vpack.c.bf16 %v2609, %v2606
        %v2614 = vunpack.c.l.b16 %v2612
        %v2615 = vunpack.c.h.b16 %v2612
        %v2616 = vpack.c.b16 %v2614, %v2614
        %v2617 = vpack.c.b16 %v2615, %v2615
        %2620 = vst.msk [vmem:[%s949] sm:$0xf] %vm2552, %v2616
        %2621 = vst.msk [vmem:[%s949 + $0x4] sm:$0xf] %vm2552, %v2617
        %v2622 = vld [vmem:[#allocation28] sm:$0xf]
        %v2623 = vld [vmem:[#allocation28 + $0x4] sm:$0xf]
        %v2624 = vld [vmem:[#allocation28 + $0x8] sm:$0xf]
        %v2625 = vld [vmem:[#allocation28 + $0xc] sm:$0xf]
        %v2630 = vunpack.c.l.b16 %v2622
        %v2631 = vunpack.c.l.b16 %v2623
        %v2632 = vunpack.c.l.b16 %v2624
        %v2633 = vunpack.c.l.b16 %v2625
        %v2634 = vpack.c.b16 %v2631, %v2630
        %v2635 = vpack.c.b16 %v2633, %v2632
        %2638 = vmatprep.subr.bf16.mxu0 0
        %2639 = vmatpush1.bf16.msra.mxu0 %v2634
        %2640 = vmatprep.subr.bf16.mxu0 0
        %2641 = vmatpush1.bf16.msra.mxu0 %v2635
        %2642 = vmatprep.subr.bf16.mxu0 0
        %2643 = vmatpush1.bf16.msra.mxu0 0
        %2644 = vmatprep.subr.bf16.mxu0 0
        %2645 = vmatpush1.bf16.msra.mxu0 0
        %2646 = vmatprep.subr.bf16.mxu0 0
        %2647 = vmatpush1.bf16.msra.mxu0 0
        %2648 = vmatprep.subr.bf16.mxu0 0
        %2649 = vmatpush1.bf16.msra.mxu0 0
        %2650 = vmatprep.subr.bf16.mxu0 0
        %2651 = vmatpush1.bf16.msra.mxu0 0
        %2652 = vmatprep.subr.bf16.mxu0 0
        %2653 = vmatpush1.bf16.msra.mxu0 0
        %2654 = vmatprep.subr.bf16.mxu0 0
        %2655 = vmatpush1.bf16.msra.mxu0 0
        %2656 = vmatprep.subr.bf16.mxu0 0
        %2657 = vmatpush1.bf16.msra.mxu0 0
        %2658 = vmatprep.subr.bf16.mxu0 0
        %2659 = vmatpush1.bf16.msra.mxu0 0
        %2660 = vmatprep.subr.bf16.mxu0 0
        %2661 = vmatpush1.bf16.msra.mxu0 0
        %2662 = vmatprep.subr.bf16.mxu0 0
        %2663 = vmatpush1.bf16.msra.mxu0 0
        %2664 = vmatprep.subr.bf16.mxu0 0
        %2665 = vmatpush1.bf16.msra.mxu0 0
        %2666 = vmatprep.subr.bf16.mxu0 0
        %2667 = vmatpush1.bf16.msra.mxu0 0
        %2668 = vmatprep.subr.bf16.mxu0 0
        %2669 = vmatpush1.bf16.msra.mxu0 0
        %2670 = vmatprep.mubr.bf16.mxu0 0
        %2671 = vmatmul.mubr.bf16.gmra.mrb[0].mxu0 %v2501
        %v2672 = vpop.f32.mrb[0].mxu0
        %v2673 = vadd.f32 0.0, %v2672
        %v2674 = vpop.f32.mrb[0].mxu0
        %v2675 = vpop.f32.mrb[0].mxu0
        %v2676 = vadd.f32 0.0, %v2675
        %v2677 = vpop.f32.mrb[0].mxu0
        %2678 = vdwg.mxu0
        %v2679 = vpack.c.bf16 %v2676, %v2673
        %v2681 = vunpack.c.l.b16 %v2679
        %v2682 = vunpack.c.h.b16 %v2679
        %v2683 = vpack.c.b16 %v2681, %v2681
        %v2684 = vpack.c.b16 %v2682, %v2682
        %2687 = vst.msk [vmem:[%s956] sm:$0xf] %vm2552, %v2683
        %2688 = vst.msk [vmem:[%s956 + $0x4] sm:$0xf] %vm2552, %v2684
        %s2689 = scalar_lea.vmem [#allocation25], 16
        %v2690 = vld [vmem:[%s2689] sm:$0xf]
        %v2691 = vld [vmem:[%s2689 + $0x4] sm:$0xf]
        %v2692 = vld [vmem:[%s2689 + $0x8] sm:$0xf]
        %v2693 = vld [vmem:[%s2689 + $0xc] sm:$0xf]
        %v2698 = vunpack.c.l.b16 %v2690
        %v2699 = vunpack.c.l.b16 %v2691
        %v2700 = vunpack.c.l.b16 %v2692
        %v2701 = vunpack.c.l.b16 %v2693
        %v2702 = vpack.c.b16 %v2699, %v2698
        %v2703 = vpack.c.b16 %v2701, %v2700
        %2706 = vmatprep.subr.bf16.mxu0 0
        %2707 = vmatpush1.bf16.msra.mxu0 %v2702
        %2708 = vmatprep.subr.bf16.mxu0 0
        %2709 = vmatpush1.bf16.msra.mxu0 %v2703
        %2710 = vmatprep.subr.bf16.mxu0 0
        %2711 = vmatpush1.bf16.msra.mxu0 0
        %2712 = vmatprep.subr.bf16.mxu0 0
        %2713 = vmatpush1.bf16.msra.mxu0 0
        %2714 = vmatprep.subr.bf16.mxu0 0
        %2715 = vmatpush1.bf16.msra.mxu0 0
        %2716 = vmatprep.subr.bf16.mxu0 0
        %2717 = vmatpush1.bf16.msra.mxu0 0
        %2718 = vmatprep.subr.bf16.mxu0 0
        %2719 = vmatpush1.bf16.msra.mxu0 0
        %2720 = vmatprep.subr.bf16.mxu0 0
        %2721 = vmatpush1.bf16.msra.mxu0 0
        %2722 = vmatprep.subr.bf16.mxu0 0
        %2723 = vmatpush1.bf16.msra.mxu0 0
        %2724 = vmatprep.subr.bf16.mxu0 0
        %2725 = vmatpush1.bf16.msra.mxu0 0
        %2726 = vmatprep.subr.bf16.mxu0 0
        %2727 = vmatpush1.bf16.msra.mxu0 0
        %2728 = vmatprep.subr.bf16.mxu0 0
        %2729 = vmatpush1.bf16.msra.mxu0 0
        %2730 = vmatprep.subr.bf16.mxu0 0
        %2731 = vmatpush1.bf16.msra.mxu0 0
        %2732 = vmatprep.subr.bf16.mxu0 0
        %2733 = vmatpush1.bf16.msra.mxu0 0
        %2734 = vmatprep.subr.bf16.mxu0 0
        %2735 = vmatpush1.bf16.msra.mxu0 0
        %2736 = vmatprep.subr.bf16.mxu0 0
        %2737 = vmatpush1.bf16.msra.mxu0 0
        %2738 = vmatprep.mubr.bf16.mxu0 0
        %2739 = vmatmul.mubr.bf16.gmra.mrb[0].mxu0 %v2501
        %v2740 = vpop.f32.mrb[0].mxu0
        %v2741 = vadd.f32 0.0, %v2740
        %v2742 = vpop.f32.mrb[0].mxu0
        %v2743 = vpop.f32.mrb[0].mxu0
        %v2744 = vadd.f32 0.0, %v2743
        %v2745 = vpop.f32.mrb[0].mxu0
        %2746 = vdwg.mxu0
        %v2747 = vpack.c.bf16 %v2744, %v2741
        %v2749 = vunpack.c.l.b16 %v2747
        %v2750 = vunpack.c.h.b16 %v2747
        %v2751 = vpack.c.b16 %v2749, %v2749
        %v2752 = vpack.c.b16 %v2750, %v2750
        %s2755 = scalar_lea.vmem %s942, 8 [#allocation30]
        %2756 = vst.msk [vmem:[%s2755] sm:$0xf] %vm2552, %v2751
        %2757 = vst.msk [vmem:[%s2755 + $0x4] sm:$0xf] %vm2552, %v2752
        %s2758 = scalar_lea.vmem [#allocation26], 16
        %v2759 = vld [vmem:[%s2758] sm:$0xf]
        %v2760 = vld [vmem:[%s2758 + $0x4] sm:$0xf]
        %v2761 = vld [vmem:[%s2758 + $0x8] sm:$0xf]
        %v2762 = vld [vmem:[%s2758 + $0xc] sm:$0xf]
        %v2767 = vunpack.c.l.b16 %v2759
        %v2768 = vunpack.c.l.b16 %v2760
        %v2769 = vunpack.c.l.b16 %v2761
        %v2770 = vunpack.c.l.b16 %v2762
        %v2771 = vpack.c.b16 %v2768, %v2767
        %v2772 = vpack.c.b16 %v2770, %v2769
        %2775 = vmatprep.subr.bf16.mxu0 0
        %2776 = vmatpush1.bf16.msra.mxu0 %v2771
        %2777 = vmatprep.subr.bf16.mxu0 0
        %2778 = vmatpush1.bf16.msra.mxu0 %v2772
        %2779 = vmatprep.subr.bf16.mxu0 0
        %2780 = vmatpush1.bf16.msra.mxu0 0
        %2781 = vmatprep.subr.bf16.mxu0 0
        %2782 = vmatpush1.bf16.msra.mxu0 0
        %2783 = vmatprep.subr.bf16.mxu0 0
        %2784 = vmatpush1.bf16.msra.mxu0 0
        %2785 = vmatprep.subr.bf16.mxu0 0
        %2786 = vmatpush1.bf16.msra.mxu0 0
        %2787 = vmatprep.subr.bf16.mxu0 0
        %2788 = vmatpush1.bf16.msra.mxu0 0
        %2789 = vmatprep.subr.bf16.mxu0 0
        %2790 = vmatpush1.bf16.msra.mxu0 0
        %2791 = vmatprep.subr.bf16.mxu0 0
        %2792 = vmatpush1.bf16.msra.mxu0 0
        %2793 = vmatprep.subr.bf16.mxu0 0
        %2794 = vmatpush1.bf16.msra.mxu0 0
        %2795 = vmatprep.subr.bf16.mxu0 0
        %2796 = vmatpush1.bf16.msra.mxu0 0
        %2797 = vmatprep.subr.bf16.mxu0 0
        %2798 = vmatpush1.bf16.msra.mxu0 0
        %2799 = vmatprep.subr.bf16.mxu0 0
        %2800 = vmatpush1.bf16.msra.mxu0 0
        %2801 = vmatprep.subr.bf16.mxu0 0
        %2802 = vmatpush1.bf16.msra.mxu0 0
        %2803 = vmatprep.subr.bf16.mxu0 0
        %2804 = vmatpush1.bf16.msra.mxu0 0
        %2805 = vmatprep.subr.bf16.mxu0 0
        %2806 = vmatpush1.bf16.msra.mxu0 0
        %2807 = vmatprep.mubr.bf16.mxu0 0
        %2808 = vmatmul.mubr.bf16.gmra.mrb[0].mxu0 %v2501
        %v2809 = vpop.f32.mrb[0].mxu0
        %v2810 = vadd.f32 0.0, %v2809
        %v2811 = vpop.f32.mrb[0].mxu0
        %v2812 = vpop.f32.mrb[0].mxu0
        %v2813 = vadd.f32 0.0, %v2812
        %v2814 = vpop.f32.mrb[0].mxu0
        %2815 = vdwg.mxu0
        %v2816 = vpack.c.bf16 %v2813, %v2810
        %v2818 = vunpack.c.l.b16 %v2816
        %v2819 = vunpack.c.h.b16 %v2816
        %v2820 = vpack.c.b16 %v2818, %v2818
        %v2821 = vpack.c.b16 %v2819, %v2819
        %s2824 = scalar_lea.vmem %s949, 8 [#allocation32]
        %2825 = vst.msk [vmem:[%s2824] sm:$0xf] %vm2552, %v2820
        %2826 = vst.msk [vmem:[%s2824 + $0x4] sm:$0xf] %vm2552, %v2821
        %s2827 = scalar_lea.vmem [#allocation28], 16
        %v2828 = vld [vmem:[%s2827] sm:$0xf]
        %v2829 = vld [vmem:[%s2827 + $0x4] sm:$0xf]
        %v2830 = vld [vmem:[%s2827 + $0x8] sm:$0xf]
        %v2831 = vld [vmem:[%s2827 + $0xc] sm:$0xf]
        %v2836 = vunpack.c.l.b16 %v2828
        %v2837 = vunpack.c.l.b16 %v2829
        %v2838 = vunpack.c.l.b16 %v2830
        %v2839 = vunpack.c.l.b16 %v2831
        %v2840 = vpack.c.b16 %v2837, %v2836
        %v2841 = vpack.c.b16 %v2839, %v2838
        %2844 = vmatprep.subr.bf16.mxu0 0
        %2845 = vmatpush1.bf16.msra.mxu0 %v2840
        %2846 = vmatprep.subr.bf16.mxu0 0
        %2847 = vmatpush1.bf16.msra.mxu0 %v2841
        %2848 = vmatprep.subr.bf16.mxu0 0
        %2849 = vmatpush1.bf16.msra.mxu0 0
        %2850 = vmatprep.subr.bf16.mxu0 0
        %2851 = vmatpush1.bf16.msra.mxu0 0
        %2852 = vmatprep.subr.bf16.mxu0 0
        %2853 = vmatpush1.bf16.msra.mxu0 0
        %2854 = vmatprep.subr.bf16.mxu0 0
        %2855 = vmatpush1.bf16.msra.mxu0 0
        %2856 = vmatprep.subr.bf16.mxu0 0
        %2857 = vmatpush1.bf16.msra.mxu0 0
        %2858 = vmatprep.subr.bf16.mxu0 0
        %2859 = vmatpush1.bf16.msra.mxu0 0
        %2860 = vmatprep.subr.bf16.mxu0 0
        %2861 = vmatpush1.bf16.msra.mxu0 0
        %2862 = vmatprep.subr.bf16.mxu0 0
        %2863 = vmatpush1.bf16.msra.mxu0 0
        %2864 = vmatprep.subr.bf16.mxu0 0
        %2865 = vmatpush1.bf16.msra.mxu0 0
        %2866 = vmatprep.subr.bf16.mxu0 0
        %2867 = vmatpush1.bf16.msra.mxu0 0
        %2868 = vmatprep.subr.bf16.mxu0 0
        %2869 = vmatpush1.bf16.msra.mxu0 0
        %2870 = vmatprep.subr.bf16.mxu0 0
        %2871 = vmatpush1.bf16.msra.mxu0 0
        %2872 = vmatprep.subr.bf16.mxu0 0
        %2873 = vmatpush1.bf16.msra.mxu0 0
        %2874 = vmatprep.subr.bf16.mxu0 0
        %2875 = vmatpush1.bf16.msra.mxu0 0
        %2876 = vmatprep.mubr.bf16.mxu0 0
        %2877 = vmatmul.mubr.bf16.gmra.mrb[0].mxu0 %v2501
        %v2878 = vpop.f32.mrb[0].mxu0
        %v2879 = vadd.f32 0.0, %v2878
        %v2880 = vpop.f32.mrb[0].mxu0
        %v2881 = vpop.f32.mrb[0].mxu0
        %v2882 = vadd.f32 0.0, %v2881
        %v2883 = vpop.f32.mrb[0].mxu0
        %2884 = vdwg.mxu0
        %v2885 = vpack.c.bf16 %v2882, %v2879
        %v2887 = vunpack.c.l.b16 %v2885
        %v2888 = vunpack.c.h.b16 %v2885
        %v2889 = vpack.c.b16 %v2887, %v2887
        %v2890 = vpack.c.b16 %v2888, %v2888
        %s2893 = scalar_lea.vmem %s956, 8 [#allocation33]
        %2894 = vst.msk [vmem:[%s2893] sm:$0xf] %vm2552, %v2889
        %2895 = vst.msk [vmem:[%s2893 + $0x4] sm:$0xf] %vm2552, %v2890
        %s2896 = scalar_lea.vmem [#allocation25], 32
        %v2897 = vld [vmem:[%s2896] sm:$0xf]
        %v2898 = vld [vmem:[%s2896 + $0x4] sm:$0xf]
        %v2899 = vld [vmem:[%s2896 + $0x8] sm:$0xf]
        %v2900 = vld [vmem:[%s2896 + $0xc] sm:$0xf]
        %v2905 = vunpack.c.l.b16 %v2897
        %v2906 = vunpack.c.l.b16 %v2898
        %v2907 = vunpack.c.l.b16 %v2899
        %v2908 = vunpack.c.l.b16 %v2900
        %v2909 = vpack.c.b16 %v2906, %v2905
        %v2910 = vpack.c.b16 %v2908, %v2907
        %2913 = vmatprep.subr.bf16.mxu0 0
        %2914 = vmatpush1.bf16.msra.mxu0 %v2909
        %2915 = vmatprep.subr.bf16.mxu0 0
        %2916 = vmatpush1.bf16.msra.mxu0 %v2910
        %2917 = vmatprep.subr.bf16.mxu0 0
        %2918 = vmatpush1.bf16.msra.mxu0 0
        %2919 = vmatprep.subr.bf16.mxu0 0
        %2920 = vmatpush1.bf16.msra.mxu0 0
        %2921 = vmatprep.subr.bf16.mxu0 0
        %2922 = vmatpush1.bf16.msra.mxu0 0
        %2923 = vmatprep.subr.bf16.mxu0 0
        %2924 = vmatpush1.bf16.msra.mxu0 0
        %2925 = vmatprep.subr.bf16.mxu0 0
        %2926 = vmatpush1.bf16.msra.mxu0 0
        %2927 = vmatprep.subr.bf16.mxu0 0
        %2928 = vmatpush1.bf16.msra.mxu0 0
        %2929 = vmatprep.subr.bf16.mxu0 0
        %2930 = vmatpush1.bf16.msra.mxu0 0
        %2931 = vmatprep.subr.bf16.mxu0 0
        %2932 = vmatpush1.bf16.msra.mxu0 0
        %2933 = vmatprep.subr.bf16.mxu0 0
        %2934 = vmatpush1.bf16.msra.mxu0 0
        %2935 = vmatprep.subr.bf16.mxu0 0
        %2936 = vmatpush1.bf16.msra.mxu0 0
        %2937 = vmatprep.subr.bf16.mxu0 0
        %2938 = vmatpush1.bf16.msra.mxu0 0
        %2939 = vmatprep.subr.bf16.mxu0 0
        %2940 = vmatpush1.bf16.msra.mxu0 0
        %2941 = vmatprep.subr.bf16.mxu0 0
        %2942 = vmatpush1.bf16.msra.mxu0 0
        %2943 = vmatprep.subr.bf16.mxu0 0
        %2944 = vmatpush1.bf16.msra.mxu0 0
        %2945 = vmatprep.mubr.bf16.mxu0 0
        %2946 = vmatmul.mubr.bf16.gmra.mrb[0].mxu0 %v2501
        %v2947 = vpop.f32.mrb[0].mxu0
        %v2948 = vadd.f32 0.0, %v2947
        %v2949 = vpop.f32.mrb[0].mxu0
        %v2950 = vpop.f32.mrb[0].mxu0
        %v2951 = vadd.f32 0.0, %v2950
        %v2952 = vpop.f32.mrb[0].mxu0
        %2953 = vdwg.mxu0
        %v2954 = vpack.c.bf16 %v2951, %v2948
        %v2956 = vunpack.c.l.b16 %v2954
        %v2957 = vunpack.c.h.b16 %v2954
        %v2958 = vpack.c.b16 %v2956, %v2956
        %v2959 = vpack.c.b16 %v2957, %v2957
        %s2962 = scalar_lea.vmem %s942, 16 [#allocation30]
        %2963 = vst.msk [vmem:[%s2962] sm:$0xf] %vm2552, %v2958
        %2964 = vst.msk [vmem:[%s2962 + $0x4] sm:$0xf] %vm2552, %v2959
        %s2965 = scalar_lea.vmem [#allocation26], 32
        %v2966 = vld [vmem:[%s2965] sm:$0xf]
        %v2967 = vld [vmem:[%s2965 + $0x4] sm:$0xf]
        %v2968 = vld [vmem:[%s2965 + $0x8] sm:$0xf]
        %v2969 = vld [vmem:[%s2965 + $0xc] sm:$0xf]
        %v2974 = vunpack.c.l.b16 %v2966
        %v2975 = vunpack.c.l.b16 %v2967
        %v2976 = vunpack.c.l.b16 %v2968
        %v2977 = vunpack.c.l.b16 %v2969
        %v2978 = vpack.c.b16 %v2975, %v2974
        %v2979 = vpack.c.b16 %v2977, %v2976
        %2982 = vmatprep.subr.bf16.mxu0 0
        %2983 = vmatpush1.bf16.msra.mxu0 %v2978
        %2984 = vmatprep.subr.bf16.mxu0 0
        %2985 = vmatpush1.bf16.msra.mxu0 %v2979
        %2986 = vmatprep.subr.bf16.mxu0 0
        %2987 = vmatpush1.bf16.msra.mxu0 0
        %2988 = vmatprep.subr.bf16.mxu0 0
        %2989 = vmatpush1.bf16.msra.mxu0 0
        %2990 = vmatprep.subr.bf16.mxu0 0
        %2991 = vmatpush1.bf16.msra.mxu0 0
        %2992 = vmatprep.subr.bf16.mxu0 0
        %2993 = vmatpush1.bf16.msra.mxu0 0
        %2994 = vmatprep.subr.bf16.mxu0 0
        %2995 = vmatpush1.bf16.msra.mxu0 0
        %2996 = vmatprep.subr.bf16.mxu0 0
        %2997 = vmatpush1.bf16.msra.mxu0 0
        %2998 = vmatprep.subr.bf16.mxu0 0
        %2999 = vmatpush1.bf16.msra.mxu0 0
        %3000 = vmatprep.subr.bf16.mxu0 0
        %3001 = vmatpush1.bf16.msra.mxu0 0
        %3002 = vmatprep.subr.bf16.mxu0 0
        %3003 = vmatpush1.bf16.msra.mxu0 0
        %3004 = vmatprep.subr.bf16.mxu0 0
        %3005 = vmatpush1.bf16.msra.mxu0 0
        %3006 = vmatprep.subr.bf16.mxu0 0
        %3007 = vmatpush1.bf16.msra.mxu0 0
        %3008 = vmatprep.subr.bf16.mxu0 0
        %3009 = vmatpush1.bf16.msra.mxu0 0
        %3010 = vmatprep.subr.bf16.mxu0 0
        %3011 = vmatpush1.bf16.msra.mxu0 0
        %3012 = vmatprep.subr.bf16.mxu0 0
        %3013 = vmatpush1.bf16.msra.mxu0 0
        %3014 = vmatprep.mubr.bf16.mxu0 0
        %3015 = vmatmul.mubr.bf16.gmra.mrb[0].mxu0 %v2501
        %v3016 = vpop.f32.mrb[0].mxu0
        %v3017 = vadd.f32 0.0, %v3016
        %v3018 = vpop.f32.mrb[0].mxu0
        %v3019 = vpop.f32.mrb[0].mxu0
        %v3020 = vadd.f32 0.0, %v3019
        %v3021 = vpop.f32.mrb[0].mxu0
        %3022 = vdwg.mxu0
        %v3023 = vpack.c.bf16 %v3020, %v3017
        %v3025 = vunpack.c.l.b16 %v3023
        %v3026 = vunpack.c.h.b16 %v3023
        %v3027 = vpack.c.b16 %v3025, %v3025
        %v3028 = vpack.c.b16 %v3026, %v3026
        %s3031 = scalar_lea.vmem %s949, 16 [#allocation32]
        %3032 = vst.msk [vmem:[%s3031] sm:$0xf] %vm2552, %v3027
        %3033 = vst.msk [vmem:[%s3031 + $0x4] sm:$0xf] %vm2552, %v3028
        %s3034 = scalar_lea.vmem [#allocation28], 32
        %v3035 = vld [vmem:[%s3034] sm:$0xf]
        %v3036 = vld [vmem:[%s3034 + $0x4] sm:$0xf]
        %v3037 = vld [vmem:[%s3034 + $0x8] sm:$0xf]
        %v3038 = vld [vmem:[%s3034 + $0xc] sm:$0xf]
        %v3043 = vunpack.c.l.b16 %v3035
        %v3044 = vunpack.c.l.b16 %v3036
        %v3045 = vunpack.c.l.b16 %v3037
        %v3046 = vunpack.c.l.b16 %v3038
        %v3047 = vpack.c.b16 %v3044, %v3043
        %v3048 = vpack.c.b16 %v3046, %v3045
        %3051 = vmatprep.subr.bf16.mxu0 0
        %3052 = vmatpush1.bf16.msra.mxu0 %v3047
        %3053 = vmatprep.subr.bf16.mxu0 0
        %3054 = vmatpush1.bf16.msra.mxu0 %v3048
        %3055 = vmatprep.subr.bf16.mxu0 0
        %3056 = vmatpush1.bf16.msra.mxu0 0
        %3057 = vmatprep.subr.bf16.mxu0 0
        %3058 = vmatpush1.bf16.msra.mxu0 0
        %3059 = vmatprep.subr.bf16.mxu0 0
        %3060 = vmatpush1.bf16.msra.mxu0 0
        %3061 = vmatprep.subr.bf16.mxu0 0
        %3062 = vmatpush1.bf16.msra.mxu0 0
        %3063 = vmatprep.subr.bf16.mxu0 0
        %3064 = vmatpush1.bf16.msra.mxu0 0
        %3065 = vmatprep.subr.bf16.mxu0 0
        %3066 = vmatpush1.bf16.msra.mxu0 0
        %3067 = vmatprep.subr.bf16.mxu0 0
        %3068 = vmatpush1.bf16.msra.mxu0 0
        %3069 = vmatprep.subr.bf16.mxu0 0
        %3070 = vmatpush1.bf16.msra.mxu0 0
        %3071 = vmatprep.subr.bf16.mxu0 0
        %3072 = vmatpush1.bf16.msra.mxu0 0
        %3073 = vmatprep.subr.bf16.mxu0 0
        %3074 = vmatpush1.bf16.msra.mxu0 0
        %3075 = vmatprep.subr.bf16.mxu0 0
        %3076 = vmatpush1.bf16.msra.mxu0 0
        %3077 = vmatprep.subr.bf16.mxu0 0
        %3078 = vmatpush1.bf16.msra.mxu0 0
        %3079 = vmatprep.subr.bf16.mxu0 0
        %3080 = vmatpush1.bf16.msra.mxu0 0
        %3081 = vmatprep.subr.bf16.mxu0 0
        %3082 = vmatpush1.bf16.msra.mxu0 0
        %3083 = vmatprep.mubr.bf16.mxu0 0
        %3084 = vmatmul.mubr.bf16.gmra.mrb[0].mxu0 %v2501
        %v3085 = vpop.f32.mrb[0].mxu0
        %v3086 = vadd.f32 0.0, %v3085
        %v3087 = vpop.f32.mrb[0].mxu0
        %v3088 = vpop.f32.mrb[0].mxu0
        %v3089 = vadd.f32 0.0, %v3088
        %v3090 = vpop.f32.mrb[0].mxu0
        %3091 = vdwg.mxu0
        %v3092 = vpack.c.bf16 %v3089, %v3086
        %v3094 = vunpack.c.l.b16 %v3092
        %v3095 = vunpack.c.h.b16 %v3092
        %v3096 = vpack.c.b16 %v3094, %v3094
        %v3097 = vpack.c.b16 %v3095, %v3095
        %s3100 = scalar_lea.vmem %s956, 16 [#allocation33]
        %3101 = vst.msk [vmem:[%s3100] sm:$0xf] %vm2552, %v3096
        %3102 = vst.msk [vmem:[%s3100 + $0x4] sm:$0xf] %vm2552, %v3097
        %s3103 = scalar_lea.vmem [#allocation25], 48
        %v3104 = vld [vmem:[%s3103] sm:$0xf]
        %v3105 = vld [vmem:[%s3103 + $0x4] sm:$0xf]
        %v3106 = vld [vmem:[%s3103 + $0x8] sm:$0xf]
        %v3107 = vld [vmem:[%s3103 + $0xc] sm:$0xf]
        %v3112 = vunpack.c.l.b16 %v3104
        %v3113 = vunpack.c.l.b16 %v3105
        %v3114 = vunpack.c.l.b16 %v3106
        %v3115 = vunpack.c.l.b16 %v3107
        %v3116 = vpack.c.b16 %v3113, %v3112
        %v3117 = vpack.c.b16 %v3115, %v3114
        %3120 = vmatprep.subr.bf16.mxu0 0
        %3121 = vmatpush1.bf16.msra.mxu0 %v3116
        %3122 = vmatprep.subr.bf16.mxu0 0
        %3123 = vmatpush1.bf16.msra.mxu0 %v3117
        %3124 = vmatprep.subr.bf16.mxu0 0
        %3125 = vmatpush1.bf16.msra.mxu0 0
        %3126 = vmatprep.subr.bf16.mxu0 0
        %3127 = vmatpush1.bf16.msra.mxu0 0
        %3128 = vmatprep.subr.bf16.mxu0 0
        %3129 = vmatpush1.bf16.msra.mxu0 0
        %3130 = vmatprep.subr.bf16.mxu0 0
        %3131 = vmatpush1.bf16.msra.mxu0 0
        %3132 = vmatprep.subr.bf16.mxu0 0
        %3133 = vmatpush1.bf16.msra.mxu0 0
        %3134 = vmatprep.subr.bf16.mxu0 0
        %3135 = vmatpush1.bf16.msra.mxu0 0
        %3136 = vmatprep.subr.bf16.mxu0 0
        %3137 = vmatpush1.bf16.msra.mxu0 0
        %3138 = vmatprep.subr.bf16.mxu0 0
        %3139 = vmatpush1.bf16.msra.mxu0 0
        %3140 = vmatprep.subr.bf16.mxu0 0
        %3141 = vmatpush1.bf16.msra.mxu0 0
        %3142 = vmatprep.subr.bf16.mxu0 0
        %3143 = vmatpush1.bf16.msra.mxu0 0
        %3144 = vmatprep.subr.bf16.mxu0 0
        %3145 = vmatpush1.bf16.msra.mxu0 0
        %3146 = vmatprep.subr.bf16.mxu0 0
        %3147 = vmatpush1.bf16.msra.mxu0 0
        %3148 = vmatprep.subr.bf16.mxu0 0
        %3149 = vmatpush1.bf16.msra.mxu0 0
        %3150 = vmatprep.subr.bf16.mxu0 0
        %3151 = vmatpush1.bf16.msra.mxu0 0
        %3152 = vmatprep.mubr.bf16.mxu0 0
        %3153 = vmatmul.mubr.bf16.gmra.mrb[0].mxu0 %v2501
        %v3154 = vpop.f32.mrb[0].mxu0
        %v3155 = vadd.f32 0.0, %v3154
        %v3156 = vpop.f32.mrb[0].mxu0
        %v3157 = vpop.f32.mrb[0].mxu0
        %v3158 = vadd.f32 0.0, %v3157
        %v3159 = vpop.f32.mrb[0].mxu0
        %3160 = vdwg.mxu0
        %v3161 = vpack.c.bf16 %v3158, %v3155
        %v3163 = vunpack.c.l.b16 %v3161
        %v3164 = vunpack.c.h.b16 %v3161
        %v3165 = vpack.c.b16 %v3163, %v3163
        %v3166 = vpack.c.b16 %v3164, %v3164
        %s3169 = scalar_lea.vmem %s942, 24 [#allocation30]
        %3170 = vst.msk [vmem:[%s3169] sm:$0xf] %vm2552, %v3165
        %3171 = vst.msk [vmem:[%s3169 + $0x4] sm:$0xf] %vm2552, %v3166
        %s3172 = scalar_lea.vmem [#allocation26], 48
        %v3173 = vld [vmem:[%s3172] sm:$0xf]
        %v3174 = vld [vmem:[%s3172 + $0x4] sm:$0xf]
        %v3175 = vld [vmem:[%s3172 + $0x8] sm:$0xf]
        %v3176 = vld [vmem:[%s3172 + $0xc] sm:$0xf]
        %v3181 = vunpack.c.l.b16 %v3173
        %v3182 = vunpack.c.l.b16 %v3174
        %v3183 = vunpack.c.l.b16 %v3175
        %v3184 = vunpack.c.l.b16 %v3176
        %v3185 = vpack.c.b16 %v3182, %v3181
        %v3186 = vpack.c.b16 %v3184, %v3183
        %3189 = vmatprep.subr.bf16.mxu0 0
        %3190 = vmatpush1.bf16.msra.mxu0 %v3185
        %3191 = vmatprep.subr.bf16.mxu0 0
        %3192 = vmatpush1.bf16.msra.mxu0 %v3186
        %3193 = vmatprep.subr.bf16.mxu0 0
        %3194 = vmatpush1.bf16.msra.mxu0 0
        %3195 = vmatprep.subr.bf16.mxu0 0
        %3196 = vmatpush1.bf16.msra.mxu0 0
        %3197 = vmatprep.subr.bf16.mxu0 0
        %3198 = vmatpush1.bf16.msra.mxu0 0
        %3199 = vmatprep.subr.bf16.mxu0 0
        %3200 = vmatpush1.bf16.msra.mxu0 0
        %3201 = vmatprep.subr.bf16.mxu0 0
        %3202 = vmatpush1.bf16.msra.mxu0 0
        %3203 = vmatprep.subr.bf16.mxu0 0
        %3204 = vmatpush1.bf16.msra.mxu0 0
        %3205 = vmatprep.subr.bf16.mxu0 0
        %3206 = vmatpush1.bf16.msra.mxu0 0
        %3207 = vmatprep.subr.bf16.mxu0 0
        %3208 = vmatpush1.bf16.msra.mxu0 0
        %3209 = vmatprep.subr.bf16.mxu0 0
        %3210 = vmatpush1.bf16.msra.mxu0 0
        %3211 = vmatprep.subr.bf16.mxu0 0
        %3212 = vmatpush1.bf16.msra.mxu0 0
        %3213 = vmatprep.subr.bf16.mxu0 0
        %3214 = vmatpush1.bf16.msra.mxu0 0
        %3215 = vmatprep.subr.bf16.mxu0 0
        %3216 = vmatpush1.bf16.msra.mxu0 0
        %3217 = vmatprep.subr.bf16.mxu0 0
        %3218 = vmatpush1.bf16.msra.mxu0 0
        %3219 = vmatprep.subr.bf16.mxu0 0
        %3220 = vmatpush1.bf16.msra.mxu0 0
        %3221 = vmatprep.mubr.bf16.mxu0 0
        %3222 = vmatmul.mubr.bf16.gmra.mrb[0].mxu0 %v2501
        %v3223 = vpop.f32.mrb[0].mxu0
        %v3224 = vadd.f32 0.0, %v3223
        %v3225 = vpop.f32.mrb[0].mxu0
        %v3226 = vpop.f32.mrb[0].mxu0
        %v3227 = vadd.f32 0.0, %v3226
        %v3228 = vpop.f32.mrb[0].mxu0
        %3229 = vdwg.mxu0
        %v3230 = vpack.c.bf16 %v3227, %v3224
        %v3232 = vunpack.c.l.b16 %v3230
        %v3233 = vunpack.c.h.b16 %v3230
        %v3234 = vpack.c.b16 %v3232, %v3232
        %v3235 = vpack.c.b16 %v3233, %v3233
        %s3238 = scalar_lea.vmem %s949, 24 [#allocation32]
        %3239 = vst.msk [vmem:[%s3238] sm:$0xf] %vm2552, %v3234
        %3240 = vst.msk [vmem:[%s3238 + $0x4] sm:$0xf] %vm2552, %v3235
        %s3241 = scalar_lea.vmem [#allocation28], 48
        %v3242 = vld [vmem:[%s3241] sm:$0xf]
        %v3243 = vld [vmem:[%s3241 + $0x4] sm:$0xf]
        %v3244 = vld [vmem:[%s3241 + $0x8] sm:$0xf]
        %v3245 = vld [vmem:[%s3241 + $0xc] sm:$0xf]
        %v3250 = vunpack.c.l.b16 %v3242
        %v3251 = vunpack.c.l.b16 %v3243
        %v3252 = vunpack.c.l.b16 %v3244
        %v3253 = vunpack.c.l.b16 %v3245
        %v3254 = vpack.c.b16 %v3251, %v3250
        %v3255 = vpack.c.b16 %v3253, %v3252
        %3258 = vmatprep.subr.bf16.mxu0 0
        %3259 = vmatpush1.bf16.msra.mxu0 %v3254
        %3260 = vmatprep.subr.bf16.mxu0 0
        %3261 = vmatpush1.bf16.msra.mxu0 %v3255
        %3262 = vmatprep.subr.bf16.mxu0 0
        %3263 = vmatpush1.bf16.msra.mxu0 0
        %3264 = vmatprep.subr.bf16.mxu0 0
        %3265 = vmatpush1.bf16.msra.mxu0 0
        %3266 = vmatprep.subr.bf16.mxu0 0
        %3267 = vmatpush1.bf16.msra.mxu0 0
        %3268 = vmatprep.subr.bf16.mxu0 0
        %3269 = vmatpush1.bf16.msra.mxu0 0
        %3270 = vmatprep.subr.bf16.mxu0 0
        %3271 = vmatpush1.bf16.msra.mxu0 0
        %3272 = vmatprep.subr.bf16.mxu0 0
        %3273 = vmatpush1.bf16.msra.mxu0 0
        %3274 = vmatprep.subr.bf16.mxu0 0
        %3275 = vmatpush1.bf16.msra.mxu0 0
        %3276 = vmatprep.subr.bf16.mxu0 0
        %3277 = vmatpush1.bf16.msra.mxu0 0
        %3278 = vmatprep.subr.bf16.mxu0 0
        %3279 = vmatpush1.bf16.msra.mxu0 0
        %3280 = vmatprep.subr.bf16.mxu0 0
        %3281 = vmatpush1.bf16.msra.mxu0 0
        %3282 = vmatprep.subr.bf16.mxu0 0
        %3283 = vmatpush1.bf16.msra.mxu0 0
        %3284 = vmatprep.subr.bf16.mxu0 0
        %3285 = vmatpush1.bf16.msra.mxu0 0
        %3286 = vmatprep.subr.bf16.mxu0 0
        %3287 = vmatpush1.bf16.msra.mxu0 0
        %3288 = vmatprep.subr.bf16.mxu0 0
        %3289 = vmatpush1.bf16.msra.mxu0 0
        %3290 = vmatprep.mubr.bf16.mxu0 0
        %3291 = vmatmul.mubr.bf16.gmra.mrb[0].mxu0 %v2501
        %v3292 = vpop.f32.mrb[0].mxu0
        %v3293 = vadd.f32 0.0, %v3292
        %v3294 = vpop.f32.mrb[0].mxu0
        %v3295 = vpop.f32.mrb[0].mxu0
        %v3296 = vadd.f32 0.0, %v3295
        %v3297 = vpop.f32.mrb[0].mxu0
        %3298 = vdwg.mxu0
        %v3299 = vpack.c.bf16 %v3296, %v3293
        %v3301 = vunpack.c.l.b16 %v3299
        %v3302 = vunpack.c.h.b16 %v3299
        %v3303 = vpack.c.b16 %v3301, %v3301
        %v3304 = vpack.c.b16 %v3302, %v3302
        %s3307 = scalar_lea.vmem %s956, 24 [#allocation33]
        %3308 = vst.msk [vmem:[%s3307] sm:$0xf] %vm2552, %v3303
        %3309 = vst.msk [vmem:[%s3307 + $0x4] sm:$0xf] %vm2552, %v3304
        %s3310 = sand.u32 %s450, 1
        %s3311 = scalar_lea.sflag [#allocation4], %s3310
        %s3312 = sand.u32 %s450, 1
        %s3313 = smul.addr %s3312, 16
        %s3314 = scalar_lea.vmem [#allocation29], %s3313
        %s3315 = sand.u32 %s54, 1
        %s3316 = scalar_lea.sflag [#allocation31], %s3315
        %s3317 = sand.u32 %s478, 1
        %s3318 = smul.addr %s3317, 32
        %s3319 = scalar_lea.vmem [#allocation30], %s3318
        %s3320 = sand.u32 %s54, 1
        %s3321 = scalar_lea.sflag [#allocation31], %s3320
        %s3322 = sand.u32 %s506, 1
        %s3323 = smul.addr %s3322, 32
        %s3324 = scalar_lea.vmem [#allocation32], %s3323
        %s3325 = sand.u32 %s534, 1
        %s3326 = scalar_lea.sflag [#allocation34], %s3325
        %s3327 = sand.u32 %s534, 1
        %s3328 = smul.addr %s3327, 32
        %s3329 = scalar_lea.vmem [#allocation33], %s3328
        // Predicated region
        $region157: #{tpu_custom_call.1} parent=87 // pred_check
          %p3330 = pneg %p460
        $region158: #{tpu_custom_call.1} parent=87 // pred_check_branch
          %3332 = sbr.rel (%p3330) target = $region160
        $region159: #{tpu_custom_call.1} parent=87 // pred_region
          %s3333 = smul.u32 2, %s59
          %s3335 = ssub.s32 256, 256
          %3336 = vsyncadd %s3311, %s3335
          %s3337 = smul.addr %s58, 4
          %s3338 = sadd.s32 %s3333, %s3337
          %s3339 = smul.addr %s3338, 128
          %s3340 = scalar_lea.hbm %s17, %s3339
          %s3341 = sshll.u32 %s3314, 4
          %s3342 = int_to_ptr.vmem [resolvable:$true] %s3341
          %3347 = dma.vmem_to_hbm [thread:$0]  %s3342, 256, %s3340, %s3311, 128, 128, 8
        $region160: #{tpu_custom_call.1} parent=87 // pred_fallthru
          _
        // Predicated region
        $region161: #{tpu_custom_call.1} parent=87 // pred_check
          %p3348 = pneg %p488
        $region162: #{tpu_custom_call.1} parent=87 // pred_check_branch
          %3350 = sbr.rel (%p3348) target = $region164
        $region163: #{tpu_custom_call.1} parent=87 // pred_region
          #allocation36 [shape = 'u32[6]{0}', space=smem, size = 0x18, scoped, tag = 'DMA stride descriptor']
          %s3351 = smul.u32 2, %s59
          %s3353 = ssub.s32 512, 512
          %3354 = vsyncadd %s3316, %s3353
          %s3355 = smul.addr %s58, 16
          %s3356 = sadd.s32 %s3351, %s3355
          %s3357 = smul.addr %s3356, 64
          %s3358 = scalar_lea.hbm %s18, %s3357
          %s3360 = sshll.u32 1, 14
          %s3361 = sxor.u32 4294967295, %s3360
          %s3364 = sshll.u32 7, 18
          %s3365 = sxor.u32 4294967295, %s3364
          %s3366 = sand.u32 0, %s3365
          %s3368 = sor.u32 %s3366, 0
          %s3370 = sshll.u32 3, 24
          %s3371 = sxor.u32 4294967295, %s3370
          %s3372 = sand.u32 %s3368, %s3371
          %s3374 = sor.u32 %s3372, 0
          %s3375 = sshll.u32 %s3319, 4
          %s3376 = int_to_ptr.vmem [resolvable:$true] %s3375
          %3382 = sst [smem:[#allocation36]] 128
          %s3383 = scalar_lea.smem [#allocation36], 1
          %3384 = sst [smem:[%s3383]] 256
          %s3385 = scalar_lea.smem [#allocation36], 2
          %3386 = sst [smem:[%s3385]] 2
          %s3387 = scalar_lea.smem [#allocation36], 3
          %3388 = sst [smem:[%s3387]] 64
          %s3389 = scalar_lea.smem [#allocation36], 4
          %3390 = sst [smem:[%s3389]] 64
          %s3391 = scalar_lea.smem [#allocation36], 5
          %3392 = sst [smem:[%s3391]] 4
          %3394 = dma.general %s3376, 512, %s3358, %s3316, [#allocation35], [#allocation36], %s3374, 0
        $region164: #{tpu_custom_call.1} parent=87 // pred_fallthru
          _
        // Predicated region
        $region165: #{tpu_custom_call.1} parent=87 // pred_check
          %p3395 = pneg %p516
        $region166: #{tpu_custom_call.1} parent=87 // pred_check_branch
          %3397 = sbr.rel (%p3395) target = $region168
        $region167: #{tpu_custom_call.1} parent=87 // pred_region
          #allocation38 [shape = 'u32[6]{0}', space=smem, size = 0x18, scoped, tag = 'DMA stride descriptor']
          %s3398 = smul.u32 2, %s59
          %s3400 = ssub.s32 512, 512
          %3401 = vsyncadd %s3321, %s3400
          %s3402 = smul.addr %s58, 16
          %s3403 = sadd.s32 %s3398, %s3402
          %s3404 = smul.addr %s3403, 64
          %s3405 = scalar_lea.hbm %s19, %s3404
          %s3407 = sshll.u32 1, 14
          %s3408 = sxor.u32 4294967295, %s3407
          %s3411 = sshll.u32 7, 18
          %s3412 = sxor.u32 4294967295, %s3411
          %s3413 = sand.u32 0, %s3412
          %s3415 = sor.u32 %s3413, 0
          %s3417 = sshll.u32 3, 24
          %s3418 = sxor.u32 4294967295, %s3417
          %s3419 = sand.u32 %s3415, %s3418
          %s3421 = sor.u32 %s3419, 0
          %s3422 = sshll.u32 %s3324, 4
          %s3423 = int_to_ptr.vmem [resolvable:$true] %s3422
          %3429 = sst [smem:[#allocation38]] 128
          %s3430 = scalar_lea.smem [#allocation38], 1
          %3431 = sst [smem:[%s3430]] 256
          %s3432 = scalar_lea.smem [#allocation38], 2
          %3433 = sst [smem:[%s3432]] 2
          %s3434 = scalar_lea.smem [#allocation38], 3
          %3435 = sst [smem:[%s3434]] 64
          %s3436 = scalar_lea.smem [#allocation38], 4
          %3437 = sst [smem:[%s3436]] 64
          %s3438 = scalar_lea.smem [#allocation38], 5
          %3439 = sst [smem:[%s3438]] 4
          %3441 = dma.general %s3423, 512, %s3405, %s3321, [#allocation37], [#allocation38], %s3421, 0
        $region168: #{tpu_custom_call.1} parent=87 // pred_fallthru
          _
        // Predicated region
        $region169: #{tpu_custom_call.1} parent=87 // pred_check
          %p3442 = pneg %p544
        $region170: #{tpu_custom_call.1} parent=87 // pred_check_branch
          %3444 = sbr.rel (%p3442) target = $region172
        $region171: #{tpu_custom_call.1} parent=87 // pred_region
          #allocation40 [shape = 'u32[6]{0}', space=smem, size = 0x18, scoped, tag = 'DMA stride descriptor']
          %s3445 = smul.u32 2, %s59
          %s3447 = ssub.s32 512, 512
          %3448 = vsyncadd %s3326, %s3447
          %s3449 = smul.addr %s58, 16
          %s3450 = sadd.s32 %s3445, %s3449
          %s3451 = smul.addr %s3450, 64
          %s3452 = scalar_lea.hbm %s20, %s3451
          %s3454 = sshll.u32 1, 14
          %s3455 = sxor.u32 4294967295, %s3454
          %s3458 = sshll.u32 7, 18
          %s3459 = sxor.u32 4294967295, %s3458
          %s3460 = sand.u32 0, %s3459
          %s3462 = sor.u32 %s3460, 0
          %s3464 = sshll.u32 3, 24
          %s3465 = sxor.u32 4294967295, %s3464
          %s3466 = sand.u32 %s3462, %s3465
          %s3468 = sor.u32 %s3466, 0
          %s3469 = sshll.u32 %s3329, 4
          %s3470 = int_to_ptr.vmem [resolvable:$true] %s3469
          %3476 = sst [smem:[#allocation40]] 128
          %s3477 = scalar_lea.smem [#allocation40], 1
          %3478 = sst [smem:[%s3477]] 256
          %s3479 = scalar_lea.smem [#allocation40], 2
          %3480 = sst [smem:[%s3479]] 2
          %s3481 = scalar_lea.smem [#allocation40], 3
          %3482 = sst [smem:[%s3481]] 64
          %s3483 = scalar_lea.smem [#allocation40], 4
          %3484 = sst [smem:[%s3483]] 64
          %s3485 = scalar_lea.smem [#allocation40], 5
          %3486 = sst [smem:[%s3485]] 4
          %3488 = dma.general %s3470, 512, %s3452, %s3326, [#allocation39], [#allocation40], %s3468, 0
        $region172: #{tpu_custom_call.1} parent=87 // pred_fallthru
          _
      $region88: #{tpu_custom_call.1} parent=5 // pred_fallthru
        _
      %p3489 = scmp.le.s32.totalorder 2, %s49
      // Predicated region
      $region173: #{tpu_custom_call.1} parent=5 // pred_check
        %p3490 = pneg %p3489
      $region174: #{tpu_custom_call.1} parent=5 // pred_check_branch
        %3492 = sbr.rel (%p3490) target = $region176
      $region175: #{tpu_custom_call.1} parent=5 // pred_region
        %s3493 = ssub.s32 %s49, 2
        // Predicated region
        $region177: #{tpu_custom_call.1} parent=175 // pred_check
          %p3494 = pneg %p466
        $region178: #{tpu_custom_call.1} parent=175 // pred_check_branch
          %3496 = sbr.rel (%p3494) target = $region180
        $region179: #{tpu_custom_call.1} parent=175 // pred_region
          %s3497 = sand.u32 %s451, 1
          %s3498 = scalar_lea.sflag [#allocation4], %s3497
          %s3499 = sand.u32 %s451, 1
          %s3500 = smul.addr %s3499, 16
          %s3501 = scalar_lea.vmem [#allocation29], %s3500
          %3502 = dma.done %s3498, 256
        $region180: #{tpu_custom_call.1} parent=175 // pred_fallthru
          _
        // Predicated region
        $region181: #{tpu_custom_call.1} parent=175 // pred_check
          %p3503 = pneg %p494
        $region182: #{tpu_custom_call.1} parent=175 // pred_check_branch
          %3505 = sbr.rel (%p3503) target = $region184
        $region183: #{tpu_custom_call.1} parent=175 // pred_region
          %s3506 = sand.u32 %s55, 1
          %s3507 = scalar_lea.sflag [#allocation31], %s3506
          %s3508 = sand.u32 %s479, 1
          %s3509 = smul.addr %s3508, 32
          %s3510 = scalar_lea.vmem [#allocation30], %s3509
          %3511 = dma.done %s3507, 512
        $region184: #{tpu_custom_call.1} parent=175 // pred_fallthru
          _
        // Predicated region
        $region185: #{tpu_custom_call.1} parent=175 // pred_check
          %p3512 = pneg %p522
        $region186: #{tpu_custom_call.1} parent=175 // pred_check_branch
          %3514 = sbr.rel (%p3512) target = $region188
        $region187: #{tpu_custom_call.1} parent=175 // pred_region
          %s3515 = sand.u32 %s55, 1
          %s3516 = scalar_lea.sflag [#allocation31], %s3515
          %s3517 = sand.u32 %s507, 1
          %s3518 = smul.addr %s3517, 32
          %s3519 = scalar_lea.vmem [#allocation32], %s3518
          %3520 = dma.done %s3516, 512
        $region188: #{tpu_custom_call.1} parent=175 // pred_fallthru
          _
        // Predicated region
        $region189: #{tpu_custom_call.1} parent=175 // pred_check
          %p3521 = pneg %p550
        $region190: #{tpu_custom_call.1} parent=175 // pred_check_branch
          %3523 = sbr.rel (%p3521) target = $region192
        $region191: #{tpu_custom_call.1} parent=175 // pred_region
          %s3524 = sand.u32 %s535, 1
          %s3525 = scalar_lea.sflag [#allocation34], %s3524
          %s3526 = sand.u32 %s535, 1
          %s3527 = smul.addr %s3526, 32
          %s3528 = scalar_lea.vmem [#allocation33], %s3527
          %3529 = dma.done %s3525, 512
        $region192: #{tpu_custom_call.1} parent=175 // pred_fallthru
          _
      $region176: #{tpu_custom_call.1} parent=5 // pred_fallthru
        _
    $region6: #{tpu_custom_call.1} parent=1 // loop_footer
      %s53 = sadd.s32 1, %s49
    $region7: #{tpu_custom_call.1} parent=1 // loop_footer_branch
      %48 = sbr.rel target = $region3
    $region8: #{tpu_custom_call.1} parent=1 // loop_exit
      _
    %3530 = vsyncpa [#allocation3], 1
    %s3531 = scalar_lea.sflag [#allocation3], 1
    %3532 = vsyncpa %s3531, 1
    %3533 = vsyncpa [#allocation6], 1
    %s3534 = scalar_lea.sflag [#allocation6], 1
    %3535 = vsyncpa %s3534, 1
    %3536 = vsyncpa [#allocation9], 1
    %3537 = vsyncpa [#allocation12], 1
    %3538 = vsyncpa [#allocation15], 1
    %3539 = vsyncpa [#allocation18], 1
    %3540 = vsyncpa [#allocation21], 1
    %3541 = vsyncpa [#allocation24], 1
    %3542 = vsyncpa [#allocation27], 1
    %3543 = vsyncpa [#allocation4], 1
    %s3544 = scalar_lea.sflag [#allocation4], 1
    %3545 = vsyncpa %s3544, 1
    %3546 = vsyncpa [#allocation31], 1
    %s3547 = scalar_lea.sflag [#allocation31], 1
    %3548 = vsyncpa %s3547, 1
    %3549 = vsyncpa [#allocation34], 1
    %s3550 = scalar_lea.sflag [#allocation34], 1
    %3551 = vsyncpa %s3550, 1

</llo_original>
